<compile_context>
chip_gen: v7x
topology: tpu7x:2x2x1
jax: 0.10.0
libtpu: 0.0.40
codegen_flags: <defaults>
</compile_context>

<pallas_src>
import math

import jax
import jax.numpy as jnp
from jax.experimental import pallas as pl
from jax.experimental.pallas import tpu as pltpu

# ----------------------- config (small, consistent with the module) -----------------------
BATCH = 2
SEQ = 8
HIDDEN = 32
EMB = 32                 # embedding_dim (== hidden so decoder weights can be tied)
VOCAB = 128
NUM_HEADS = 2
HEAD_DIM = HIDDEN // NUM_HEADS
INTERMEDIATE = 64
NUM_LAYERS = 2
MAX_SEQ = SEQ
LN_EPS = 1e-12
INIT_STD = 0.02
IGNORE_INDEX = -100

assert HIDDEN == EMB, "tied decoder weights require hidden == embedding_dim"


# ===================== fully fused encoder + head + decoder + CE kernel =====================
def _fused_forward_kernel(
    x_ref, bias_ref, lab_ref,
    embg, embb,
    ln1g, ln1b, wqkv, bqkv, wo, bo, ln2g, ln2b, w1, b1, w2, b2,
    fing, finb, hw, hb, hlng, hlnb,
    emb_w, dec_b,
    loss_ref,
    ctx_s, sum_s, cnt_s,
):
    """One grid step = one batch element (S tokens) through encoder + head + tied
    decoder + masked cross-entropy; loss/count accumulated across grid steps."""
    b = pl.program_id(0)
    scale = 1.0 / math.sqrt(HEAD_DIM)
    inv_sqrt2 = 1.0 / math.sqrt(2.0)

    def ln(v, g, beta):                    # f32 LayerNorm (stats in f32)
        mu = jnp.mean(v, axis=-1, keepdims=True)
        vc = v - mu
        var = jnp.mean(vc * vc, axis=-1, keepdims=True)
        return vc * jax.lax.rsqrt(var + LN_EPS) * g + beta

    def mm(a, w):                          # bf16 matmul, f32 accumulation (MXU)
        return jnp.dot(a.astype(jnp.bfloat16), w.astype(jnp.bfloat16),
                       preferred_element_type=jnp.float32)

    def mm_nt(a, w):                       # a @ w.T without materializing a transpose
        return jax.lax.dot_general(
            a.astype(jnp.bfloat16), w.astype(jnp.bfloat16),
            (((1,), (1,)), ((), ())), preferred_element_type=jnp.float32)

    def gelu(v):                           # exact (erf) GELU, same as torch.nn.GELU default
        return 0.5 * v * (1.0 + jax.lax.erf(v * inv_sqrt2))

    @pl.when(b == 0)
    def _():
        sum_s[...] = jnp.zeros_like(sum_s)
        cnt_s[...] = jnp.zeros_like(cnt_s)

    # embeddings (already gathered outside) -> embedding LayerNorm
    x = ln(x_ref[0].astype(jnp.float32), embg[...], embb[...])            # (S, H) f32
    bias = bias_ref[0]                                                    # (1, S) additive mask

    for l in range(NUM_LAYERS):            # static unroll over layers; all weights in VMEM
        # --- self-attention block (pre-LN) ---
        h = ln(x, ln1g[l], ln1b[l])
        qkv = mm(h, wqkv[l]) + bqkv[l]                                    # (S, 3H) f32
        for hd in range(NUM_HEADS):        # heads sliced on the lane axis; no transposes
            lo = hd * HEAD_DIM
            q = qkv[:, lo:lo + HEAD_DIM]
            k = qkv[:, HIDDEN + lo:HIDDEN + lo + HEAD_DIM]
            v = qkv[:, 2 * HIDDEN + lo:2 * HIDDEN + lo + HEAD_DIM]
            s = mm_nt(q, k) * scale + bias                                # (S, S) f32
            m = jnp.max(s, axis=-1, keepdims=True)
            p = jnp.exp(s - m)
            p = p * pl.reciprocal(jnp.sum(p, axis=-1, keepdims=True), approx=True)
            ctx_s[:, lo:lo + HEAD_DIM] = mm(p, v)                         # write head ctx slice
        x = x + mm(ctx_s[...], wo[l]) + bo[l]

        # --- feed-forward block (pre-LN) ---
        h = ln(x, ln2g[l], ln2b[l])
        h = gelu(mm(h, w1[l]) + b1[l])
        x = x + mm(h, w2[l]) + b2[l]

    # final LayerNorm + prediction head (Linear -> GELU -> LayerNorm)
    x = ln(x, fing[...], finb[...])
    h = gelu(mm(x, hw[...]) + hb[...])
    h = ln(h, hlng[...], hlnb[...])                                       # (S, E) f32

    # tied decoder: logits = h @ word_emb^T + bias (word_emb kept in stored [V, E] layout).
    # VOCAB fits in one lane-dense 128-wide tile at this config; logits never leave VMEM.
    # TODO(synk): for large vocabularies, tile the vocab axis with an online logsumexp.
    logits = mm_nt(h, emb_w[...]) + dec_b[...]                            # (S, V) f32

    labels = lab_ref[0]                                                   # (S, 1) int32
    m = jnp.max(logits, axis=-1, keepdims=True)
    lse = m + jnp.log(jnp.sum(jnp.exp(logits - m), axis=-1, keepdims=True))     # (S, 1)
    ids = jax.lax.broadcasted_iota(jnp.int32, logits.shape, 1)
    tgt = jnp.sum(jnp.where(ids == labels, logits, 0.0), axis=-1, keepdims=True)
    valid = (labels != IGNORE_INDEX).astype(jnp.float32)
    per_tok = (lse - tgt) * valid                                         # (S, 1)
    sum_s[...] += jnp.sum(per_tok, axis=0, keepdims=True)                 # (1, 1)
    cnt_s[...] += jnp.sum(valid, axis=0, keepdims=True)                   # (1, 1)

    @pl.when(b == pl.num_programs(0) - 1)
    def _():
        # mean over valid targets; NaN if no valid labels (same as torch CE with ignore_index)
        loss_ref[...] = sum_s[...] / cnt_s[...]


def _rep_spec(arr):
    """Full-array block, same block for every grid step (weights stay resident in VMEM)."""
    nd = arr.ndim
    return pl.BlockSpec(arr.shape, lambda b, _n=nd: (0,) * _n)


def fused_forward(params, x_emb, attn_bias, labels):
    """x_emb: (B, S, E) bf16; attn_bias: (B, 1, S) f32; labels: (B, S, 1) int32 -> scalar loss."""
    B = x_emb.shape[0]
    weights = [
        params["emb_ln_g"], params["emb_ln_b"],
        params["ln1_g"], params["ln1_b"], params["Wqkv"], params["bqkv"],
        params["Wo"], params["bo"], params["ln2_g"], params["ln2_b"],
        params["W1"], params["b1"], params["W2"], params["b2"],
        params["final_ln_g"], params["final_ln_b"],
        params["head_W"], params["head_b"], params["head_ln_g"], params["head_ln_b"],
        params["word_emb"], params["dec_b"],
    ]
    in_specs = [
        pl.BlockSpec((1, SEQ, EMB), lambda b: (b, 0, 0)),      # token tile (one batch element)
        pl.BlockSpec((1, 1, SEQ), lambda b: (b, 0, 0)),        # additive attention bias
        pl.BlockSpec((1, SEQ, 1), lambda b: (b, 0, 0)),        # labels for this batch element
    ] + [_rep_spec(w) for w in weights]

    loss = pl.pallas_call(
        _fused_forward_kernel,
        out_shape=jax.ShapeDtypeStruct((1, 1), jnp.float32),
        grid=(B,),
        in_specs=in_specs,
        out_specs=pl.BlockSpec((1, 1), lambda b: (0, 0)),      # same block every step -> accumulator
        scratch_shapes=[
            pltpu.VMEM((SEQ, HIDDEN), jnp.float32),            # per-batch attention context
            pltpu.VMEM((1, 1), jnp.float32),                   # running loss sum
            pltpu.VMEM((1, 1), jnp.float32),                   # running valid-target count
        ],
        compiler_params=pltpu.CompilerParams(
            dimension_semantics=("arbitrary",)),               # batch axis is a loss reduction
    )(x_emb, attn_bias, labels, *weights)
    return loss[0, 0]


# ---------------------------------- parameter init -----------------------------------------
def init_params(key):
    keys = iter(jax.random.split(key, 32))

    def nrm(shape, dtype):
        return (INIT_STD * jax.random.normal(next(keys), shape, jnp.float32)).astype(dtype)

    def stack(make):
        return jnp.stack([make() for _ in range(NUM_LAYERS)])

    return {
        # embeddings (bf16 weight matrices; decoder weight is tied to word_emb)
        "word_emb": nrm((VOCAB, EMB), jnp.bfloat16),
        "pos_emb": nrm((MAX_SEQ, EMB), jnp.bfloat16),
        "emb_ln_g": jnp.ones((1, EMB), jnp.float32),
        "emb_ln_b": jnp.zeros((1, EMB), jnp.float32),
        # transformer layers, stacked along a leading layer axis
        "ln1_g": jnp.ones((NUM_LAYERS, 1, HIDDEN), jnp.float32),
        "ln1_b": jnp.zeros((NUM_LAYERS, 1, HIDDEN), jnp.float32),
        "Wqkv": stack(lambda: nrm((HIDDEN, 3 * HIDDEN), jnp.bfloat16)),
        "bqkv": jnp.zeros((NUM_LAYERS, 1, 3 * HIDDEN), jnp.float32),
        "Wo": stack(lambda: nrm((HIDDEN, HIDDEN), jnp.bfloat16)),
        "bo": jnp.zeros((NUM_LAYERS, 1, HIDDEN), jnp.float32),
        "ln2_g": jnp.ones((NUM_LAYERS, 1, HIDDEN), jnp.float32),
        "ln2_b": jnp.zeros((NUM_LAYERS, 1, HIDDEN), jnp.float32),
        "W1": stack(lambda: nrm((HIDDEN, INTERMEDIATE), jnp.bfloat16)),
        "b1": jnp.zeros((NUM_LAYERS, 1, INTERMEDIATE), jnp.float32),
        "W2": stack(lambda: nrm((INTERMEDIATE, HIDDEN), jnp.bfloat16)),
        "b2": jnp.zeros((NUM_LAYERS, 1, HIDDEN), jnp.float32),
        "final_ln_g": jnp.ones((1, HIDDEN), jnp.float32),
        "final_ln_b": jnp.zeros((1, HIDDEN), jnp.float32),
        # PredictionHeadComponent: Linear(H, E) -> GELU -> LayerNorm(E)
        "head_W": nrm((HIDDEN, EMB), jnp.bfloat16),
        "head_b": jnp.zeros((1, EMB), jnp.float32),
        "head_ln_g": jnp.ones((1, EMB), jnp.float32),
        "head_ln_b": jnp.zeros((1, EMB), jnp.float32),
        # decoder bias (weight is tied to word_emb)
        "dec_b": jnp.zeros((1, VOCAB), jnp.float32),
    }


# ------------------------------------ forward pass -----------------------------------------
def lm_for_pretraining_forward(params, input_ids, attention_mask=None, labels=None):
    """Mirror of ScriptableLMForPreTraining.forward (sparse_prediction=False path)."""
    B, S = input_ids.shape
    if attention_mask is None:
        attention_mask = jnp.ones((B, S), jnp.float32)

    # embedding lookup + learned positional embedding (gather stays as plain-JAX glue)
    x = params["word_emb"][input_ids] + params["pos_emb"][:S][None]      # (B, S, E) bf16

    # additive attention bias (0 = attend, -1e9 = masked); all -1e9 row -> uniform softmax,
    # matching PyTorch's additive-mask behavior.
    attn_bias = ((1.0 - attention_mask.astype(jnp.float32)) * -1e9)[:, None, :]   # (B, 1, S)

    if labels is None:
        # torch returns a fresh zero tensor when labels is None; only `loss` is in the dict,
        # so the (unused) logits need not be materialized.
        return dict(loss=jnp.zeros((), jnp.float32))

    # TODO(synk): sparse_prediction=True uses a boolean-mask gather (data-dependent shape);
    # with reduction='mean' + ignore_index the fused masked CE below is equivalent.
    lab = labels.reshape(B, S, 1).astype(jnp.int32)
    loss = fused_forward(params, x, attn_bias, lab)
    return dict(loss=loss)


# ---------------------------------------- main ----------------------------------------------
if __name__ == "__main__":
    key = jax.random.PRNGKey(0)
    k_params, k_ids, k_lab, k_mask = jax.random.split(key, 4)

    params = init_params(k_params)

    input_ids = jax.random.randint(k_ids, (BATCH, SEQ), 0, VOCAB, dtype=jnp.int32)
    attention_mask = jnp.ones((BATCH, SEQ), jnp.float32)
    # MLM-style labels: ~25% positions are real targets, rest are ignore_index (-100)
    raw_labels = jax.random.randint(k_lab, (BATCH, SEQ), 0, VOCAB, dtype=jnp.int32)
    mask_pos = jax.random.uniform(k_mask, (BATCH, SEQ)) < 0.25
    mask_pos = mask_pos.at[0, 0].set(True)   # guarantee >=1 valid target (else CE is NaN, like torch)
    labels = jnp.where(mask_pos, raw_labels, jnp.full_like(raw_labels, IGNORE_INDEX))

    fwd = jax.jit(lm_for_pretraining_forward)
    out = fwd(params, input_ids, attention_mask, labels)
    loss = jax.block_until_ready(out["loss"])
    assert jnp.isfinite(loss), f"non-finite loss: {loss}"
    print("KERNEL_OK")
</pallas_src>

<mosaic_0001>
module attributes {stable_mosaic.version = 11 : i64} {
  func.func @_fused_forward_kernel(%arg0: i32, %arg1: memref<1x8x32xbf16, #tpu.memory_space<vmem>>, %arg2: memref<1x1x8xf32, #tpu.memory_space<vmem>>, %arg3: memref<1x8x1xi32, #tpu.memory_space<vmem>>, %arg4: memref<1x32xf32, #tpu.memory_space<vmem>>, %arg5: memref<1x32xf32, #tpu.memory_space<vmem>>, %arg6: memref<2x1x32xf32, #tpu.memory_space<vmem>>, %arg7: memref<2x1x32xf32, #tpu.memory_space<vmem>>, %arg8: memref<2x32x96xbf16, #tpu.memory_space<vmem>>, %arg9: memref<2x1x96xf32, #tpu.memory_space<vmem>>, %arg10: memref<2x32x32xbf16, #tpu.memory_space<vmem>>, %arg11: memref<2x1x32xf32, #tpu.memory_space<vmem>>, %arg12: memref<2x1x32xf32, #tpu.memory_space<vmem>>, %arg13: memref<2x1x32xf32, #tpu.memory_space<vmem>>, %arg14: memref<2x32x64xbf16, #tpu.memory_space<vmem>>, %arg15: memref<2x1x64xf32, #tpu.memory_space<vmem>>, %arg16: memref<2x64x32xbf16, #tpu.memory_space<vmem>>, %arg17: memref<2x1x32xf32, #tpu.memory_space<vmem>>, %arg18: memref<1x32xf32, #tpu.memory_space<vmem>>, %arg19: memref<1x32xf32, #tpu.memory_space<vmem>>, %arg20: memref<32x32xbf16, #tpu.memory_space<vmem>>, %arg21: memref<1x32xf32, #tpu.memory_space<vmem>>, %arg22: memref<1x32xf32, #tpu.memory_space<vmem>>, %arg23: memref<1x32xf32, #tpu.memory_space<vmem>>, %arg24: memref<128x32xbf16, #tpu.memory_space<vmem>>, %arg25: memref<1x128xf32, #tpu.memory_space<vmem>>, %arg26: memref<1x1xf32, #tpu.memory_space<vmem>>, %arg27: memref<8x32xf32, #tpu.memory_space<vmem>>, %arg28: memref<1x1xf32, #tpu.memory_space<vmem>>, %arg29: memref<1x1xf32, #tpu.memory_space<vmem>>) attributes {dimension_semantics = [#tpu.dimension_semantics<arbitrary>], iteration_bounds = array<i64: 2>, scalar_prefetch = 0 : i64, scratch_operands = 3 : i64, tpu.core_type = #tpu.core_type<tc>, window_params = [{transform_indices = @transform_0, window_bounds = array<i64: 1, 8, 32>}, {transform_indices = @transform_1, window_bounds = array<i64: 1, 1, 8>}, {transform_indices = @transform_2, window_bounds = array<i64: 1, 8, 1>}, {pipeline_mode = #tpu.pipeline_mode<synchronous>, transform_indices = @transform_3, window_bounds = array<i64: 1, 32>}, {pipeline_mode = #tpu.pipeline_mode<synchronous>, transform_indices = @transform_4, window_bounds = array<i64: 1, 32>}, {pipeline_mode = #tpu.pipeline_mode<synchronous>, transform_indices = @transform_5, window_bounds = array<i64: 2, 1, 32>}, {pipeline_mode = #tpu.pipeline_mode<synchronous>, transform_indices = @transform_6, window_bounds = array<i64: 2, 1, 32>}, {pipeline_mode = #tpu.pipeline_mode<synchronous>, transform_indices = @transform_7, window_bounds = array<i64: 2, 32, 96>}, {pipeline_mode = #tpu.pipeline_mode<synchronous>, transform_indices = @transform_8, window_bounds = array<i64: 2, 1, 96>}, {pipeline_mode = #tpu.pipeline_mode<synchronous>, transform_indices = @transform_9, window_bounds = array<i64: 2, 32, 32>}, {pipeline_mode = #tpu.pipeline_mode<synchronous>, transform_indices = @transform_10, window_bounds = array<i64: 2, 1, 32>}, {pipeline_mode = #tpu.pipeline_mode<synchronous>, transform_indices = @transform_11, window_bounds = array<i64: 2, 1, 32>}, {pipeline_mode = #tpu.pipeline_mode<synchronous>, transform_indices = @transform_12, window_bounds = array<i64: 2, 1, 32>}, {pipeline_mode = #tpu.pipeline_mode<synchronous>, transform_indices = @transform_13, window_bounds = array<i64: 2, 32, 64>}, {pipeline_mode = #tpu.pipeline_mode<synchronous>, transform_indices = @transform_14, window_bounds = array<i64: 2, 1, 64>}, {pipeline_mode = #tpu.pipeline_mode<synchronous>, transform_indices = @transform_15, window_bounds = array<i64: 2, 64, 32>}, {pipeline_mode = #tpu.pipeline_mode<synchronous>, transform_indices = @transform_16, window_bounds = array<i64: 2, 1, 32>}, {pipeline_mode = #tpu.pipeline_mode<synchronous>, transform_indices = @transform_17, window_bounds = array<i64: 1, 32>}, {pipeline_mode = #tpu.pipeline_mode<synchronous>, transform_indices = @transform_18, window_bounds = array<i64: 1, 32>}, {pipeline_mode = #tpu.pipeline_mode<synchronous>, transform_indices = @transform_19, window_bounds = array<i64: 32, 32>}, {pipeline_mode = #tpu.pipeline_mode<synchronous>, transform_indices = @transform_20, window_bounds = array<i64: 1, 32>}, {pipeline_mode = #tpu.pipeline_mode<synchronous>, transform_indices = @transform_21, window_bounds = array<i64: 1, 32>}, {pipeline_mode = #tpu.pipeline_mode<synchronous>, transform_indices = @transform_22, window_bounds = array<i64: 1, 32>}, {pipeline_mode = #tpu.pipeline_mode<synchronous>, transform_indices = @transform_23, window_bounds = array<i64: 128, 32>}, {pipeline_mode = #tpu.pipeline_mode<synchronous>, transform_indices = @transform_24, window_bounds = array<i64: 1, 128>}, {pipeline_mode = #tpu.pipeline_mode<synchronous>, transform_indices = @transform_25, window_bounds = array<i64: 1, 1>}]} {
    %c0_i32 = arith.constant 0 : i32
    %0 = arith.cmpi eq, %arg0, %c0_i32 : i32
    %1 = arith.extui %0 : i1 to i32
    %c0_i32_0 = arith.constant 0 : i32
    %2 = arith.cmpi ne, %1, %c0_i32_0 : i32
    scf.if %2 {
      %cst_199 = arith.constant 0.000000e+00 : f32
      %409 = vector.broadcast %cst_199 : f32 to vector<1x1xf32>
      %c0_200 = arith.constant 0 : index
      %c0_201 = arith.constant 0 : index
      %410 = vector.load %arg28[%c0_200, %c0_201] : memref<1x1xf32, #tpu.memory_space<vmem>>, vector<1x1xf32>
      tpu.vector_store %arg28[%c0_200, %c0_201], %409 {strides = array<i32>} : memref<1x1xf32, #tpu.memory_space<vmem>>, vector<1x1xf32>,
      %cst_202 = arith.constant 0.000000e+00 : f32
      %411 = vector.broadcast %cst_202 : f32 to vector<1x1xf32>
      %c0_203 = arith.constant 0 : index
      %c0_204 = arith.constant 0 : index
      %412 = vector.load %arg29[%c0_203, %c0_204] : memref<1x1xf32, #tpu.memory_space<vmem>>, vector<1x1xf32>
      tpu.vector_store %arg29[%c0_203, %c0_204], %411 {strides = array<i32>} : memref<1x1xf32, #tpu.memory_space<vmem>>, vector<1x1xf32>,
    } else {
    }
    %c0 = arith.constant 0 : index
    %c0_1 = arith.constant 0 : index
    %c0_2 = arith.constant 0 : index
    %3 = vector.load %arg1[%c0, %c0_1, %c0_2] : memref<1x8x32xbf16, #tpu.memory_space<vmem>>, vector<1x8x32xbf16>
    %4 = vector.shape_cast %3 : vector<1x8x32xbf16> to vector<8x32xbf16>
    %5 = arith.extf %4 : vector<8x32xbf16> to vector<8x32xf32>
    %c0_3 = arith.constant 0 : index
    %c0_4 = arith.constant 0 : index
    %6 = vector.load %arg4[%c0_3, %c0_4] : memref<1x32xf32, #tpu.memory_space<vmem>>, vector<1x32xf32>
    %c0_5 = arith.constant 0 : index
    %c0_6 = arith.constant 0 : index
    %7 = vector.load %arg5[%c0_5, %c0_6] : memref<1x32xf32, #tpu.memory_space<vmem>>, vector<1x32xf32>
    %cst = arith.constant dense<0.000000e+00> : vector<8xf32>
    %8 = vector.multi_reduction <add>, %5, %cst [1] : vector<8x32xf32> to vector<8xf32>
    %9 = vector.shape_cast %8 : vector<8xf32> to vector<8x1xf32>
    %cst_7 = arith.constant 3.200000e+01 : f32
    %10 = vector.broadcast %cst_7 : f32 to vector<8x1xf32>
    %11 = arith.divf %9, %10 : vector<8x1xf32>
    %12 = vector.broadcast %11 : vector<8x1xf32> to vector<8x32xf32>
    %13 = arith.subf %5, %12 : vector<8x32xf32>
    %14 = arith.mulf %13, %13 : vector<8x32xf32>
    %cst_8 = arith.constant dense<0.000000e+00> : vector<8xf32>
    %15 = vector.multi_reduction <add>, %14, %cst_8 [1] : vector<8x32xf32> to vector<8xf32>
    %16 = vector.shape_cast %15 : vector<8xf32> to vector<8x1xf32>
    %cst_9 = arith.constant 3.200000e+01 : f32
    %17 = vector.broadcast %cst_9 : f32 to vector<8x1xf32>
    %18 = arith.divf %16, %17 : vector<8x1xf32>
    %cst_10 = arith.constant 9.99999996E-13 : f32
    %19 = vector.broadcast %cst_10 : f32 to vector<8x1xf32>
    %20 = arith.addf %18, %19 : vector<8x1xf32>
    %21 = math.rsqrt %20 : vector<8x1xf32>
    %22 = vector.broadcast %21 : vector<8x1xf32> to vector<8x32xf32>
    %23 = arith.mulf %13, %22 : vector<8x32xf32>
    %24 = vector.broadcast %6 : vector<1x32xf32> to vector<8x32xf32>
    %25 = arith.mulf %23, %24 : vector<8x32xf32>
    %26 = vector.broadcast %7 : vector<1x32xf32> to vector<8x32xf32>
    %27 = arith.addf %25, %26 : vector<8x32xf32>
    %c0_11 = arith.constant 0 : index
    %c0_12 = arith.constant 0 : index
    %c0_13 = arith.constant 0 : index
    %28 = vector.load %arg2[%c0_11, %c0_12, %c0_13] : memref<1x1x8xf32, #tpu.memory_space<vmem>>, vector<1x1x8xf32>
    %29 = vector.shape_cast %28 : vector<1x1x8xf32> to vector<1x8xf32>
    %c0_14 = arith.constant 0 : index
    %c0_15 = arith.constant 0 : index
    %c0_16 = arith.constant 0 : index
    %30 = vector.load %arg6[%c0_14, %c0_15, %c0_16] : memref<2x1x32xf32, #tpu.memory_space<vmem>>, vector<1x1x32xf32>
    %31 = vector.shape_cast %30 : vector<1x1x32xf32> to vector<1x32xf32>
    %c0_17 = arith.constant 0 : index
    %c0_18 = arith.constant 0 : index
    %c0_19 = arith.constant 0 : index
    %32 = vector.load %arg7[%c0_17, %c0_18, %c0_19] : memref<2x1x32xf32, #tpu.memory_space<vmem>>, vector<1x1x32xf32>
    %33 = vector.shape_cast %32 : vector<1x1x32xf32> to vector<1x32xf32>
    %cst_20 = arith.constant dense<0.000000e+00> : vector<8xf32>
    %34 = vector.multi_reduction <add>, %27, %cst_20 [1] : vector<8x32xf32> to vector<8xf32>
    %35 = vector.shape_cast %34 : vector<8xf32> to vector<8x1xf32>
    %cst_21 = arith.constant 3.200000e+01 : f32
    %36 = vector.broadcast %cst_21 : f32 to vector<8x1xf32>
    %37 = arith.divf %35, %36 : vector<8x1xf32>
    %38 = vector.broadcast %37 : vector<8x1xf32> to vector<8x32xf32>
    %39 = arith.subf %27, %38 : vector<8x32xf32>
    %40 = arith.mulf %39, %39 : vector<8x32xf32>
    %cst_22 = arith.constant dense<0.000000e+00> : vector<8xf32>
    %41 = vector.multi_reduction <add>, %40, %cst_22 [1] : vector<8x32xf32> to vector<8xf32>
    %42 = vector.shape_cast %41 : vector<8xf32> to vector<8x1xf32>
    %cst_23 = arith.constant 3.200000e+01 : f32
    %43 = vector.broadcast %cst_23 : f32 to vector<8x1xf32>
    %44 = arith.divf %42, %43 : vector<8x1xf32>
    %cst_24 = arith.constant 9.99999996E-13 : f32
    %45 = vector.broadcast %cst_24 : f32 to vector<8x1xf32>
    %46 = arith.addf %44, %45 : vector<8x1xf32>
    %47 = math.rsqrt %46 : vector<8x1xf32>
    %48 = vector.broadcast %47 : vector<8x1xf32> to vector<8x32xf32>
    %49 = arith.mulf %39, %48 : vector<8x32xf32>
    %50 = vector.broadcast %31 : vector<1x32xf32> to vector<8x32xf32>
    %51 = arith.mulf %49, %50 : vector<8x32xf32>
    %52 = vector.broadcast %33 : vector<1x32xf32> to vector<8x32xf32>
    %53 = arith.addf %51, %52 : vector<8x32xf32>
    %c0_25 = arith.constant 0 : index
    %c0_26 = arith.constant 0 : index
    %c0_27 = arith.constant 0 : index
    %54 = vector.load %arg8[%c0_25, %c0_26, %c0_27] : memref<2x32x96xbf16, #tpu.memory_space<vmem>>, vector<1x32x96xbf16>
    %55 = vector.shape_cast %54 : vector<1x32x96xbf16> to vector<32x96xbf16>
    %56 = arith.truncf %53 : vector<8x32xf32> to vector<8x32xbf16>
    %cst_28 = arith.constant dense<0.000000e+00> : vector<8x96xf32>
    %57 = tpu.matmul %56, %55, %cst_28 {dimension_numbers = #tpu.dot_dimension_numbers<[1], [0], [0], [1], [0, 0, 1, 1], [], []>} : vector<8x32xbf16>, vector<32x96xbf16>, vector<8x96xf32> -> vector<8x96xf32>
    %c0_29 = arith.constant 0 : index
    %c0_30 = arith.constant 0 : index
    %c0_31 = arith.constant 0 : index
    %58 = vector.load %arg9[%c0_29, %c0_30, %c0_31] : memref<2x1x96xf32, #tpu.memory_space<vmem>>, vector<1x1x96xf32>
    %59 = vector.shape_cast %58 : vector<1x1x96xf32> to vector<1x96xf32>
    %60 = vector.broadcast %59 : vector<1x96xf32> to vector<8x96xf32>
    %61 = arith.addf %57, %60 : vector<8x96xf32>
    %62 = vector.extract_strided_slice %61 {offsets = [0, 0], sizes = [8, 16], strides = [1, 1]} : vector<8x96xf32> to vector<8x16xf32>
    %63 = vector.extract_strided_slice %61 {offsets = [0, 32], sizes = [8, 16], strides = [1, 1]} : vector<8x96xf32> to vector<8x16xf32>
    %64 = vector.extract_strided_slice %61 {offsets = [0, 64], sizes = [8, 16], strides = [1, 1]} : vector<8x96xf32> to vector<8x16xf32>
    %65 = arith.truncf %62 : vector<8x16xf32> to vector<8x16xbf16>
    %66 = arith.truncf %63 : vector<8x16xf32> to vector<8x16xbf16>
    %cst_32 = arith.constant dense<0.000000e+00> : vector<8x8xf32>
    %67 = tpu.matmul %65, %66, %cst_32 {dimension_numbers = #tpu.dot_dimension_numbers<[1], [1], [0], [0], [0, 0, 1, 0], [], []>} : vector<8x16xbf16>, vector<8x16xbf16>, vector<8x8xf32> -> vector<8x8xf32>
    %cst_33 = arith.constant 2.500000e-01 : f32
    %68 = vector.broadcast %cst_33 : f32 to vector<8x8xf32>
    %69 = arith.mulf %67, %68 : vector<8x8xf32>
    %70 = vector.broadcast %29 : vector<1x8xf32> to vector<8x8xf32>
    %71 = arith.addf %69, %70 : vector<8x8xf32>
    %cst_34 = arith.constant dense<0xFF800000> : vector<8xf32>
    %72 = vector.multi_reduction <maximumf>, %71, %cst_34 [1] : vector<8x8xf32> to vector<8xf32>
    %73 = vector.shape_cast %72 : vector<8xf32> to vector<8x1xf32>
    %74 = vector.broadcast %73 : vector<8x1xf32> to vector<8x8xf32>
    %75 = arith.subf %71, %74 : vector<8x8xf32>
    %76 = math.exp %75 : vector<8x8xf32>
    %cst_35 = arith.constant dense<0.000000e+00> : vector<8xf32>
    %77 = vector.multi_reduction <add>, %76, %cst_35 [1] : vector<8x8xf32> to vector<8xf32>
    %78 = vector.shape_cast %77 : vector<8xf32> to vector<8x1xf32>
    %79 = tpu.reciprocal %78 {approx = true} : vector<8x1xf32> -> vector<8x1xf32>
    %80 = vector.broadcast %79 : vector<8x1xf32> to vector<8x8xf32>
    %81 = arith.mulf %76, %80 : vector<8x8xf32>
    %82 = arith.truncf %81 : vector<8x8xf32> to vector<8x8xbf16>
    %83 = arith.truncf %64 : vector<8x16xf32> to vector<8x16xbf16>
    %cst_36 = arith.constant dense<0.000000e+00> : vector<8x16xf32>
    %84 = tpu.matmul %82, %83, %cst_36 {dimension_numbers = #tpu.dot_dimension_numbers<[1], [0], [0], [1], [0, 0, 1, 1], [], []>} : vector<8x8xbf16>, vector<8x16xbf16>, vector<8x16xf32> -> vector<8x16xf32>
    %c0_37 = arith.constant 0 : index
    %c0_38 = arith.constant 0 : index
    %85 = vector.load %arg27[%c0_37, %c0_38] : memref<8x32xf32, #tpu.memory_space<vmem>>, vector<8x16xf32>
    tpu.vector_store %arg27[%c0_37, %c0_38], %84 {strides = array<i32>} : memref<8x32xf32, #tpu.memory_space<vmem>>, vector<8x16xf32>,
    %86 = vector.extract_strided_slice %61 {offsets = [0, 16], sizes = [8, 16], strides = [1, 1]} : vector<8x96xf32> to vector<8x16xf32>
    %87 = vector.extract_strided_slice %61 {offsets = [0, 48], sizes = [8, 16], strides = [1, 1]} : vector<8x96xf32> to vector<8x16xf32>
    %88 = vector.extract_strided_slice %61 {offsets = [0, 80], sizes = [8, 16], strides = [1, 1]} : vector<8x96xf32> to vector<8x16xf32>
    %89 = arith.truncf %86 : vector<8x16xf32> to vector<8x16xbf16>
    %90 = arith.truncf %87 : vector<8x16xf32> to vector<8x16xbf16>
    %cst_39 = arith.constant dense<0.000000e+00> : vector<8x8xf32>
    %91 = tpu.matmul %89, %90, %cst_39 {dimension_numbers = #tpu.dot_dimension_numbers<[1], [1], [0], [0], [0, 0, 1, 0], [], []>} : vector<8x16xbf16>, vector<8x16xbf16>, vector<8x8xf32> -> vector<8x8xf32>
    %cst_40 = arith.constant 2.500000e-01 : f32
    %92 = vector.broadcast %cst_40 : f32 to vector<8x8xf32>
    %93 = arith.mulf %91, %92 : vector<8x8xf32>
    %94 = vector.broadcast %29 : vector<1x8xf32> to vector<8x8xf32>
    %95 = arith.addf %93, %94 : vector<8x8xf32>
    %cst_41 = arith.constant dense<0xFF800000> : vector<8xf32>
    %96 = vector.multi_reduction <maximumf>, %95, %cst_41 [1] : vector<8x8xf32> to vector<8xf32>
    %97 = vector.shape_cast %96 : vector<8xf32> to vector<8x1xf32>
    %98 = vector.broadcast %97 : vector<8x1xf32> to vector<8x8xf32>
    %99 = arith.subf %95, %98 : vector<8x8xf32>
    %100 = math.exp %99 : vector<8x8xf32>
    %cst_42 = arith.constant dense<0.000000e+00> : vector<8xf32>
    %101 = vector.multi_reduction <add>, %100, %cst_42 [1] : vector<8x8xf32> to vector<8xf32>
    %102 = vector.shape_cast %101 : vector<8xf32> to vector<8x1xf32>
    %103 = tpu.reciprocal %102 {approx = true} : vector<8x1xf32> -> vector<8x1xf32>
    %104 = vector.broadcast %103 : vector<8x1xf32> to vector<8x8xf32>
    %105 = arith.mulf %100, %104 : vector<8x8xf32>
    %106 = arith.truncf %105 : vector<8x8xf32> to vector<8x8xbf16>
    %107 = arith.truncf %88 : vector<8x16xf32> to vector<8x16xbf16>
    %cst_43 = arith.constant dense<0.000000e+00> : vector<8x16xf32>
    %108 = tpu.matmul %106, %107, %cst_43 {dimension_numbers = #tpu.dot_dimension_numbers<[1], [0], [0], [1], [0, 0, 1, 1], [], []>} : vector<8x8xbf16>, vector<8x16xbf16>, vector<8x16xf32> -> vector<8x16xf32>
    %c0_44 = arith.constant 0 : index
    %c16 = arith.constant 16 : index
    %109 = vector.load %arg27[%c0_44, %c16] : memref<8x32xf32, #tpu.memory_space<vmem>>, vector<8x16xf32>
    tpu.vector_store %arg27[%c0_44, %c16], %108 {strides = array<i32>} : memref<8x32xf32, #tpu.memory_space<vmem>>, vector<8x16xf32>,
    %c0_45 = arith.constant 0 : index
    %c0_46 = arith.constant 0 : index
    %110 = vector.load %arg27[%c0_45, %c0_46] : memref<8x32xf32, #tpu.memory_space<vmem>>, vector<8x32xf32>
    %c0_47 = arith.constant 0 : index
    %c0_48 = arith.constant 0 : index
    %c0_49 = arith.constant 0 : index
    %111 = vector.load %arg10[%c0_47, %c0_48, %c0_49] : memref<2x32x32xbf16, #tpu.memory_space<vmem>>, vector<1x32x32xbf16>
    %112 = vector.shape_cast %111 : vector<1x32x32xbf16> to vector<32x32xbf16>
    %113 = arith.truncf %110 : vector<8x32xf32> to vector<8x32xbf16>
    %cst_50 = arith.constant dense<0.000000e+00> : vector<8x32xf32>
    %114 = tpu.matmul %113, %112, %cst_50 {dimension_numbers = #tpu.dot_dimension_numbers<[1], [0], [0], [1], [0, 0, 1, 1], [], []>} : vector<8x32xbf16>, vector<32x32xbf16>, vector<8x32xf32> -> vector<8x32xf32>
    %115 = arith.addf %27, %114 : vector<8x32xf32>
    %c0_51 = arith.constant 0 : index
    %c0_52 = arith.constant 0 : index
    %c0_53 = arith.constant 0 : index
    %116 = vector.load %arg11[%c0_51, %c0_52, %c0_53] : memref<2x1x32xf32, #tpu.memory_space<vmem>>, vector<1x1x32xf32>
    %117 = vector.shape_cast %116 : vector<1x1x32xf32> to vector<1x32xf32>
    %118 = vector.broadcast %117 : vector<1x32xf32> to vector<8x32xf32>
    %119 = arith.addf %115, %118 : vector<8x32xf32>
    %c0_54 = arith.constant 0 : index
    %c0_55 = arith.constant 0 : index
    %c0_56 = arith.constant 0 : index
    %120 = vector.load %arg12[%c0_54, %c0_55, %c0_56] : memref<2x1x32xf32, #tpu.memory_space<vmem>>, vector<1x1x32xf32>
    %121 = vector.shape_cast %120 : vector<1x1x32xf32> to vector<1x32xf32>
    %c0_57 = arith.constant 0 : index
    %c0_58 = arith.constant 0 : index
    %c0_59 = arith.constant 0 : index
    %122 = vector.load %arg13[%c0_57, %c0_58, %c0_59] : memref<2x1x32xf32, #tpu.memory_space<vmem>>, vector<1x1x32xf32>
    %123 = vector.shape_cast %122 : vector<1x1x32xf32> to vector<1x32xf32>
    %cst_60 = arith.constant dense<0.000000e+00> : vector<8xf32>
    %124 = vector.multi_reduction <add>, %119, %cst_60 [1] : vector<8x32xf32> to vector<8xf32>
    %125 = vector.shape_cast %124 : vector<8xf32> to vector<8x1xf32>
    %cst_61 = arith.constant 3.200000e+01 : f32
    %126 = vector.broadcast %cst_61 : f32 to vector<8x1xf32>
    %127 = arith.divf %125, %126 : vector<8x1xf32>
    %128 = vector.broadcast %127 : vector<8x1xf32> to vector<8x32xf32>
    %129 = arith.subf %119, %128 : vector<8x32xf32>
    %130 = arith.mulf %129, %129 : vector<8x32xf32>
    %cst_62 = arith.constant dense<0.000000e+00> : vector<8xf32>
    %131 = vector.multi_reduction <add>, %130, %cst_62 [1] : vector<8x32xf32> to vector<8xf32>
    %132 = vector.shape_cast %131 : vector<8xf32> to vector<8x1xf32>
    %cst_63 = arith.constant 3.200000e+01 : f32
    %133 = vector.broadcast %cst_63 : f32 to vector<8x1xf32>
    %134 = arith.divf %132, %133 : vector<8x1xf32>
    %cst_64 = arith.constant 9.99999996E-13 : f32
    %135 = vector.broadcast %cst_64 : f32 to vector<8x1xf32>
    %136 = arith.addf %134, %135 : vector<8x1xf32>
    %137 = math.rsqrt %136 : vector<8x1xf32>
    %138 = vector.broadcast %137 : vector<8x1xf32> to vector<8x32xf32>
    %139 = arith.mulf %129, %138 : vector<8x32xf32>
    %140 = vector.broadcast %121 : vector<1x32xf32> to vector<8x32xf32>
    %141 = arith.mulf %139, %140 : vector<8x32xf32>
    %142 = vector.broadcast %123 : vector<1x32xf32> to vector<8x32xf32>
    %143 = arith.addf %141, %142 : vector<8x32xf32>
    %c0_65 = arith.constant 0 : index
    %c0_66 = arith.constant 0 : index
    %c0_67 = arith.constant 0 : index
    %144 = vector.load %arg14[%c0_65, %c0_66, %c0_67] : memref<2x32x64xbf16, #tpu.memory_space<vmem>>, vector<1x32x64xbf16>
    %145 = vector.shape_cast %144 : vector<1x32x64xbf16> to vector<32x64xbf16>
    %146 = arith.truncf %143 : vector<8x32xf32> to vector<8x32xbf16>
    %cst_68 = arith.constant dense<0.000000e+00> : vector<8x64xf32>
    %147 = tpu.matmul %146, %145, %cst_68 {dimension_numbers = #tpu.dot_dimension_numbers<[1], [0], [0], [1], [0, 0, 1, 1], [], []>} : vector<8x32xbf16>, vector<32x64xbf16>, vector<8x64xf32> -> vector<8x64xf32>
    %c0_69 = arith.constant 0 : index
    %c0_70 = arith.constant 0 : index
    %c0_71 = arith.constant 0 : index
    %148 = vector.load %arg15[%c0_69, %c0_70, %c0_71] : memref<2x1x64xf32, #tpu.memory_space<vmem>>, vector<1x1x64xf32>
    %149 = vector.shape_cast %148 : vector<1x1x64xf32> to vector<1x64xf32>
    %150 = vector.broadcast %149 : vector<1x64xf32> to vector<8x64xf32>
    %151 = arith.addf %147, %150 : vector<8x64xf32>
    %cst_72 = arith.constant 5.000000e-01 : f32
    %152 = vector.broadcast %cst_72 : f32 to vector<8x64xf32>
    %153 = arith.mulf %152, %151 : vector<8x64xf32>
    %cst_73 = arith.constant 0.707106769 : f32
    %154 = vector.broadcast %cst_73 : f32 to vector<8x64xf32>
    %155 = arith.mulf %151, %154 : vector<8x64xf32>
    %156 = math.erf %155 : vector<8x64xf32>
    %cst_74 = arith.constant 1.000000e+00 : f32
    %157 = vector.broadcast %cst_74 : f32 to vector<8x64xf32>
    %158 = arith.addf %157, %156 : vector<8x64xf32>
    %159 = arith.mulf %153, %158 : vector<8x64xf32>
    %c0_75 = arith.constant 0 : index
    %c0_76 = arith.constant 0 : index
    %c0_77 = arith.constant 0 : index
    %160 = vector.load %arg16[%c0_75, %c0_76, %c0_77] : memref<2x64x32xbf16, #tpu.memory_space<vmem>>, vector<1x64x32xbf16>
    %161 = vector.shape_cast %160 : vector<1x64x32xbf16> to vector<64x32xbf16>
    %162 = arith.truncf %159 : vector<8x64xf32> to vector<8x64xbf16>
    %cst_78 = arith.constant dense<0.000000e+00> : vector<8x32xf32>
    %163 = tpu.matmul %162, %161, %cst_78 {dimension_numbers = #tpu.dot_dimension_numbers<[1], [0], [0], [1], [0, 0, 1, 1], [], []>} : vector<8x64xbf16>, vector<64x32xbf16>, vector<8x32xf32> -> vector<8x32xf32>
    %164 = arith.addf %119, %163 : vector<8x32xf32>
    %c0_79 = arith.constant 0 : index
    %c0_80 = arith.constant 0 : index
    %c0_81 = arith.constant 0 : index
    %165 = vector.load %arg17[%c0_79, %c0_80, %c0_81] : memref<2x1x32xf32, #tpu.memory_space<vmem>>, vector<1x1x32xf32>
    %166 = vector.shape_cast %165 : vector<1x1x32xf32> to vector<1x32xf32>
    %167 = vector.broadcast %166 : vector<1x32xf32> to vector<8x32xf32>
    %168 = arith.addf %164, %167 : vector<8x32xf32>
    %c1 = arith.constant 1 : index
    %c0_82 = arith.constant 0 : index
    %c0_83 = arith.constant 0 : index
    %169 = vector.load %arg6[%c1, %c0_82, %c0_83] : memref<2x1x32xf32, #tpu.memory_space<vmem>>, vector<1x1x32xf32>
    %170 = vector.shape_cast %169 : vector<1x1x32xf32> to vector<1x32xf32>
    %c1_84 = arith.constant 1 : index
    %c0_85 = arith.constant 0 : index
    %c0_86 = arith.constant 0 : index
    %171 = vector.load %arg7[%c1_84, %c0_85, %c0_86] : memref<2x1x32xf32, #tpu.memory_space<vmem>>, vector<1x1x32xf32>
    %172 = vector.shape_cast %171 : vector<1x1x32xf32> to vector<1x32xf32>
    %cst_87 = arith.constant dense<0.000000e+00> : vector<8xf32>
    %173 = vector.multi_reduction <add>, %168, %cst_87 [1] : vector<8x32xf32> to vector<8xf32>
    %174 = vector.shape_cast %173 : vector<8xf32> to vector<8x1xf32>
    %cst_88 = arith.constant 3.200000e+01 : f32
    %175 = vector.broadcast %cst_88 : f32 to vector<8x1xf32>
    %176 = arith.divf %174, %175 : vector<8x1xf32>
    %177 = vector.broadcast %176 : vector<8x1xf32> to vector<8x32xf32>
    %178 = arith.subf %168, %177 : vector<8x32xf32>
    %179 = arith.mulf %178, %178 : vector<8x32xf32>
    %cst_89 = arith.constant dense<0.000000e+00> : vector<8xf32>
    %180 = vector.multi_reduction <add>, %179, %cst_89 [1] : vector<8x32xf32> to vector<8xf32>
    %181 = vector.shape_cast %180 : vector<8xf32> to vector<8x1xf32>
    %cst_90 = arith.constant 3.200000e+01 : f32
    %182 = vector.broadcast %cst_90 : f32 to vector<8x1xf32>
    %183 = arith.divf %181, %182 : vector<8x1xf32>
    %cst_91 = arith.constant 9.99999996E-13 : f32
    %184 = vector.broadcast %cst_91 : f32 to vector<8x1xf32>
    %185 = arith.addf %183, %184 : vector<8x1xf32>
    %186 = math.rsqrt %185 : vector<8x1xf32>
    %187 = vector.broadcast %186 : vector<8x1xf32> to vector<8x32xf32>
    %188 = arith.mulf %178, %187 : vector<8x32xf32>
    %189 = vector.broadcast %170 : vector<1x32xf32> to vector<8x32xf32>
    %190 = arith.mulf %188, %189 : vector<8x32xf32>
    %191 = vector.broadcast %172 : vector<1x32xf32> to vector<8x32xf32>
    %192 = arith.addf %190, %191 : vector<8x32xf32>
    %c1_92 = arith.constant 1 : index
    %c0_93 = arith.constant 0 : index
    %c0_94 = arith.constant 0 : index
    %193 = vector.load %arg8[%c1_92, %c0_93, %c0_94] : memref<2x32x96xbf16, #tpu.memory_space<vmem>>, vector<1x32x96xbf16>
    %194 = vector.shape_cast %193 : vector<1x32x96xbf16> to vector<32x96xbf16>
    %195 = arith.truncf %192 : vector<8x32xf32> to vector<8x32xbf16>
    %cst_95 = arith.constant dense<0.000000e+00> : vector<8x96xf32>
    %196 = tpu.matmul %195, %194, %cst_95 {dimension_numbers = #tpu.dot_dimension_numbers<[1], [0], [0], [1], [0, 0, 1, 1], [], []>} : vector<8x32xbf16>, vector<32x96xbf16>, vector<8x96xf32> -> vector<8x96xf32>
    %c1_96 = arith.constant 1 : index
    %c0_97 = arith.constant 0 : index
    %c0_98 = arith.constant 0 : index
    %197 = vector.load %arg9[%c1_96, %c0_97, %c0_98] : memref<2x1x96xf32, #tpu.memory_space<vmem>>, vector<1x1x96xf32>
    %198 = vector.shape_cast %197 : vector<1x1x96xf32> to vector<1x96xf32>
    %199 = vector.broadcast %198 : vector<1x96xf32> to vector<8x96xf32>
    %200 = arith.addf %196, %199 : vector<8x96xf32>
    %201 = vector.extract_strided_slice %200 {offsets = [0, 0], sizes = [8, 16], strides = [1, 1]} : vector<8x96xf32> to vector<8x16xf32>
    %202 = vector.extract_strided_slice %200 {offsets = [0, 32], sizes = [8, 16], strides = [1, 1]} : vector<8x96xf32> to vector<8x16xf32>
    %203 = vector.extract_strided_slice %200 {offsets = [0, 64], sizes = [8, 16], strides = [1, 1]} : vector<8x96xf32> to vector<8x16xf32>
    %204 = arith.truncf %201 : vector<8x16xf32> to vector<8x16xbf16>
    %205 = arith.truncf %202 : vector<8x16xf32> to vector<8x16xbf16>
    %cst_99 = arith.constant dense<0.000000e+00> : vector<8x8xf32>
    %206 = tpu.matmul %204, %205, %cst_99 {dimension_numbers = #tpu.dot_dimension_numbers<[1], [1], [0], [0], [0, 0, 1, 0], [], []>} : vector<8x16xbf16>, vector<8x16xbf16>, vector<8x8xf32> -> vector<8x8xf32>
    %cst_100 = arith.constant 2.500000e-01 : f32
    %207 = vector.broadcast %cst_100 : f32 to vector<8x8xf32>
    %208 = arith.mulf %206, %207 : vector<8x8xf32>
    %209 = vector.broadcast %29 : vector<1x8xf32> to vector<8x8xf32>
    %210 = arith.addf %208, %209 : vector<8x8xf32>
    %cst_101 = arith.constant dense<0xFF800000> : vector<8xf32>
    %211 = vector.multi_reduction <maximumf>, %210, %cst_101 [1] : vector<8x8xf32> to vector<8xf32>
    %212 = vector.shape_cast %211 : vector<8xf32> to vector<8x1xf32>
    %213 = vector.broadcast %212 : vector<8x1xf32> to vector<8x8xf32>
    %214 = arith.subf %210, %213 : vector<8x8xf32>
    %215 = math.exp %214 : vector<8x8xf32>
    %cst_102 = arith.constant dense<0.000000e+00> : vector<8xf32>
    %216 = vector.multi_reduction <add>, %215, %cst_102 [1] : vector<8x8xf32> to vector<8xf32>
    %217 = vector.shape_cast %216 : vector<8xf32> to vector<8x1xf32>
    %218 = tpu.reciprocal %217 {approx = true} : vector<8x1xf32> -> vector<8x1xf32>
    %219 = vector.broadcast %218 : vector<8x1xf32> to vector<8x8xf32>
    %220 = arith.mulf %215, %219 : vector<8x8xf32>
    %221 = arith.truncf %220 : vector<8x8xf32> to vector<8x8xbf16>
    %222 = arith.truncf %203 : vector<8x16xf32> to vector<8x16xbf16>
    %cst_103 = arith.constant dense<0.000000e+00> : vector<8x16xf32>
    %223 = tpu.matmul %221, %222, %cst_103 {dimension_numbers = #tpu.dot_dimension_numbers<[1], [0], [0], [1], [0, 0, 1, 1], [], []>} : vector<8x8xbf16>, vector<8x16xbf16>, vector<8x16xf32> -> vector<8x16xf32>
    %c0_104 = arith.constant 0 : index
    %c0_105 = arith.constant 0 : index
    %224 = vector.load %arg27[%c0_104, %c0_105] : memref<8x32xf32, #tpu.memory_space<vmem>>, vector<8x16xf32>
    tpu.vector_store %arg27[%c0_104, %c0_105], %223 {strides = array<i32>} : memref<8x32xf32, #tpu.memory_space<vmem>>, vector<8x16xf32>,
    %225 = vector.extract_strided_slice %200 {offsets = [0, 16], sizes = [8, 16], strides = [1, 1]} : vector<8x96xf32> to vector<8x16xf32>
    %226 = vector.extract_strided_slice %200 {offsets = [0, 48], sizes = [8, 16], strides = [1, 1]} : vector<8x96xf32> to vector<8x16xf32>
    %227 = vector.extract_strided_slice %200 {offsets = [0, 80], sizes = [8, 16], strides = [1, 1]} : vector<8x96xf32> to vector<8x16xf32>
    %228 = arith.truncf %225 : vector<8x16xf32> to vector<8x16xbf16>
    %229 = arith.truncf %226 : vector<8x16xf32> to vector<8x16xbf16>
    %cst_106 = arith.constant dense<0.000000e+00> : vector<8x8xf32>
    %230 = tpu.matmul %228, %229, %cst_106 {dimension_numbers = #tpu.dot_dimension_numbers<[1], [1], [0], [0], [0, 0, 1, 0], [], []>} : vector<8x16xbf16>, vector<8x16xbf16>, vector<8x8xf32> -> vector<8x8xf32>
    %cst_107 = arith.constant 2.500000e-01 : f32
    %231 = vector.broadcast %cst_107 : f32 to vector<8x8xf32>
    %232 = arith.mulf %230, %231 : vector<8x8xf32>
    %233 = vector.broadcast %29 : vector<1x8xf32> to vector<8x8xf32>
    %234 = arith.addf %232, %233 : vector<8x8xf32>
    %cst_108 = arith.constant dense<0xFF800000> : vector<8xf32>
    %235 = vector.multi_reduction <maximumf>, %234, %cst_108 [1] : vector<8x8xf32> to vector<8xf32>
    %236 = vector.shape_cast %235 : vector<8xf32> to vector<8x1xf32>
    %237 = vector.broadcast %236 : vector<8x1xf32> to vector<8x8xf32>
    %238 = arith.subf %234, %237 : vector<8x8xf32>
    %239 = math.exp %238 : vector<8x8xf32>
    %cst_109 = arith.constant dense<0.000000e+00> : vector<8xf32>
    %240 = vector.multi_reduction <add>, %239, %cst_109 [1] : vector<8x8xf32> to vector<8xf32>
    %241 = vector.shape_cast %240 : vector<8xf32> to vector<8x1xf32>
    %242 = tpu.reciprocal %241 {approx = true} : vector<8x1xf32> -> vector<8x1xf32>
    %243 = vector.broadcast %242 : vector<8x1xf32> to vector<8x8xf32>
    %244 = arith.mulf %239, %243 : vector<8x8xf32>
    %245 = arith.truncf %244 : vector<8x8xf32> to vector<8x8xbf16>
    %246 = arith.truncf %227 : vector<8x16xf32> to vector<8x16xbf16>
    %cst_110 = arith.constant dense<0.000000e+00> : vector<8x16xf32>
    %247 = tpu.matmul %245, %246, %cst_110 {dimension_numbers = #tpu.dot_dimension_numbers<[1], [0], [0], [1], [0, 0, 1, 1], [], []>} : vector<8x8xbf16>, vector<8x16xbf16>, vector<8x16xf32> -> vector<8x16xf32>
    %c0_111 = arith.constant 0 : index
    %c16_112 = arith.constant 16 : index
    %248 = vector.load %arg27[%c0_111, %c16_112] : memref<8x32xf32, #tpu.memory_space<vmem>>, vector<8x16xf32>
    tpu.vector_store %arg27[%c0_111, %c16_112], %247 {strides = array<i32>} : memref<8x32xf32, #tpu.memory_space<vmem>>, vector<8x16xf32>,
    %c0_113 = arith.constant 0 : index
    %c0_114 = arith.constant 0 : index
    %249 = vector.load %arg27[%c0_113, %c0_114] : memref<8x32xf32, #tpu.memory_space<vmem>>, vector<8x32xf32>
    %c1_115 = arith.constant 1 : index
    %c0_116 = arith.constant 0 : index
    %c0_117 = arith.constant 0 : index
    %250 = vector.load %arg10[%c1_115, %c0_116, %c0_117] : memref<2x32x32xbf16, #tpu.memory_space<vmem>>, vector<1x32x32xbf16>
    %251 = vector.shape_cast %250 : vector<1x32x32xbf16> to vector<32x32xbf16>
    %252 = arith.truncf %249 : vector<8x32xf32> to vector<8x32xbf16>
    %cst_118 = arith.constant dense<0.000000e+00> : vector<8x32xf32>
    %253 = tpu.matmul %252, %251, %cst_118 {dimension_numbers = #tpu.dot_dimension_numbers<[1], [0], [0], [1], [0, 0, 1, 1], [], []>} : vector<8x32xbf16>, vector<32x32xbf16>, vector<8x32xf32> -> vector<8x32xf32>
    %254 = arith.addf %168, %253 : vector<8x32xf32>
    %c1_119 = arith.constant 1 : index
    %c0_120 = arith.constant 0 : index
    %c0_121 = arith.constant 0 : index
    %255 = vector.load %arg11[%c1_119, %c0_120, %c0_121] : memref<2x1x32xf32, #tpu.memory_space<vmem>>, vector<1x1x32xf32>
    %256 = vector.shape_cast %255 : vector<1x1x32xf32> to vector<1x32xf32>
    %257 = vector.broadcast %256 : vector<1x32xf32> to vector<8x32xf32>
    %258 = arith.addf %254, %257 : vector<8x32xf32>
    %c1_122 = arith.constant 1 : index
    %c0_123 = arith.constant 0 : index
    %c0_124 = arith.constant 0 : index
    %259 = vector.load %arg12[%c1_122, %c0_123, %c0_124] : memref<2x1x32xf32, #tpu.memory_space<vmem>>, vector<1x1x32xf32>
    %260 = vector.shape_cast %259 : vector<1x1x32xf32> to vector<1x32xf32>
    %c1_125 = arith.constant 1 : index
    %c0_126 = arith.constant 0 : index
    %c0_127 = arith.constant 0 : index
    %261 = vector.load %arg13[%c1_125, %c0_126, %c0_127] : memref<2x1x32xf32, #tpu.memory_space<vmem>>, vector<1x1x32xf32>
    %262 = vector.shape_cast %261 : vector<1x1x32xf32> to vector<1x32xf32>
    %cst_128 = arith.constant dense<0.000000e+00> : vector<8xf32>
    %263 = vector.multi_reduction <add>, %258, %cst_128 [1] : vector<8x32xf32> to vector<8xf32>
    %264 = vector.shape_cast %263 : vector<8xf32> to vector<8x1xf32>
    %cst_129 = arith.constant 3.200000e+01 : f32
    %265 = vector.broadcast %cst_129 : f32 to vector<8x1xf32>
    %266 = arith.divf %264, %265 : vector<8x1xf32>
    %267 = vector.broadcast %266 : vector<8x1xf32> to vector<8x32xf32>
    %268 = arith.subf %258, %267 : vector<8x32xf32>
    %269 = arith.mulf %268, %268 : vector<8x32xf32>
    %cst_130 = arith.constant dense<0.000000e+00> : vector<8xf32>
    %270 = vector.multi_reduction <add>, %269, %cst_130 [1] : vector<8x32xf32> to vector<8xf32>
    %271 = vector.shape_cast %270 : vector<8xf32> to vector<8x1xf32>
    %cst_131 = arith.constant 3.200000e+01 : f32
    %272 = vector.broadcast %cst_131 : f32 to vector<8x1xf32>
    %273 = arith.divf %271, %272 : vector<8x1xf32>
    %cst_132 = arith.constant 9.99999996E-13 : f32
    %274 = vector.broadcast %cst_132 : f32 to vector<8x1xf32>
    %275 = arith.addf %273, %274 : vector<8x1xf32>
    %276 = math.rsqrt %275 : vector<8x1xf32>
    %277 = vector.broadcast %276 : vector<8x1xf32> to vector<8x32xf32>
    %278 = arith.mulf %268, %277 : vector<8x32xf32>
    %279 = vector.broadcast %260 : vector<1x32xf32> to vector<8x32xf32>
    %280 = arith.mulf %278, %279 : vector<8x32xf32>
    %281 = vector.broadcast %262 : vector<1x32xf32> to vector<8x32xf32>
    %282 = arith.addf %280, %281 : vector<8x32xf32>
    %c1_133 = arith.constant 1 : index
    %c0_134 = arith.constant 0 : index
    %c0_135 = arith.constant 0 : index
    %283 = vector.load %arg14[%c1_133, %c0_134, %c0_135] : memref<2x32x64xbf16, #tpu.memory_space<vmem>>, vector<1x32x64xbf16>
    %284 = vector.shape_cast %283 : vector<1x32x64xbf16> to vector<32x64xbf16>
    %285 = arith.truncf %282 : vector<8x32xf32> to vector<8x32xbf16>
    %cst_136 = arith.constant dense<0.000000e+00> : vector<8x64xf32>
    %286 = tpu.matmul %285, %284, %cst_136 {dimension_numbers = #tpu.dot_dimension_numbers<[1], [0], [0], [1], [0, 0, 1, 1], [], []>} : vector<8x32xbf16>, vector<32x64xbf16>, vector<8x64xf32> -> vector<8x64xf32>
    %c1_137 = arith.constant 1 : index
    %c0_138 = arith.constant 0 : index
    %c0_139 = arith.constant 0 : index
    %287 = vector.load %arg15[%c1_137, %c0_138, %c0_139] : memref<2x1x64xf32, #tpu.memory_space<vmem>>, vector<1x1x64xf32>
    %288 = vector.shape_cast %287 : vector<1x1x64xf32> to vector<1x64xf32>
    %289 = vector.broadcast %288 : vector<1x64xf32> to vector<8x64xf32>
    %290 = arith.addf %286, %289 : vector<8x64xf32>
    %cst_140 = arith.constant 5.000000e-01 : f32
    %291 = vector.broadcast %cst_140 : f32 to vector<8x64xf32>
    %292 = arith.mulf %291, %290 : vector<8x64xf32>
    %cst_141 = arith.constant 0.707106769 : f32
    %293 = vector.broadcast %cst_141 : f32 to vector<8x64xf32>
    %294 = arith.mulf %290, %293 : vector<8x64xf32>
    %295 = math.erf %294 : vector<8x64xf32>
    %cst_142 = arith.constant 1.000000e+00 : f32
    %296 = vector.broadcast %cst_142 : f32 to vector<8x64xf32>
    %297 = arith.addf %296, %295 : vector<8x64xf32>
    %298 = arith.mulf %292, %297 : vector<8x64xf32>
    %c1_143 = arith.constant 1 : index
    %c0_144 = arith.constant 0 : index
    %c0_145 = arith.constant 0 : index
    %299 = vector.load %arg16[%c1_143, %c0_144, %c0_145] : memref<2x64x32xbf16, #tpu.memory_space<vmem>>, vector<1x64x32xbf16>
    %300 = vector.shape_cast %299 : vector<1x64x32xbf16> to vector<64x32xbf16>
    %301 = arith.truncf %298 : vector<8x64xf32> to vector<8x64xbf16>
    %cst_146 = arith.constant dense<0.000000e+00> : vector<8x32xf32>
    %302 = tpu.matmul %301, %300, %cst_146 {dimension_numbers = #tpu.dot_dimension_numbers<[1], [0], [0], [1], [0, 0, 1, 1], [], []>} : vector<8x64xbf16>, vector<64x32xbf16>, vector<8x32xf32> -> vector<8x32xf32>
    %303 = arith.addf %258, %302 : vector<8x32xf32>
    %c1_147 = arith.constant 1 : index
    %c0_148 = arith.constant 0 : index
    %c0_149 = arith.constant 0 : index
    %304 = vector.load %arg17[%c1_147, %c0_148, %c0_149] : memref<2x1x32xf32, #tpu.memory_space<vmem>>, vector<1x1x32xf32>
    %305 = vector.shape_cast %304 : vector<1x1x32xf32> to vector<1x32xf32>
    %306 = vector.broadcast %305 : vector<1x32xf32> to vector<8x32xf32>
    %307 = arith.addf %303, %306 : vector<8x32xf32>
    %c0_150 = arith.constant 0 : index
    %c0_151 = arith.constant 0 : index
    %308 = vector.load %arg18[%c0_150, %c0_151] : memref<1x32xf32, #tpu.memory_space<vmem>>, vector<1x32xf32>
    %c0_152 = arith.constant 0 : index
    %c0_153 = arith.constant 0 : index
    %309 = vector.load %arg19[%c0_152, %c0_153] : memref<1x32xf32, #tpu.memory_space<vmem>>, vector<1x32xf32>
    %cst_154 = arith.constant dense<0.000000e+00> : vector<8xf32>
    %310 = vector.multi_reduction <add>, %307, %cst_154 [1] : vector<8x32xf32> to vector<8xf32>
    %311 = vector.shape_cast %310 : vector<8xf32> to vector<8x1xf32>
    %cst_155 = arith.constant 3.200000e+01 : f32
    %312 = vector.broadcast %cst_155 : f32 to vector<8x1xf32>
    %313 = arith.divf %311, %312 : vector<8x1xf32>
    %314 = vector.broadcast %313 : vector<8x1xf32> to vector<8x32xf32>
    %315 = arith.subf %307, %314 : vector<8x32xf32>
    %316 = arith.mulf %315, %315 : vector<8x32xf32>
    %cst_156 = arith.constant dense<0.000000e+00> : vector<8xf32>
    %317 = vector.multi_reduction <add>, %316, %cst_156 [1] : vector<8x32xf32> to vector<8xf32>
    %318 = vector.shape_cast %317 : vector<8xf32> to vector<8x1xf32>
    %cst_157 = arith.constant 3.200000e+01 : f32
    %319 = vector.broadcast %cst_157 : f32 to vector<8x1xf32>
    %320 = arith.divf %318, %319 : vector<8x1xf32>
    %cst_158 = arith.constant 9.99999996E-13 : f32
    %321 = vector.broadcast %cst_158 : f32 to vector<8x1xf32>
    %322 = arith.addf %320, %321 : vector<8x1xf32>
    %323 = math.rsqrt %322 : vector<8x1xf32>
    %324 = vector.broadcast %323 : vector<8x1xf32> to vector<8x32xf32>
    %325 = arith.mulf %315, %324 : vector<8x32xf32>
    %326 = vector.broadcast %308 : vector<1x32xf32> to vector<8x32xf32>
    %327 = arith.mulf %325, %326 : vector<8x32xf32>
    %328 = vector.broadcast %309 : vector<1x32xf32> to vector<8x32xf32>
    %329 = arith.addf %327, %328 : vector<8x32xf32>
    %c0_159 = arith.constant 0 : index
    %c0_160 = arith.constant 0 : index
    %330 = vector.load %arg20[%c0_159, %c0_160] : memref<32x32xbf16, #tpu.memory_space<vmem>>, vector<32x32xbf16>
    %331 = arith.truncf %329 : vector<8x32xf32> to vector<8x32xbf16>
    %cst_161 = arith.constant dense<0.000000e+00> : vector<8x32xf32>
    %332 = tpu.matmul %331, %330, %cst_161 {dimension_numbers = #tpu.dot_dimension_numbers<[1], [0], [0], [1], [0, 0, 1, 1], [], []>} : vector<8x32xbf16>, vector<32x32xbf16>, vector<8x32xf32> -> vector<8x32xf32>
    %c0_162 = arith.constant 0 : index
    %c0_163 = arith.constant 0 : index
    %333 = vector.load %arg21[%c0_162, %c0_163] : memref<1x32xf32, #tpu.memory_space<vmem>>, vector<1x32xf32>
    %334 = vector.broadcast %333 : vector<1x32xf32> to vector<8x32xf32>
    %335 = arith.addf %332, %334 : vector<8x32xf32>
    %cst_164 = arith.constant 5.000000e-01 : f32
    %336 = vector.broadcast %cst_164 : f32 to vector<8x32xf32>
    %337 = arith.mulf %336, %335 : vector<8x32xf32>
    %cst_165 = arith.constant 0.707106769 : f32
    %338 = vector.broadcast %cst_165 : f32 to vector<8x32xf32>
    %339 = arith.mulf %335, %338 : vector<8x32xf32>
    %340 = math.erf %339 : vector<8x32xf32>
    %cst_166 = arith.constant 1.000000e+00 : f32
    %341 = vector.broadcast %cst_166 : f32 to vector<8x32xf32>
    %342 = arith.addf %341, %340 : vector<8x32xf32>
    %343 = arith.mulf %337, %342 : vector<8x32xf32>
    %c0_167 = arith.constant 0 : index
    %c0_168 = arith.constant 0 : index
    %344 = vector.load %arg22[%c0_167, %c0_168] : memref<1x32xf32, #tpu.memory_space<vmem>>, vector<1x32xf32>
    %c0_169 = arith.constant 0 : index
    %c0_170 = arith.constant 0 : index
    %345 = vector.load %arg23[%c0_169, %c0_170] : memref<1x32xf32, #tpu.memory_space<vmem>>, vector<1x32xf32>
    %cst_171 = arith.constant dense<0.000000e+00> : vector<8xf32>
    %346 = vector.multi_reduction <add>, %343, %cst_171 [1] : vector<8x32xf32> to vector<8xf32>
    %347 = vector.shape_cast %346 : vector<8xf32> to vector<8x1xf32>
    %cst_172 = arith.constant 3.200000e+01 : f32
    %348 = vector.broadcast %cst_172 : f32 to vector<8x1xf32>
    %349 = arith.divf %347, %348 : vector<8x1xf32>
    %350 = vector.broadcast %349 : vector<8x1xf32> to vector<8x32xf32>
    %351 = arith.subf %343, %350 : vector<8x32xf32>
    %352 = arith.mulf %351, %351 : vector<8x32xf32>
    %cst_173 = arith.constant dense<0.000000e+00> : vector<8xf32>
    %353 = vector.multi_reduction <add>, %352, %cst_173 [1] : vector<8x32xf32> to vector<8xf32>
    %354 = vector.shape_cast %353 : vector<8xf32> to vector<8x1xf32>
    %cst_174 = arith.constant 3.200000e+01 : f32
    %355 = vector.broadcast %cst_174 : f32 to vector<8x1xf32>
    %356 = arith.divf %354, %355 : vector<8x1xf32>
    %cst_175 = arith.constant 9.99999996E-13 : f32
    %357 = vector.broadcast %cst_175 : f32 to vector<8x1xf32>
    %358 = arith.addf %356, %357 : vector<8x1xf32>
    %359 = math.rsqrt %358 : vector<8x1xf32>
    %360 = vector.broadcast %359 : vector<8x1xf32> to vector<8x32xf32>
    %361 = arith.mulf %351, %360 : vector<8x32xf32>
    %362 = vector.broadcast %344 : vector<1x32xf32> to vector<8x32xf32>
    %363 = arith.mulf %361, %362 : vector<8x32xf32>
    %364 = vector.broadcast %345 : vector<1x32xf32> to vector<8x32xf32>
    %365 = arith.addf %363, %364 : vector<8x32xf32>
    %c0_176 = arith.constant 0 : index
    %c0_177 = arith.constant 0 : index
    %366 = vector.load %arg24[%c0_176, %c0_177] : memref<128x32xbf16, #tpu.memory_space<vmem>>, vector<128x32xbf16>
    %367 = arith.truncf %365 : vector<8x32xf32> to vector<8x32xbf16>
    %cst_178 = arith.constant dense<0.000000e+00> : vector<8x128xf32>
    %368 = tpu.matmul %367, %366, %cst_178 {dimension_numbers = #tpu.dot_dimension_numbers<[1], [1], [0], [0], [0, 0, 1, 0], [], []>} : vector<8x32xbf16>, vector<128x32xbf16>, vector<8x128xf32> -> vector<8x128xf32>
    %c0_179 = arith.constant 0 : index
    %c0_180 = arith.constant 0 : index
    %369 = vector.load %arg25[%c0_179, %c0_180] : memref<1x128xf32, #tpu.memory_space<vmem>>, vector<1x128xf32>
    %370 = vector.broadcast %369 : vector<1x128xf32> to vector<8x128xf32>
    %371 = arith.addf %368, %370 : vector<8x128xf32>
    %c0_181 = arith.constant 0 : index
    %c0_182 = arith.constant 0 : index
    %c0_183 = arith.constant 0 : index
    %372 = vector.load %arg3[%c0_181, %c0_182, %c0_183] : memref<1x8x1xi32, #tpu.memory_space<vmem>>, vector<1x8x1xi32>
    %373 = vector.shape_cast %372 : vector<1x8x1xi32> to vector<8x1xi32>
    %cst_184 = arith.constant dense<0xFF800000> : vector<8xf32>
    %374 = vector.multi_reduction <maximumf>, %371, %cst_184 [1] : vector<8x128xf32> to vector<8xf32>
    %375 = vector.shape_cast %374 : vector<8xf32> to vector<8x1xf32>
    %376 = vector.broadcast %375 : vector<8x1xf32> to vector<8x128xf32>
    %377 = arith.subf %371, %376 : vector<8x128xf32>
    %378 = math.exp %377 : vector<8x128xf32>
    %cst_185 = arith.constant dense<0.000000e+00> : vector<8xf32>
    %379 = vector.multi_reduction <add>, %378, %cst_185 [1] : vector<8x128xf32> to vector<8xf32>
    %380 = vector.shape_cast %379 : vector<8xf32> to vector<8x1xf32>
    %381 = math.log %380 : vector<8x1xf32>
    %382 = arith.addf %375, %381 : vector<8x1xf32>
    %383 = tpu.iota {dimensions = array<i32: 1>} : vector<8x128xi32>
    %384 = vector.broadcast %373 : vector<8x1xi32> to vector<8x128xi32>
    %385 = arith.cmpi eq, %383, %384 : vector<8x128xi32>
    %cst_186 = arith.constant 0.000000e+00 : f32
    %386 = vector.broadcast %cst_186 : f32 to vector<8x128xf32>
    %387 = arith.select %385, %371, %386 : vector<8x128xi1>, vector<8x128xf32>
    %cst_187 = arith.constant dense<0.000000e+00> : vector<8xf32>
    %388 = vector.multi_reduction <add>, %387, %cst_187 [1] : vector<8x128xf32> to vector<8xf32>
    %389 = vector.shape_cast %388 : vector<8xf32> to vector<8x1xf32>
    %c-100_i32 = arith.constant -100 : i32
    %390 = vector.broadcast %c-100_i32 : i32 to vector<8x1xi32>
    %391 = arith.cmpi ne, %373, %390 : vector<8x1xi32>
    %392 = arith.extui %391 : vector<8x1xi1> to vector<8x1xi32>
    %393 = arith.sitofp %392 : vector<8x1xi32> to vector<8x1xf32>
    %394 = arith.subf %382, %389 : vector<8x1xf32>
    %395 = arith.mulf %394, %393 : vector<8x1xf32>
    %c0_188 = arith.constant 0 : index
    %c0_189 = arith.constant 0 : index
    %396 = vector.load %arg28[%c0_188, %c0_189] : memref<1x1xf32, #tpu.memory_space<vmem>>, vector<1x1xf32>
    %cst_190 = arith.constant dense<0.000000e+00> : vector<1xf32>
    %397 = vector.multi_reduction <add>, %395, %cst_190 [0] : vector<8x1xf32> to vector<1xf32>
    %398 = vector.shape_cast %397 : vector<1xf32> to vector<1x1xf32>
    %399 = arith.addf %396, %398 : vector<1x1xf32>
    %c0_191 = arith.constant 0 : index
    %c0_192 = arith.constant 0 : index
    %400 = vector.load %arg28[%c0_191, %c0_192] : memref<1x1xf32, #tpu.memory_space<vmem>>, vector<1x1xf32>
    tpu.vector_store %arg28[%c0_191, %c0_192], %399 {strides = array<i32>} : memref<1x1xf32, #tpu.memory_space<vmem>>, vector<1x1xf32>,
    %c0_193 = arith.constant 0 : index
    %c0_194 = arith.constant 0 : index
    %401 = vector.load %arg29[%c0_193, %c0_194] : memref<1x1xf32, #tpu.memory_space<vmem>>, vector<1x1xf32>
    %cst_195 = arith.constant dense<0.000000e+00> : vector<1xf32>
    %402 = vector.multi_reduction <add>, %393, %cst_195 [0] : vector<8x1xf32> to vector<1xf32>
    %403 = vector.shape_cast %402 : vector<1xf32> to vector<1x1xf32>
    %404 = arith.addf %401, %403 : vector<1x1xf32>
    %c0_196 = arith.constant 0 : index
    %c0_197 = arith.constant 0 : index
    %405 = vector.load %arg29[%c0_196, %c0_197] : memref<1x1xf32, #tpu.memory_space<vmem>>, vector<1x1xf32>
    tpu.vector_store %arg29[%c0_196, %c0_197], %404 {strides = array<i32>} : memref<1x1xf32, #tpu.memory_space<vmem>>, vector<1x1xf32>,
    %c1_i32 = arith.constant 1 : i32
    %406 = arith.cmpi eq, %arg0, %c1_i32 : i32
    %407 = arith.extui %406 : i1 to i32
    %c0_i32_198 = arith.constant 0 : i32
    %408 = arith.cmpi ne, %407, %c0_i32_198 : i32
    scf.if %408 {
      %c0_199 = arith.constant 0 : index
      %c0_200 = arith.constant 0 : index
      %409 = vector.load %arg28[%c0_199, %c0_200] : memref<1x1xf32, #tpu.memory_space<vmem>>, vector<1x1xf32>
      %c0_201 = arith.constant 0 : index
      %c0_202 = arith.constant 0 : index
      %410 = vector.load %arg29[%c0_201, %c0_202] : memref<1x1xf32, #tpu.memory_space<vmem>>, vector<1x1xf32>
      %411 = arith.divf %409, %410 : vector<1x1xf32>
      %c0_203 = arith.constant 0 : index
      %c0_204 = arith.constant 0 : index
      %412 = vector.load %arg26[%c0_203, %c0_204] : memref<1x1xf32, #tpu.memory_space<vmem>>, vector<1x1xf32>
      tpu.vector_store %arg26[%c0_203, %c0_204], %411 {strides = array<i32>} : memref<1x1xf32, #tpu.memory_space<vmem>>, vector<1x1xf32>,
    } else {
    }
    return
  }
  func.func @transform_0(%arg0: i32) -> (i32, i32, i32) {
    %c0_i32 = arith.constant 0 : i32
    %c0_i32_0 = arith.constant 0 : i32
    %c0_i32_1 = arith.constant 0 : i32
    return %arg0, %c0_i32, %c0_i32_0 : i32, i32, i32
  }
  func.func @transform_1(%arg0: i32) -> (i32, i32, i32) {
    %c0_i32 = arith.constant 0 : i32
    %c0_i32_0 = arith.constant 0 : i32
    %c0_i32_1 = arith.constant 0 : i32
    return %arg0, %c0_i32, %c0_i32_0 : i32, i32, i32
  }
  func.func @transform_2(%arg0: i32) -> (i32, i32, i32) {
    %c0_i32 = arith.constant 0 : i32
    %c0_i32_0 = arith.constant 0 : i32
    %c0_i32_1 = arith.constant 0 : i32
    return %arg0, %c0_i32, %c0_i32_0 : i32, i32, i32
  }
  func.func @transform_3(%arg0: i32) -> (i32, i32) {
    %c0_i32 = arith.constant 0 : i32
    %c0_i32_0 = arith.constant 0 : i32
    %c0_i32_1 = arith.constant 0 : i32
    return %c0_i32, %c0_i32_0 : i32, i32
  }
  func.func @transform_4(%arg0: i32) -> (i32, i32) {
    %c0_i32 = arith.constant 0 : i32
    %c0_i32_0 = arith.constant 0 : i32
    %c0_i32_1 = arith.constant 0 : i32
    return %c0_i32, %c0_i32_0 : i32, i32
  }
  func.func @transform_5(%arg0: i32) -> (i32, i32, i32) {
    %c0_i32 = arith.constant 0 : i32
    %c0_i32_0 = arith.constant 0 : i32
    %c0_i32_1 = arith.constant 0 : i32
    %c0_i32_2 = arith.constant 0 : i32
    return %c0_i32, %c0_i32_0, %c0_i32_1 : i32, i32, i32
  }
  func.func @transform_6(%arg0: i32) -> (i32, i32, i32) {
    %c0_i32 = arith.constant 0 : i32
    %c0_i32_0 = arith.constant 0 : i32
    %c0_i32_1 = arith.constant 0 : i32
    %c0_i32_2 = arith.constant 0 : i32
    return %c0_i32, %c0_i32_0, %c0_i32_1 : i32, i32, i32
  }
  func.func @transform_7(%arg0: i32) -> (i32, i32, i32) {
    %c0_i32 = arith.constant 0 : i32
    %c0_i32_0 = arith.constant 0 : i32
    %c0_i32_1 = arith.constant 0 : i32
    %c0_i32_2 = arith.constant 0 : i32
    return %c0_i32, %c0_i32_0, %c0_i32_1 : i32, i32, i32
  }
  func.func @transform_8(%arg0: i32) -> (i32, i32, i32) {
    %c0_i32 = arith.constant 0 : i32
    %c0_i32_0 = arith.constant 0 : i32
    %c0_i32_1 = arith.constant 0 : i32
    %c0_i32_2 = arith.constant 0 : i32
    return %c0_i32, %c0_i32_0, %c0_i32_1 : i32, i32, i32
  }
  func.func @transform_9(%arg0: i32) -> (i32, i32, i32) {
    %c0_i32 = arith.constant 0 : i32
    %c0_i32_0 = arith.constant 0 : i32
    %c0_i32_1 = arith.constant 0 : i32
    %c0_i32_2 = arith.constant 0 : i32
    return %c0_i32, %c0_i32_0, %c0_i32_1 : i32, i32, i32
  }
  func.func @transform_10(%arg0: i32) -> (i32, i32, i32) {
    %c0_i32 = arith.constant 0 : i32
    %c0_i32_0 = arith.constant 0 : i32
    %c0_i32_1 = arith.constant 0 : i32
    %c0_i32_2 = arith.constant 0 : i32
    return %c0_i32, %c0_i32_0, %c0_i32_1 : i32, i32, i32
  }
  func.func @transform_11(%arg0: i32) -> (i32, i32, i32) {
    %c0_i32 = arith.constant 0 : i32
    %c0_i32_0 = arith.constant 0 : i32
    %c0_i32_1 = arith.constant 0 : i32
    %c0_i32_2 = arith.constant 0 : i32
    return %c0_i32, %c0_i32_0, %c0_i32_1 : i32, i32, i32
  }
  func.func @transform_12(%arg0: i32) -> (i32, i32, i32) {
    %c0_i32 = arith.constant 0 : i32
    %c0_i32_0 = arith.constant 0 : i32
    %c0_i32_1 = arith.constant 0 : i32
    %c0_i32_2 = arith.constant 0 : i32
    return %c0_i32, %c0_i32_0, %c0_i32_1 : i32, i32, i32
  }
  func.func @transform_13(%arg0: i32) -> (i32, i32, i32) {
    %c0_i32 = arith.constant 0 : i32
    %c0_i32_0 = arith.constant 0 : i32
    %c0_i32_1 = arith.constant 0 : i32
    %c0_i32_2 = arith.constant 0 : i32
    return %c0_i32, %c0_i32_0, %c0_i32_1 : i32, i32, i32
  }
  func.func @transform_14(%arg0: i32) -> (i32, i32, i32) {
    %c0_i32 = arith.constant 0 : i32
    %c0_i32_0 = arith.constant 0 : i32
    %c0_i32_1 = arith.constant 0 : i32
    %c0_i32_2 = arith.constant 0 : i32
    return %c0_i32, %c0_i32_0, %c0_i32_1 : i32, i32, i32
  }
  func.func @transform_15(%arg0: i32) -> (i32, i32, i32) {
    %c0_i32 = arith.constant 0 : i32
    %c0_i32_0 = arith.constant 0 : i32
    %c0_i32_1 = arith.constant 0 : i32
    %c0_i32_2 = arith.constant 0 : i32
    return %c0_i32, %c0_i32_0, %c0_i32_1 : i32, i32, i32
  }
  func.func @transform_16(%arg0: i32) -> (i32, i32, i32) {
    %c0_i32 = arith.constant 0 : i32
    %c0_i32_0 = arith.constant 0 : i32
    %c0_i32_1 = arith.constant 0 : i32
    %c0_i32_2 = arith.constant 0 : i32
    return %c0_i32, %c0_i32_0, %c0_i32_1 : i32, i32, i32
  }
  func.func @transform_17(%arg0: i32) -> (i32, i32) {
    %c0_i32 = arith.constant 0 : i32
    %c0_i32_0 = arith.constant 0 : i32
    %c0_i32_1 = arith.constant 0 : i32
    return %c0_i32, %c0_i32_0 : i32, i32
  }
  func.func @transform_18(%arg0: i32) -> (i32, i32) {
    %c0_i32 = arith.constant 0 : i32
    %c0_i32_0 = arith.constant 0 : i32
    %c0_i32_1 = arith.constant 0 : i32
    return %c0_i32, %c0_i32_0 : i32, i32
  }
  func.func @transform_19(%arg0: i32) -> (i32, i32) {
    %c0_i32 = arith.constant 0 : i32
    %c0_i32_0 = arith.constant 0 : i32
    %c0_i32_1 = arith.constant 0 : i32
    return %c0_i32, %c0_i32_0 : i32, i32
  }
  func.func @transform_20(%arg0: i32) -> (i32, i32) {
    %c0_i32 = arith.constant 0 : i32
    %c0_i32_0 = arith.constant 0 : i32
    %c0_i32_1 = arith.constant 0 : i32
    return %c0_i32, %c0_i32_0 : i32, i32
  }
  func.func @transform_21(%arg0: i32) -> (i32, i32) {
    %c0_i32 = arith.constant 0 : i32
    %c0_i32_0 = arith.constant 0 : i32
    %c0_i32_1 = arith.constant 0 : i32
    return %c0_i32, %c0_i32_0 : i32, i32
  }
  func.func @transform_22(%arg0: i32) -> (i32, i32) {
    %c0_i32 = arith.constant 0 : i32
    %c0_i32_0 = arith.constant 0 : i32
    %c0_i32_1 = arith.constant 0 : i32
    return %c0_i32, %c0_i32_0 : i32, i32
  }
  func.func @transform_23(%arg0: i32) -> (i32, i32) {
    %c0_i32 = arith.constant 0 : i32
    %c0_i32_0 = arith.constant 0 : i32
    %c0_i32_1 = arith.constant 0 : i32
    return %c0_i32, %c0_i32_0 : i32, i32
  }
  func.func @transform_24(%arg0: i32) -> (i32, i32) {
    %c0_i32 = arith.constant 0 : i32
    %c0_i32_0 = arith.constant 0 : i32
    %c0_i32_1 = arith.constant 0 : i32
    return %c0_i32, %c0_i32_0 : i32, i32
  }
  func.func @transform_25(%arg0: i32) -> (i32, i32) {
    %c0_i32 = arith.constant 0 : i32
    %c0_i32_0 = arith.constant 0 : i32
    %c0_i32_1 = arith.constant 0 : i32
    return %c0_i32, %c0_i32_0 : i32, i32
  }
}

</mosaic_0001>

<llo_original>
// kernel: lm_for_pretraining_forward.1
$region0: #{lm_for_pretraining_forward.1}
  #allocation0 [shape = 'u32[]', space=smem, size = 0x4, offset = 0x4, fixed_abs, tag = 'smem constant byte address 0x4 - core index']
  #allocation1 [shape = 'u32[144,128]{1,0:T(1,128)}', space=vmem, size = 0x12000, scoped, tag = 'internal scratch']
  #allocation2 [shape = 'f32[8,32]{1,0:T(8,128)}', space=vmem, size = 0x1000, scoped, tag = 'scratch operand']
  #allocation3 [shape = 'f32[1,1]{1,0:T(1,128)}', space=vmem, size = 0x200, scoped, tag = 'scratch operand']
  #allocation4 [shape = 'f32[1,1]{1,0:T(1,128)}', space=vmem, size = 0x200, scoped, tag = 'scratch operand']
  %s0 = inlined_call_operand.vmem [shape: bf16[2,8,32], index: 0, kind: input, shape index: {}]
  %s1 = inlined_call_operand.vmem [shape: f32[2,1,8], index: 1, kind: input, shape index: {}]
  %s2 = inlined_call_operand.vmem [shape: s32[2,8,1], index: 2, kind: input, shape index: {}]
  %s3 = inlined_call_operand.vmem [shape: f32[1,32], index: 3, kind: input, shape index: {}]
  %s4 = inlined_call_operand.vmem [shape: f32[1,32], index: 4, kind: input, shape index: {}]
  %s5 = inlined_call_operand.vmem [shape: f32[2,1,32], index: 5, kind: input, shape index: {}]
  %s6 = inlined_call_operand.vmem [shape: f32[2,1,32], index: 6, kind: input, shape index: {}]
  %s7 = inlined_call_operand.vmem [shape: bf16[2,32,96], index: 7, kind: input, shape index: {}]
  %s8 = inlined_call_operand.vmem [shape: f32[2,1,96], index: 8, kind: input, shape index: {}]
  %s9 = inlined_call_operand.vmem [shape: bf16[2,32,32], index: 9, kind: input, shape index: {}]
  %s10 = inlined_call_operand.vmem [shape: f32[2,1,32], index: 10, kind: input, shape index: {}]
  %s11 = inlined_call_operand.vmem [shape: f32[2,1,32], index: 11, kind: input, shape index: {}]
  %s12 = inlined_call_operand.vmem [shape: f32[2,1,32], index: 12, kind: input, shape index: {}]
  %s13 = inlined_call_operand.vmem [shape: bf16[2,32,64], index: 13, kind: input, shape index: {}]
  %s14 = inlined_call_operand.vmem [shape: f32[2,1,64], index: 14, kind: input, shape index: {}]
  %s15 = inlined_call_operand.vmem [shape: bf16[2,64,32], index: 15, kind: input, shape index: {}]
  %s16 = inlined_call_operand.vmem [shape: f32[2,1,32], index: 16, kind: input, shape index: {}]
  %s17 = inlined_call_operand.vmem [shape: f32[1,32], index: 17, kind: input, shape index: {}]
  %s18 = inlined_call_operand.vmem [shape: f32[1,32], index: 18, kind: input, shape index: {}]
  %s19 = inlined_call_operand.vmem [shape: bf16[32,32], index: 19, kind: input, shape index: {}]
  %s20 = inlined_call_operand.vmem [shape: f32[1,32], index: 20, kind: input, shape index: {}]
  %s21 = inlined_call_operand.vmem [shape: f32[1,32], index: 21, kind: input, shape index: {}]
  %s22 = inlined_call_operand.vmem [shape: f32[1,32], index: 22, kind: input, shape index: {}]
  %s23 = inlined_call_operand.vmem [shape: bf16[128,32], index: 23, kind: input, shape index: {}]
  %s24 = inlined_call_operand.vmem [shape: f32[1,128], index: 24, kind: input, shape index: {}]
  %s25 = inlined_call_operand.hbm [shape: f32[1,1], index: 25, kind: output, shape index: {}]
  %s26 = sld [smem:[#allocation0]]
  $region141: #{lm_for_pretraining_forward.1} parent=0
    _
  %s28 = ssub.s32 1, %s26
  %s29 = scalar_select 0, %s28, %s26
  $region1: #{lm_for_pretraining_forward.1} parent=0
    #allocation5 [shape = 'u8[512]{0}', space=vmem, size = 0x400, scoped, tag = 'output window, operand 0, single buffered']
    #allocation6 [shape = 's32[2]{0}', space=sflag, size = 0x8, scoped, tag = 'scoped memory for lm_for_pretraining_forward.1']
    %30 = vsyncpa [#allocation6], 0
    loop: start=0, step=1, limit=4
    $region2: #{lm_for_pretraining_forward.1} parent=1 // loop_pre_header
      _
    $region3: #{lm_for_pretraining_forward.1} parent=1 // loop_header
      %s32 = sphi 0, %s36
      %p33 = scmp.ge.s32.totalorder %s32, 4
      %s42 = sphi 0, %s44
      %s45 = sphi 0, %s42
      %s46 = sphi 0, %s45
      %s62 = sphi 0, %s46
      %s68 = sphi 0, %s70
      %s71 = sphi 0, %s68
      %s72 = sphi 0, %s71
      %s88 = sphi 0, %s72
      %s94 = sphi 0, %s96
      %s97 = sphi 0, %s94
      %s98 = sphi 0, %s97
      %s114 = sphi 0, %s98
      %s118 = sphi 0, %s118
      %s120 = sphi 0, %s118
      %s121 = sphi 0, %s120
      %s135 = sphi 0, %s121
      %s139 = sphi 0, %s139
      %s141 = sphi 0, %s139
      %s142 = sphi 0, %s141
      %s156 = sphi 0, %s142
      %s160 = sphi 0, %s160
      %s162 = sphi 0, %s160
      %s163 = sphi 0, %s162
      %s177 = sphi 0, %s163
      %s181 = sphi 0, %s181
      %s183 = sphi 0, %s181
      %s184 = sphi 0, %s183
      %s198 = sphi 0, %s184
      %s202 = sphi 0, %s202
      %s204 = sphi 0, %s202
      %s205 = sphi 0, %s204
      %s219 = sphi 0, %s205
      %s223 = sphi 0, %s223
      %s225 = sphi 0, %s223
      %s226 = sphi 0, %s225
      %s240 = sphi 0, %s226
      %s244 = sphi 0, %s244
      %s246 = sphi 0, %s244
      %s247 = sphi 0, %s246
      %s261 = sphi 0, %s247
      %s265 = sphi 0, %s265
      %s267 = sphi 0, %s265
      %s268 = sphi 0, %s267
      %s282 = sphi 0, %s268
      %s286 = sphi 0, %s286
      %s288 = sphi 0, %s286
      %s289 = sphi 0, %s288
      %s303 = sphi 0, %s289
      %s307 = sphi 0, %s307
      %s309 = sphi 0, %s307
      %s310 = sphi 0, %s309
      %s324 = sphi 0, %s310
      %s328 = sphi 0, %s328
      %s330 = sphi 0, %s328
      %s331 = sphi 0, %s330
      %s345 = sphi 0, %s331
      %s349 = sphi 0, %s349
      %s351 = sphi 0, %s349
      %s352 = sphi 0, %s351
      %s366 = sphi 0, %s352
      %s370 = sphi 0, %s370
      %s372 = sphi 0, %s370
      %s373 = sphi 0, %s372
      %s387 = sphi 0, %s373
      %s391 = sphi 0, %s391
      %s393 = sphi 0, %s391
      %s394 = sphi 0, %s393
      %s408 = sphi 0, %s394
      %s412 = sphi 0, %s412
      %s414 = sphi 0, %s412
      %s415 = sphi 0, %s414
      %s429 = sphi 0, %s415
      %s433 = sphi 0, %s433
      %s435 = sphi 0, %s433
      %s436 = sphi 0, %s435
      %s450 = sphi 0, %s436
      %s454 = sphi 0, %s454
      %s456 = sphi 0, %s454
      %s457 = sphi 0, %s456
      %s471 = sphi 0, %s457
      %s475 = sphi 0, %s475
      %s477 = sphi 0, %s475
      %s478 = sphi 0, %s477
      %s492 = sphi 0, %s478
      %s496 = sphi 0, %s496
      %s498 = sphi 0, %s496
      %s499 = sphi 0, %s498
      %s513 = sphi 0, %s499
      %s517 = sphi 0, %s517
      %s519 = sphi 0, %s517
      %s520 = sphi 0, %s519
      %s534 = sphi 0, %s520
      %s538 = sphi 0, %s538
      %s540 = sphi 0, %s538
      %s541 = sphi 0, %s540
      %s555 = sphi 0, %s541
      %s559 = sphi 0, %s559
      %s561 = sphi 0, %s559
      %s562 = sphi 0, %s561
      %s576 = sphi 0, %s562
      %s580 = sphi 0, %s580
      %s582 = sphi 0, %s580
      %s583 = sphi 0, %s582
      %s597 = sphi 0, %s583
    $region4: #{lm_for_pretraining_forward.1} parent=1 // loop_header_branch
      %35 = sbr.rel (%p33) target = $region8
    $region5: #{lm_for_pretraining_forward.1} parent=1 // loop_body
      %s37 = ssub.s32 %s32, 1
      %s38 = ssub.s32 %s32, 2
      %s39 = sadd.s32 %s32, 1
      %s40 = ssub.s32 %s32, %s39
      %p41 = scmp.eq.s32.totalorder %s40, 0
      %s43 = sadd.s32 %s42, 1
      %s44 = scalar_select %p41, %s42, %s43
      %p47 = pneg %p41
      %p48 = scmp.eq.s32.totalorder %s32, 1
      %p49 = por %p47, %p48
      %p50 = scmp.ne.s32.totalorder %s42, %s45
      %p51 = scmp.eq.s32.totalorder %s32, 0
      %p52 = por %p50, %p51
      %p53 = scmp.ne.s32.totalorder %s42, %s45
      %p54 = scmp.eq.s32.totalorder %s37, 1
      %p55 = por %p53, %p54
      %p56 = scmp.ne.s32.totalorder %s45, %s46
      %p57 = scmp.eq.s32.totalorder %s37, 0
      %p58 = por %p56, %p57
      %p59 = scmp.ne.s32.totalorder %s45, %s46
      %p60 = scmp.eq.s32.totalorder %s38, 1
      %p61 = por %p59, %p60
      %p63 = scmp.ne.s32.totalorder %s46, %s62
      %p64 = scmp.eq.s32.totalorder %s38, 0
      %p65 = por %p63, %p64
      %s66 = ssub.s32 %s32, %s39
      %p67 = scmp.eq.s32.totalorder %s66, 0
      %s69 = sadd.s32 %s68, 1
      %s70 = scalar_select %p67, %s68, %s69
      %p73 = pneg %p67
      %p74 = scmp.eq.s32.totalorder %s32, 1
      %p75 = por %p73, %p74
      %p76 = scmp.ne.s32.totalorder %s68, %s71
      %p77 = scmp.eq.s32.totalorder %s32, 0
      %p78 = por %p76, %p77
      %p79 = scmp.ne.s32.totalorder %s68, %s71
      %p80 = scmp.eq.s32.totalorder %s37, 1
      %p81 = por %p79, %p80
      %p82 = scmp.ne.s32.totalorder %s71, %s72
      %p83 = scmp.eq.s32.totalorder %s37, 0
      %p84 = por %p82, %p83
      %p85 = scmp.ne.s32.totalorder %s71, %s72
      %p86 = scmp.eq.s32.totalorder %s38, 1
      %p87 = por %p85, %p86
      %p89 = scmp.ne.s32.totalorder %s72, %s88
      %p90 = scmp.eq.s32.totalorder %s38, 0
      %p91 = por %p89, %p90
      %s92 = ssub.s32 %s32, %s39
      %p93 = scmp.eq.s32.totalorder %s92, 0
      %s95 = sadd.s32 %s94, 1
      %s96 = scalar_select %p93, %s94, %s95
      %p99 = pneg %p93
      %p100 = scmp.eq.s32.totalorder %s32, 1
      %p101 = por %p99, %p100
      %p102 = scmp.ne.s32.totalorder %s94, %s97
      %p103 = scmp.eq.s32.totalorder %s32, 0
      %p104 = por %p102, %p103
      %p105 = scmp.ne.s32.totalorder %s94, %s97
      %p106 = scmp.eq.s32.totalorder %s37, 1
      %p107 = por %p105, %p106
      %p108 = scmp.ne.s32.totalorder %s97, %s98
      %p109 = scmp.eq.s32.totalorder %s37, 0
      %p110 = por %p108, %p109
      %p111 = scmp.ne.s32.totalorder %s97, %s98
      %p112 = scmp.eq.s32.totalorder %s38, 1
      %p113 = por %p111, %p112
      %p115 = scmp.ne.s32.totalorder %s98, %s114
      %p116 = scmp.eq.s32.totalorder %s38, 0
      %p117 = por %p115, %p116
      %s119 = sadd.s32 %s118, 1
      %p122 = scmp.eq.s32.totalorder %s32, 1
      %p123 = scmp.ne.s32.totalorder %s118, %s120
      %p124 = scmp.eq.s32.totalorder %s32, 0
      %p125 = por %p123, %p124
      %p126 = scmp.ne.s32.totalorder %s118, %s120
      %p127 = scmp.eq.s32.totalorder %s37, 1
      %p128 = por %p126, %p127
      %p129 = scmp.ne.s32.totalorder %s120, %s121
      %p130 = scmp.eq.s32.totalorder %s37, 0
      %p131 = por %p129, %p130
      %p132 = scmp.ne.s32.totalorder %s120, %s121
      %p133 = scmp.eq.s32.totalorder %s38, 1
      %p134 = por %p132, %p133
      %p136 = scmp.ne.s32.totalorder %s121, %s135
      %p137 = scmp.eq.s32.totalorder %s38, 0
      %p138 = por %p136, %p137
      %s140 = sadd.s32 %s139, 1
      %p143 = scmp.eq.s32.totalorder %s32, 1
      %p144 = scmp.ne.s32.totalorder %s139, %s141
      %p145 = scmp.eq.s32.totalorder %s32, 0
      %p146 = por %p144, %p145
      %p147 = scmp.ne.s32.totalorder %s139, %s141
      %p148 = scmp.eq.s32.totalorder %s37, 1
      %p149 = por %p147, %p148
      %p150 = scmp.ne.s32.totalorder %s141, %s142
      %p151 = scmp.eq.s32.totalorder %s37, 0
      %p152 = por %p150, %p151
      %p153 = scmp.ne.s32.totalorder %s141, %s142
      %p154 = scmp.eq.s32.totalorder %s38, 1
      %p155 = por %p153, %p154
      %p157 = scmp.ne.s32.totalorder %s142, %s156
      %p158 = scmp.eq.s32.totalorder %s38, 0
      %p159 = por %p157, %p158
      %s161 = sadd.s32 %s160, 1
      %p164 = scmp.eq.s32.totalorder %s32, 1
      %p165 = scmp.ne.s32.totalorder %s160, %s162
      %p166 = scmp.eq.s32.totalorder %s32, 0
      %p167 = por %p165, %p166
      %p168 = scmp.ne.s32.totalorder %s160, %s162
      %p169 = scmp.eq.s32.totalorder %s37, 1
      %p170 = por %p168, %p169
      %p171 = scmp.ne.s32.totalorder %s162, %s163
      %p172 = scmp.eq.s32.totalorder %s37, 0
      %p173 = por %p171, %p172
      %p174 = scmp.ne.s32.totalorder %s162, %s163
      %p175 = scmp.eq.s32.totalorder %s38, 1
      %p176 = por %p174, %p175
      %p178 = scmp.ne.s32.totalorder %s163, %s177
      %p179 = scmp.eq.s32.totalorder %s38, 0
      %p180 = por %p178, %p179
      %s182 = sadd.s32 %s181, 1
      %p185 = scmp.eq.s32.totalorder %s32, 1
      %p186 = scmp.ne.s32.totalorder %s181, %s183
      %p187 = scmp.eq.s32.totalorder %s32, 0
      %p188 = por %p186, %p187
      %p189 = scmp.ne.s32.totalorder %s181, %s183
      %p190 = scmp.eq.s32.totalorder %s37, 1
      %p191 = por %p189, %p190
      %p192 = scmp.ne.s32.totalorder %s183, %s184
      %p193 = scmp.eq.s32.totalorder %s37, 0
      %p194 = por %p192, %p193
      %p195 = scmp.ne.s32.totalorder %s183, %s184
      %p196 = scmp.eq.s32.totalorder %s38, 1
      %p197 = por %p195, %p196
      %p199 = scmp.ne.s32.totalorder %s184, %s198
      %p200 = scmp.eq.s32.totalorder %s38, 0
      %p201 = por %p199, %p200
      %s203 = sadd.s32 %s202, 1
      %p206 = scmp.eq.s32.totalorder %s32, 1
      %p207 = scmp.ne.s32.totalorder %s202, %s204
      %p208 = scmp.eq.s32.totalorder %s32, 0
      %p209 = por %p207, %p208
      %p210 = scmp.ne.s32.totalorder %s202, %s204
      %p211 = scmp.eq.s32.totalorder %s37, 1
      %p212 = por %p210, %p211
      %p213 = scmp.ne.s32.totalorder %s204, %s205
      %p214 = scmp.eq.s32.totalorder %s37, 0
      %p215 = por %p213, %p214
      %p216 = scmp.ne.s32.totalorder %s204, %s205
      %p217 = scmp.eq.s32.totalorder %s38, 1
      %p218 = por %p216, %p217
      %p220 = scmp.ne.s32.totalorder %s205, %s219
      %p221 = scmp.eq.s32.totalorder %s38, 0
      %p222 = por %p220, %p221
      %s224 = sadd.s32 %s223, 1
      %p227 = scmp.eq.s32.totalorder %s32, 1
      %p228 = scmp.ne.s32.totalorder %s223, %s225
      %p229 = scmp.eq.s32.totalorder %s32, 0
      %p230 = por %p228, %p229
      %p231 = scmp.ne.s32.totalorder %s223, %s225
      %p232 = scmp.eq.s32.totalorder %s37, 1
      %p233 = por %p231, %p232
      %p234 = scmp.ne.s32.totalorder %s225, %s226
      %p235 = scmp.eq.s32.totalorder %s37, 0
      %p236 = por %p234, %p235
      %p237 = scmp.ne.s32.totalorder %s225, %s226
      %p238 = scmp.eq.s32.totalorder %s38, 1
      %p239 = por %p237, %p238
      %p241 = scmp.ne.s32.totalorder %s226, %s240
      %p242 = scmp.eq.s32.totalorder %s38, 0
      %p243 = por %p241, %p242
      %s245 = sadd.s32 %s244, 1
      %p248 = scmp.eq.s32.totalorder %s32, 1
      %p249 = scmp.ne.s32.totalorder %s244, %s246
      %p250 = scmp.eq.s32.totalorder %s32, 0
      %p251 = por %p249, %p250
      %p252 = scmp.ne.s32.totalorder %s244, %s246
      %p253 = scmp.eq.s32.totalorder %s37, 1
      %p254 = por %p252, %p253
      %p255 = scmp.ne.s32.totalorder %s246, %s247
      %p256 = scmp.eq.s32.totalorder %s37, 0
      %p257 = por %p255, %p256
      %p258 = scmp.ne.s32.totalorder %s246, %s247
      %p259 = scmp.eq.s32.totalorder %s38, 1
      %p260 = por %p258, %p259
      %p262 = scmp.ne.s32.totalorder %s247, %s261
      %p263 = scmp.eq.s32.totalorder %s38, 0
      %p264 = por %p262, %p263
      %s266 = sadd.s32 %s265, 1
      %p269 = scmp.eq.s32.totalorder %s32, 1
      %p270 = scmp.ne.s32.totalorder %s265, %s267
      %p271 = scmp.eq.s32.totalorder %s32, 0
      %p272 = por %p270, %p271
      %p273 = scmp.ne.s32.totalorder %s265, %s267
      %p274 = scmp.eq.s32.totalorder %s37, 1
      %p275 = por %p273, %p274
      %p276 = scmp.ne.s32.totalorder %s267, %s268
      %p277 = scmp.eq.s32.totalorder %s37, 0
      %p278 = por %p276, %p277
      %p279 = scmp.ne.s32.totalorder %s267, %s268
      %p280 = scmp.eq.s32.totalorder %s38, 1
      %p281 = por %p279, %p280
      %p283 = scmp.ne.s32.totalorder %s268, %s282
      %p284 = scmp.eq.s32.totalorder %s38, 0
      %p285 = por %p283, %p284
      %s287 = sadd.s32 %s286, 1
      %p290 = scmp.eq.s32.totalorder %s32, 1
      %p291 = scmp.ne.s32.totalorder %s286, %s288
      %p292 = scmp.eq.s32.totalorder %s32, 0
      %p293 = por %p291, %p292
      %p294 = scmp.ne.s32.totalorder %s286, %s288
      %p295 = scmp.eq.s32.totalorder %s37, 1
      %p296 = por %p294, %p295
      %p297 = scmp.ne.s32.totalorder %s288, %s289
      %p298 = scmp.eq.s32.totalorder %s37, 0
      %p299 = por %p297, %p298
      %p300 = scmp.ne.s32.totalorder %s288, %s289
      %p301 = scmp.eq.s32.totalorder %s38, 1
      %p302 = por %p300, %p301
      %p304 = scmp.ne.s32.totalorder %s289, %s303
      %p305 = scmp.eq.s32.totalorder %s38, 0
      %p306 = por %p304, %p305
      %s308 = sadd.s32 %s307, 1
      %p311 = scmp.eq.s32.totalorder %s32, 1
      %p312 = scmp.ne.s32.totalorder %s307, %s309
      %p313 = scmp.eq.s32.totalorder %s32, 0
      %p314 = por %p312, %p313
      %p315 = scmp.ne.s32.totalorder %s307, %s309
      %p316 = scmp.eq.s32.totalorder %s37, 1
      %p317 = por %p315, %p316
      %p318 = scmp.ne.s32.totalorder %s309, %s310
      %p319 = scmp.eq.s32.totalorder %s37, 0
      %p320 = por %p318, %p319
      %p321 = scmp.ne.s32.totalorder %s309, %s310
      %p322 = scmp.eq.s32.totalorder %s38, 1
      %p323 = por %p321, %p322
      %p325 = scmp.ne.s32.totalorder %s310, %s324
      %p326 = scmp.eq.s32.totalorder %s38, 0
      %p327 = por %p325, %p326
      %s329 = sadd.s32 %s328, 1
      %p332 = scmp.eq.s32.totalorder %s32, 1
      %p333 = scmp.ne.s32.totalorder %s328, %s330
      %p334 = scmp.eq.s32.totalorder %s32, 0
      %p335 = por %p333, %p334
      %p336 = scmp.ne.s32.totalorder %s328, %s330
      %p337 = scmp.eq.s32.totalorder %s37, 1
      %p338 = por %p336, %p337
      %p339 = scmp.ne.s32.totalorder %s330, %s331
      %p340 = scmp.eq.s32.totalorder %s37, 0
      %p341 = por %p339, %p340
      %p342 = scmp.ne.s32.totalorder %s330, %s331
      %p343 = scmp.eq.s32.totalorder %s38, 1
      %p344 = por %p342, %p343
      %p346 = scmp.ne.s32.totalorder %s331, %s345
      %p347 = scmp.eq.s32.totalorder %s38, 0
      %p348 = por %p346, %p347
      %s350 = sadd.s32 %s349, 1
      %p353 = scmp.eq.s32.totalorder %s32, 1
      %p354 = scmp.ne.s32.totalorder %s349, %s351
      %p355 = scmp.eq.s32.totalorder %s32, 0
      %p356 = por %p354, %p355
      %p357 = scmp.ne.s32.totalorder %s349, %s351
      %p358 = scmp.eq.s32.totalorder %s37, 1
      %p359 = por %p357, %p358
      %p360 = scmp.ne.s32.totalorder %s351, %s352
      %p361 = scmp.eq.s32.totalorder %s37, 0
      %p362 = por %p360, %p361
      %p363 = scmp.ne.s32.totalorder %s351, %s352
      %p364 = scmp.eq.s32.totalorder %s38, 1
      %p365 = por %p363, %p364
      %p367 = scmp.ne.s32.totalorder %s352, %s366
      %p368 = scmp.eq.s32.totalorder %s38, 0
      %p369 = por %p367, %p368
      %s371 = sadd.s32 %s370, 1
      %p374 = scmp.eq.s32.totalorder %s32, 1
      %p375 = scmp.ne.s32.totalorder %s370, %s372
      %p376 = scmp.eq.s32.totalorder %s32, 0
      %p377 = por %p375, %p376
      %p378 = scmp.ne.s32.totalorder %s370, %s372
      %p379 = scmp.eq.s32.totalorder %s37, 1
      %p380 = por %p378, %p379
      %p381 = scmp.ne.s32.totalorder %s372, %s373
      %p382 = scmp.eq.s32.totalorder %s37, 0
      %p383 = por %p381, %p382
      %p384 = scmp.ne.s32.totalorder %s372, %s373
      %p385 = scmp.eq.s32.totalorder %s38, 1
      %p386 = por %p384, %p385
      %p388 = scmp.ne.s32.totalorder %s373, %s387
      %p389 = scmp.eq.s32.totalorder %s38, 0
      %p390 = por %p388, %p389
      %s392 = sadd.s32 %s391, 1
      %p395 = scmp.eq.s32.totalorder %s32, 1
      %p396 = scmp.ne.s32.totalorder %s391, %s393
      %p397 = scmp.eq.s32.totalorder %s32, 0
      %p398 = por %p396, %p397
      %p399 = scmp.ne.s32.totalorder %s391, %s393
      %p400 = scmp.eq.s32.totalorder %s37, 1
      %p401 = por %p399, %p400
      %p402 = scmp.ne.s32.totalorder %s393, %s394
      %p403 = scmp.eq.s32.totalorder %s37, 0
      %p404 = por %p402, %p403
      %p405 = scmp.ne.s32.totalorder %s393, %s394
      %p406 = scmp.eq.s32.totalorder %s38, 1
      %p407 = por %p405, %p406
      %p409 = scmp.ne.s32.totalorder %s394, %s408
      %p410 = scmp.eq.s32.totalorder %s38, 0
      %p411 = por %p409, %p410
      %s413 = sadd.s32 %s412, 1
      %p416 = scmp.eq.s32.totalorder %s32, 1
      %p417 = scmp.ne.s32.totalorder %s412, %s414
      %p418 = scmp.eq.s32.totalorder %s32, 0
      %p419 = por %p417, %p418
      %p420 = scmp.ne.s32.totalorder %s412, %s414
      %p421 = scmp.eq.s32.totalorder %s37, 1
      %p422 = por %p420, %p421
      %p423 = scmp.ne.s32.totalorder %s414, %s415
      %p424 = scmp.eq.s32.totalorder %s37, 0
      %p425 = por %p423, %p424
      %p426 = scmp.ne.s32.totalorder %s414, %s415
      %p427 = scmp.eq.s32.totalorder %s38, 1
      %p428 = por %p426, %p427
      %p430 = scmp.ne.s32.totalorder %s415, %s429
      %p431 = scmp.eq.s32.totalorder %s38, 0
      %p432 = por %p430, %p431
      %s434 = sadd.s32 %s433, 1
      %p437 = scmp.eq.s32.totalorder %s32, 1
      %p438 = scmp.ne.s32.totalorder %s433, %s435
      %p439 = scmp.eq.s32.totalorder %s32, 0
      %p440 = por %p438, %p439
      %p441 = scmp.ne.s32.totalorder %s433, %s435
      %p442 = scmp.eq.s32.totalorder %s37, 1
      %p443 = por %p441, %p442
      %p444 = scmp.ne.s32.totalorder %s435, %s436
      %p445 = scmp.eq.s32.totalorder %s37, 0
      %p446 = por %p444, %p445
      %p447 = scmp.ne.s32.totalorder %s435, %s436
      %p448 = scmp.eq.s32.totalorder %s38, 1
      %p449 = por %p447, %p448
      %p451 = scmp.ne.s32.totalorder %s436, %s450
      %p452 = scmp.eq.s32.totalorder %s38, 0
      %p453 = por %p451, %p452
      %s455 = sadd.s32 %s454, 1
      %p458 = scmp.eq.s32.totalorder %s32, 1
      %p459 = scmp.ne.s32.totalorder %s454, %s456
      %p460 = scmp.eq.s32.totalorder %s32, 0
      %p461 = por %p459, %p460
      %p462 = scmp.ne.s32.totalorder %s454, %s456
      %p463 = scmp.eq.s32.totalorder %s37, 1
      %p464 = por %p462, %p463
      %p465 = scmp.ne.s32.totalorder %s456, %s457
      %p466 = scmp.eq.s32.totalorder %s37, 0
      %p467 = por %p465, %p466
      %p468 = scmp.ne.s32.totalorder %s456, %s457
      %p469 = scmp.eq.s32.totalorder %s38, 1
      %p470 = por %p468, %p469
      %p472 = scmp.ne.s32.totalorder %s457, %s471
      %p473 = scmp.eq.s32.totalorder %s38, 0
      %p474 = por %p472, %p473
      %s476 = sadd.s32 %s475, 1
      %p479 = scmp.eq.s32.totalorder %s32, 1
      %p480 = scmp.ne.s32.totalorder %s475, %s477
      %p481 = scmp.eq.s32.totalorder %s32, 0
      %p482 = por %p480, %p481
      %p483 = scmp.ne.s32.totalorder %s475, %s477
      %p484 = scmp.eq.s32.totalorder %s37, 1
      %p485 = por %p483, %p484
      %p486 = scmp.ne.s32.totalorder %s477, %s478
      %p487 = scmp.eq.s32.totalorder %s37, 0
      %p488 = por %p486, %p487
      %p489 = scmp.ne.s32.totalorder %s477, %s478
      %p490 = scmp.eq.s32.totalorder %s38, 1
      %p491 = por %p489, %p490
      %p493 = scmp.ne.s32.totalorder %s478, %s492
      %p494 = scmp.eq.s32.totalorder %s38, 0
      %p495 = por %p493, %p494
      %s497 = sadd.s32 %s496, 1
      %p500 = scmp.eq.s32.totalorder %s32, 1
      %p501 = scmp.ne.s32.totalorder %s496, %s498
      %p502 = scmp.eq.s32.totalorder %s32, 0
      %p503 = por %p501, %p502
      %p504 = scmp.ne.s32.totalorder %s496, %s498
      %p505 = scmp.eq.s32.totalorder %s37, 1
      %p506 = por %p504, %p505
      %p507 = scmp.ne.s32.totalorder %s498, %s499
      %p508 = scmp.eq.s32.totalorder %s37, 0
      %p509 = por %p507, %p508
      %p510 = scmp.ne.s32.totalorder %s498, %s499
      %p511 = scmp.eq.s32.totalorder %s38, 1
      %p512 = por %p510, %p511
      %p514 = scmp.ne.s32.totalorder %s499, %s513
      %p515 = scmp.eq.s32.totalorder %s38, 0
      %p516 = por %p514, %p515
      %s518 = sadd.s32 %s517, 1
      %p521 = scmp.eq.s32.totalorder %s32, 1
      %p522 = scmp.ne.s32.totalorder %s517, %s519
      %p523 = scmp.eq.s32.totalorder %s32, 0
      %p524 = por %p522, %p523
      %p525 = scmp.ne.s32.totalorder %s517, %s519
      %p526 = scmp.eq.s32.totalorder %s37, 1
      %p527 = por %p525, %p526
      %p528 = scmp.ne.s32.totalorder %s519, %s520
      %p529 = scmp.eq.s32.totalorder %s37, 0
      %p530 = por %p528, %p529
      %p531 = scmp.ne.s32.totalorder %s519, %s520
      %p532 = scmp.eq.s32.totalorder %s38, 1
      %p533 = por %p531, %p532
      %p535 = scmp.ne.s32.totalorder %s520, %s534
      %p536 = scmp.eq.s32.totalorder %s38, 0
      %p537 = por %p535, %p536
      %s539 = sadd.s32 %s538, 1
      %p542 = scmp.eq.s32.totalorder %s32, 1
      %p543 = scmp.ne.s32.totalorder %s538, %s540
      %p544 = scmp.eq.s32.totalorder %s32, 0
      %p545 = por %p543, %p544
      %p546 = scmp.ne.s32.totalorder %s538, %s540
      %p547 = scmp.eq.s32.totalorder %s37, 1
      %p548 = por %p546, %p547
      %p549 = scmp.ne.s32.totalorder %s540, %s541
      %p550 = scmp.eq.s32.totalorder %s37, 0
      %p551 = por %p549, %p550
      %p552 = scmp.ne.s32.totalorder %s540, %s541
      %p553 = scmp.eq.s32.totalorder %s38, 1
      %p554 = por %p552, %p553
      %p556 = scmp.ne.s32.totalorder %s541, %s555
      %p557 = scmp.eq.s32.totalorder %s38, 0
      %p558 = por %p556, %p557
      %s560 = sadd.s32 %s559, 1
      %p563 = scmp.eq.s32.totalorder %s32, 1
      %p564 = scmp.ne.s32.totalorder %s559, %s561
      %p565 = scmp.eq.s32.totalorder %s32, 0
      %p566 = por %p564, %p565
      %p567 = scmp.ne.s32.totalorder %s559, %s561
      %p568 = scmp.eq.s32.totalorder %s37, 1
      %p569 = por %p567, %p568
      %p570 = scmp.ne.s32.totalorder %s561, %s562
      %p571 = scmp.eq.s32.totalorder %s37, 0
      %p572 = por %p570, %p571
      %p573 = scmp.ne.s32.totalorder %s561, %s562
      %p574 = scmp.eq.s32.totalorder %s38, 1
      %p575 = por %p573, %p574
      %p577 = scmp.ne.s32.totalorder %s562, %s576
      %p578 = scmp.eq.s32.totalorder %s38, 0
      %p579 = por %p577, %p578
      %s581 = sadd.s32 %s580, 1
      %p584 = scmp.eq.s32.totalorder %s32, 1
      %p585 = scmp.ne.s32.totalorder %s580, %s582
      %p586 = scmp.eq.s32.totalorder %s32, 0
      %p587 = por %p585, %p586
      %p588 = scmp.ne.s32.totalorder %s580, %s582
      %p589 = scmp.eq.s32.totalorder %s37, 1
      %p590 = por %p588, %p589
      %p591 = scmp.ne.s32.totalorder %s582, %s583
      %p592 = scmp.eq.s32.totalorder %s37, 0
      %p593 = por %p591, %p592
      %p594 = scmp.ne.s32.totalorder %s582, %s583
      %p595 = scmp.eq.s32.totalorder %s38, 1
      %p596 = por %p594, %p595
      %p598 = scmp.ne.s32.totalorder %s583, %s597
      %p599 = scmp.eq.s32.totalorder %s38, 0
      %p600 = por %p598, %p599
      %p601 = scmp.le.s32.totalorder 1, %s32
      %p602 = scmp.lt.s32.totalorder %s32, 3
      %p603 = pnand %p601, %p602
      %p604 = pneg %p603
      // Predicated region
      $region9: #{lm_for_pretraining_forward.1} parent=5 // pred_check
        _
      $region10: #{lm_for_pretraining_forward.1} parent=5 // pred_check_branch
        %606 = sbr.rel (%p603) target = $region12
      $region11: #{lm_for_pretraining_forward.1} parent=5 // pred_region
        %s607 = ssub.s32 %s32, 1
        // Predicated region
        $region13: #{lm_for_pretraining_forward.1} parent=11 // pred_check
          %p608 = pneg %p131
        $region14: #{lm_for_pretraining_forward.1} parent=11 // pred_check_branch
          %610 = sbr.rel (%p608) target = $region16
        $region15: #{lm_for_pretraining_forward.1} parent=11 // pred_region
          _
        $region16: #{lm_for_pretraining_forward.1} parent=11 // pred_fallthru
          _
        // Predicated region
        $region17: #{lm_for_pretraining_forward.1} parent=11 // pred_check
          %p611 = pneg %p152
        $region18: #{lm_for_pretraining_forward.1} parent=11 // pred_check_branch
          %613 = sbr.rel (%p611) target = $region20
        $region19: #{lm_for_pretraining_forward.1} parent=11 // pred_region
          _
        $region20: #{lm_for_pretraining_forward.1} parent=11 // pred_fallthru
          _
        // Predicated region
        $region21: #{lm_for_pretraining_forward.1} parent=11 // pred_check
          %p614 = pneg %p173
        $region22: #{lm_for_pretraining_forward.1} parent=11 // pred_check_branch
          %616 = sbr.rel (%p614) target = $region24
        $region23: #{lm_for_pretraining_forward.1} parent=11 // pred_region
          _
        $region24: #{lm_for_pretraining_forward.1} parent=11 // pred_fallthru
          _
        // Predicated region
        $region25: #{lm_for_pretraining_forward.1} parent=11 // pred_check
          %p617 = pneg %p194
        $region26: #{lm_for_pretraining_forward.1} parent=11 // pred_check_branch
          %619 = sbr.rel (%p617) target = $region28
        $region27: #{lm_for_pretraining_forward.1} parent=11 // pred_region
          _
        $region28: #{lm_for_pretraining_forward.1} parent=11 // pred_fallthru
          _
        // Predicated region
        $region29: #{lm_for_pretraining_forward.1} parent=11 // pred_check
          %p620 = pneg %p215
        $region30: #{lm_for_pretraining_forward.1} parent=11 // pred_check_branch
          %622 = sbr.rel (%p620) target = $region32
        $region31: #{lm_for_pretraining_forward.1} parent=11 // pred_region
          _
        $region32: #{lm_for_pretraining_forward.1} parent=11 // pred_fallthru
          _
        // Predicated region
        $region33: #{lm_for_pretraining_forward.1} parent=11 // pred_check
          %p623 = pneg %p236
        $region34: #{lm_for_pretraining_forward.1} parent=11 // pred_check_branch
          %625 = sbr.rel (%p623) target = $region36
        $region35: #{lm_for_pretraining_forward.1} parent=11 // pred_region
          _
        $region36: #{lm_for_pretraining_forward.1} parent=11 // pred_fallthru
          _
        // Predicated region
        $region37: #{lm_for_pretraining_forward.1} parent=11 // pred_check
          %p626 = pneg %p257
        $region38: #{lm_for_pretraining_forward.1} parent=11 // pred_check_branch
          %628 = sbr.rel (%p626) target = $region40
        $region39: #{lm_for_pretraining_forward.1} parent=11 // pred_region
          _
        $region40: #{lm_for_pretraining_forward.1} parent=11 // pred_fallthru
          _
        // Predicated region
        $region41: #{lm_for_pretraining_forward.1} parent=11 // pred_check
          %p629 = pneg %p278
        $region42: #{lm_for_pretraining_forward.1} parent=11 // pred_check_branch
          %631 = sbr.rel (%p629) target = $region44
        $region43: #{lm_for_pretraining_forward.1} parent=11 // pred_region
          _
        $region44: #{lm_for_pretraining_forward.1} parent=11 // pred_fallthru
          _
        // Predicated region
        $region45: #{lm_for_pretraining_forward.1} parent=11 // pred_check
          %p632 = pneg %p299
        $region46: #{lm_for_pretraining_forward.1} parent=11 // pred_check_branch
          %634 = sbr.rel (%p632) target = $region48
        $region47: #{lm_for_pretraining_forward.1} parent=11 // pred_region
          _
        $region48: #{lm_for_pretraining_forward.1} parent=11 // pred_fallthru
          _
        // Predicated region
        $region49: #{lm_for_pretraining_forward.1} parent=11 // pred_check
          %p635 = pneg %p320
        $region50: #{lm_for_pretraining_forward.1} parent=11 // pred_check_branch
          %637 = sbr.rel (%p635) target = $region52
        $region51: #{lm_for_pretraining_forward.1} parent=11 // pred_region
          _
        $region52: #{lm_for_pretraining_forward.1} parent=11 // pred_fallthru
          _
        // Predicated region
        $region53: #{lm_for_pretraining_forward.1} parent=11 // pred_check
          %p638 = pneg %p341
        $region54: #{lm_for_pretraining_forward.1} parent=11 // pred_check_branch
          %640 = sbr.rel (%p638) target = $region56
        $region55: #{lm_for_pretraining_forward.1} parent=11 // pred_region
          _
        $region56: #{lm_for_pretraining_forward.1} parent=11 // pred_fallthru
          _
        // Predicated region
        $region57: #{lm_for_pretraining_forward.1} parent=11 // pred_check
          %p641 = pneg %p362
        $region58: #{lm_for_pretraining_forward.1} parent=11 // pred_check_branch
          %643 = sbr.rel (%p641) target = $region60
        $region59: #{lm_for_pretraining_forward.1} parent=11 // pred_region
          _
        $region60: #{lm_for_pretraining_forward.1} parent=11 // pred_fallthru
          _
        // Predicated region
        $region61: #{lm_for_pretraining_forward.1} parent=11 // pred_check
          %p644 = pneg %p383
        $region62: #{lm_for_pretraining_forward.1} parent=11 // pred_check_branch
          %646 = sbr.rel (%p644) target = $region64
        $region63: #{lm_for_pretraining_forward.1} parent=11 // pred_region
          _
        $region64: #{lm_for_pretraining_forward.1} parent=11 // pred_fallthru
          _
        // Predicated region
        $region65: #{lm_for_pretraining_forward.1} parent=11 // pred_check
          %p647 = pneg %p404
        $region66: #{lm_for_pretraining_forward.1} parent=11 // pred_check_branch
          %649 = sbr.rel (%p647) target = $region68
        $region67: #{lm_for_pretraining_forward.1} parent=11 // pred_region
          _
        $region68: #{lm_for_pretraining_forward.1} parent=11 // pred_fallthru
          _
        // Predicated region
        $region69: #{lm_for_pretraining_forward.1} parent=11 // pred_check
          %p650 = pneg %p425
        $region70: #{lm_for_pretraining_forward.1} parent=11 // pred_check_branch
          %652 = sbr.rel (%p650) target = $region72
        $region71: #{lm_for_pretraining_forward.1} parent=11 // pred_region
          _
        $region72: #{lm_for_pretraining_forward.1} parent=11 // pred_fallthru
          _
        // Predicated region
        $region73: #{lm_for_pretraining_forward.1} parent=11 // pred_check
          %p653 = pneg %p446
        $region74: #{lm_for_pretraining_forward.1} parent=11 // pred_check_branch
          %655 = sbr.rel (%p653) target = $region76
        $region75: #{lm_for_pretraining_forward.1} parent=11 // pred_region
          _
        $region76: #{lm_for_pretraining_forward.1} parent=11 // pred_fallthru
          _
        // Predicated region
        $region77: #{lm_for_pretraining_forward.1} parent=11 // pred_check
          %p656 = pneg %p467
        $region78: #{lm_for_pretraining_forward.1} parent=11 // pred_check_branch
          %658 = sbr.rel (%p656) target = $region80
        $region79: #{lm_for_pretraining_forward.1} parent=11 // pred_region
          _
        $region80: #{lm_for_pretraining_forward.1} parent=11 // pred_fallthru
          _
        // Predicated region
        $region81: #{lm_for_pretraining_forward.1} parent=11 // pred_check
          %p659 = pneg %p488
        $region82: #{lm_for_pretraining_forward.1} parent=11 // pred_check_branch
          %661 = sbr.rel (%p659) target = $region84
        $region83: #{lm_for_pretraining_forward.1} parent=11 // pred_region
          _
        $region84: #{lm_for_pretraining_forward.1} parent=11 // pred_fallthru
          _
        // Predicated region
        $region85: #{lm_for_pretraining_forward.1} parent=11 // pred_check
          %p662 = pneg %p509
        $region86: #{lm_for_pretraining_forward.1} parent=11 // pred_check_branch
          %664 = sbr.rel (%p662) target = $region88
        $region87: #{lm_for_pretraining_forward.1} parent=11 // pred_region
          _
        $region88: #{lm_for_pretraining_forward.1} parent=11 // pred_fallthru
          _
        // Predicated region
        $region89: #{lm_for_pretraining_forward.1} parent=11 // pred_check
          %p665 = pneg %p530
        $region90: #{lm_for_pretraining_forward.1} parent=11 // pred_check_branch
          %667 = sbr.rel (%p665) target = $region92
        $region91: #{lm_for_pretraining_forward.1} parent=11 // pred_region
          _
        $region92: #{lm_for_pretraining_forward.1} parent=11 // pred_fallthru
          _
        // Predicated region
        $region93: #{lm_for_pretraining_forward.1} parent=11 // pred_check
          %p668 = pneg %p551
        $region94: #{lm_for_pretraining_forward.1} parent=11 // pred_check_branch
          %670 = sbr.rel (%p668) target = $region96
        $region95: #{lm_for_pretraining_forward.1} parent=11 // pred_region
          _
        $region96: #{lm_for_pretraining_forward.1} parent=11 // pred_fallthru
          _
        // Predicated region
        $region97: #{lm_for_pretraining_forward.1} parent=11 // pred_check
          %p671 = pneg %p572
        $region98: #{lm_for_pretraining_forward.1} parent=11 // pred_check_branch
          %673 = sbr.rel (%p671) target = $region100
        $region99: #{lm_for_pretraining_forward.1} parent=11 // pred_region
          _
        $region100: #{lm_for_pretraining_forward.1} parent=11 // pred_fallthru
          _
      $region12: #{lm_for_pretraining_forward.1} parent=5 // pred_fallthru
        _
      %p674 = scmp.lt.s32.totalorder %s32, 2
      // Predicated region
      $region101: #{lm_for_pretraining_forward.1} parent=5 // pred_check
        %p675 = pneg %p674
      $region102: #{lm_for_pretraining_forward.1} parent=5 // pred_check_branch
        %677 = sbr.rel (%p675) target = $region104
      $region103: #{lm_for_pretraining_forward.1} parent=5 // pred_region
        // Predicated region
        $region105: #{lm_for_pretraining_forward.1} parent=103 // pred_check
          %p678 = pneg %p52
        $region106: #{lm_for_pretraining_forward.1} parent=103 // pred_check_branch
          %680 = sbr.rel (%p678) target = $region108
        $region107: #{lm_for_pretraining_forward.1} parent=103 // pred_region
          %p681 = scmp.lt.s32.totalorder %s32, 1
          %s682 = scalar_select %p681, %s32, 1
          %s683 = smul.addr %s682, 4
          %s684 = scalar_lea.vmem %s0, %s683
        $region108: #{lm_for_pretraining_forward.1} parent=103 // pred_fallthru
          _
        // Predicated region
        $region109: #{lm_for_pretraining_forward.1} parent=103 // pred_check
          %p685 = pneg %p78
        $region110: #{lm_for_pretraining_forward.1} parent=103 // pred_check_branch
          %687 = sbr.rel (%p685) target = $region112
        $region111: #{lm_for_pretraining_forward.1} parent=103 // pred_region
          %p688 = scmp.lt.s32.totalorder %s32, 1
          %s689 = scalar_select %p688, %s32, 1
          %s690 = scalar_lea.vmem %s1, %s689
        $region112: #{lm_for_pretraining_forward.1} parent=103 // pred_fallthru
          _
        // Predicated region
        $region113: #{lm_for_pretraining_forward.1} parent=103 // pred_check
          %p691 = pneg %p104
        $region114: #{lm_for_pretraining_forward.1} parent=103 // pred_check_branch
          %693 = sbr.rel (%p691) target = $region116
        $region115: #{lm_for_pretraining_forward.1} parent=103 // pred_region
          %p694 = scmp.lt.s32.totalorder %s32, 1
          %s695 = scalar_select %p694, %s32, 1
          %s696 = smul.addr %s695, 8
          %s697 = scalar_lea.vmem %s2, %s696
        $region116: #{lm_for_pretraining_forward.1} parent=103 // pred_fallthru
          _
      $region104: #{lm_for_pretraining_forward.1} parent=5 // pred_fallthru
        _
      %p698 = scmp.le.s32.totalorder 1, %s32
      %p699 = scmp.lt.s32.totalorder %s32, 3
      %p700 = pnand %p698, %p699
      %p701 = pneg %p700
      // Predicated region
      $region117: #{lm_for_pretraining_forward.1} parent=5 // pred_check
        _
      $region118: #{lm_for_pretraining_forward.1} parent=5 // pred_check_branch
        %703 = sbr.rel (%p700) target = $region120
      $region119: #{lm_for_pretraining_forward.1} parent=5 // pred_region
        %s704 = ssub.s32 %s32, 1
        %p705 = scmp.lt.s32.totalorder %s37, 1
        %s706 = scalar_select %p705, %s37, 1
        %s707 = smul.addr %s706, 4
        %s708 = scalar_lea.vmem %s0, %s707
        %p709 = pneg %p58
        %p710 = pneg %p55
        %p711 = scmp.lt.s32.totalorder %s37, 1
        %s712 = scalar_select %p711, %s37, 1
        %s713 = scalar_lea.vmem %s1, %s712
        %p714 = pneg %p84
        %p715 = pneg %p81
        %p716 = scmp.lt.s32.totalorder %s37, 1
        %s717 = scalar_select %p716, %s37, 1
        %s718 = smul.addr %s717, 8
        %s719 = scalar_lea.vmem %s2, %s718
        %p720 = pneg %p110
        %p721 = pneg %p107
        %p722 = pneg %p131
        %p723 = pneg %p128
        %p724 = pneg %p152
        %p725 = pneg %p149
        %p726 = pneg %p173
        %p727 = pneg %p170
        %p728 = pneg %p194
        %p729 = pneg %p191
        %p730 = pneg %p215
        %p731 = pneg %p212
        %p732 = pneg %p236
        %p733 = pneg %p233
        %p734 = pneg %p257
        %p735 = pneg %p254
        %p736 = pneg %p278
        %p737 = pneg %p275
        %p738 = pneg %p299
        %p739 = pneg %p296
        %p740 = pneg %p320
        %p741 = pneg %p317
        %p742 = pneg %p341
        %p743 = pneg %p338
        %p744 = pneg %p362
        %p745 = pneg %p359
        %p746 = pneg %p383
        %p747 = pneg %p380
        %p748 = pneg %p404
        %p749 = pneg %p401
        %p750 = pneg %p425
        %p751 = pneg %p422
        %p752 = pneg %p446
        %p753 = pneg %p443
        %p754 = pneg %p467
        %p755 = pneg %p464
        %p756 = pneg %p488
        %p757 = pneg %p485
        %p758 = pneg %p509
        %p759 = pneg %p506
        %p760 = pneg %p530
        %p761 = pneg %p527
        %p762 = pneg %p551
        %p763 = pneg %p548
        %p764 = pneg %p572
        %p765 = pneg %p569
        %p766 = pneg %p593
        %p767 = pneg %p590
        %p768 = scmp.lt.s32.totalorder %s37, 1
        %s769 = scalar_select %p768, %s37, 1
        %s770 = smul.addr %s769, 4
        %s771 = scalar_lea.vmem %s0, %s770
        %p772 = scmp.lt.s32.totalorder %s37, 1
        %s773 = scalar_select %p772, %s37, 1
        %s774 = scalar_lea.vmem %s1, %s773
        %p775 = scmp.lt.s32.totalorder %s37, 1
        %s776 = scalar_select %p775, %s37, 1
        %s777 = smul.addr %s776, 8
        %s778 = scalar_lea.vmem %s2, %s777
        %p780 = scmp.eq.s32.totalorder %s37, 0
        // Predicated region
        $region121: #{lm_for_pretraining_forward.1} parent=119 // pred_check
          %p781 = pneg %p780
        $region122: #{lm_for_pretraining_forward.1} parent=119 // pred_check_branch
          %783 = sbr.rel (%p781) target = $region124
        $region123: #{lm_for_pretraining_forward.1} parent=119 // pred_region
          %vm784 = vcmask 0
          %785 = vst.msk [vmem:[#allocation3] sm:$0x1] %vm784, 0.0
          %786 = vst.msk [vmem:[#allocation4] sm:$0x1] %vm784, 0.0
        $region124: #{lm_for_pretraining_forward.1} parent=119 // pred_fallthru
          _
        %v787 = vld [vmem:[%s771] sm:$0xf]
        %v788 = vunpack.c.l.bf16 %v787
        %v789 = vld [vmem:[%s3] sm:$0x1]
        %v790 = vld [vmem:[%s4] sm:$0x1]
        %vm791 = vcmask 261120
        %v792 = vsel %vm791, %v788, 0.0
        %793 = vadd.xlane.f32.xlu0 %v792
        %v794 = vpop.xlane.xlu0 %793
        %v795 = vrcp.pop 32.0
        %v796 = vmul.f32 %v794, %v795
        %v797 = vsub.f32 %v788, %v796
        %v798 = vmul.f32 %v797, %v797
        %v799 = vsel %vm791, %v798, 0.0
        %800 = vadd.xlane.f32.xlu0 %v799
        %v801 = vpop.xlane.xlu0 %800
        %v802 = vmul.f32 %v801, %v795
        %v803 = vadd.f32 %v802, 1e-12
        %v804 = vrsqrt.pop %v803
        %v805 = vmul.f32 %v797, %v804
        %v807 = vlaneseq
        %v808 = vshrl.u32 %v807, 7
        %v809 = vsub.s32 0, %v808
        %v810 = vrot.slane %v789, %v809
        %v812 = vmul.f32 %v805, %v810
        %v814 = vlaneseq
        %v815 = vshrl.u32 %v814, 7
        %v816 = vsub.s32 0, %v815
        %v817 = vrot.slane %v790, %v816
        %v819 = vadd.f32 %v812, %v817
        %v820 = vld [vmem:[%s774] sm:$0x1]
        %v821 = vld [vmem:[%s5] sm:$0x1]
        %v822 = vld [vmem:[%s6] sm:$0x1]
        %v823 = vsel %vm791, %v819, 0.0
        %824 = vadd.xlane.f32.xlu0 %v823
        %v825 = vpop.xlane.xlu0 %824
        %v826 = vmul.f32 %v825, %v795
        %v827 = vsub.f32 %v819, %v826
        %v828 = vmul.f32 %v827, %v827
        %v829 = vsel %vm791, %v828, 0.0
        %830 = vadd.xlane.f32.xlu0 %v829
        %v831 = vpop.xlane.xlu0 %830
        %v832 = vmul.f32 %v831, %v795
        %v833 = vadd.f32 %v832, 1e-12
        %v834 = vrsqrt.pop %v833
        %v835 = vmul.f32 %v827, %v834
        %v837 = vlaneseq
        %v838 = vshrl.u32 %v837, 7
        %v839 = vsub.s32 0, %v838
        %v840 = vrot.slane %v821, %v839
        %v842 = vmul.f32 %v835, %v840
        %v844 = vlaneseq
        %v845 = vshrl.u32 %v844, 7
        %v846 = vsub.s32 0, %v845
        %v847 = vrot.slane %v822, %v846
        %v849 = vadd.f32 %v842, %v847
        %v850 = vld [vmem:[%s7] sm:$0xf]
        %v851 = vld [vmem:[%s7 + $0x4] sm:$0xf]
        %v852 = vld [vmem:[%s7 + $0x8] sm:$0xf]
        %v853 = vld [vmem:[%s7 + $0xc] sm:$0xf]
        %v854 = vpack.c.bf16 %v849, %v849
        %v855 = vld [vmem:[%s8] sm:$0x1]
        %v857 = vlaneseq
        %v858 = vshrl.u32 %v857, 7
        %v859 = vsub.s32 0, %v858
        %v860 = vrot.slane %v855, %v859
        %v866 = vunpack.c.l.b16 %v850
        %v867 = vunpack.c.l.b16 %v851
        %v868 = vunpack.c.l.b16 %v852
        %v869 = vunpack.c.l.b16 %v853
        %v870 = vpack.c.b16 %v867, %v866
        %v871 = vpack.c.b16 %v869, %v868
        %v875 = vsel %vm791, %v854, 0
        %877 = vmatprep.subr.bf16.mxu0 0
        %878 = vmatpush1.bf16.msra.mxu0 %v870
        %879 = vmatprep.subr.bf16.mxu0 0
        %880 = vmatpush1.bf16.msra.mxu0 %v871
        %881 = vmatprep.subr.bf16.mxu0 0
        %882 = vmatpush1.bf16.msra.mxu0 0
        %883 = vmatprep.subr.bf16.mxu0 0
        %884 = vmatpush1.bf16.msra.mxu0 0
        %885 = vmatprep.subr.bf16.mxu0 0
        %886 = vmatpush1.bf16.msra.mxu0 0
        %887 = vmatprep.subr.bf16.mxu0 0
        %888 = vmatpush1.bf16.msra.mxu0 0
        %889 = vmatprep.subr.bf16.mxu0 0
        %890 = vmatpush1.bf16.msra.mxu0 0
        %891 = vmatprep.subr.bf16.mxu0 0
        %892 = vmatpush1.bf16.msra.mxu0 0
        %893 = vmatprep.subr.bf16.mxu0 0
        %894 = vmatpush1.bf16.msra.mxu0 0
        %895 = vmatprep.subr.bf16.mxu0 0
        %896 = vmatpush1.bf16.msra.mxu0 0
        %897 = vmatprep.subr.bf16.mxu0 0
        %898 = vmatpush1.bf16.msra.mxu0 0
        %899 = vmatprep.subr.bf16.mxu0 0
        %900 = vmatpush1.bf16.msra.mxu0 0
        %901 = vmatprep.subr.bf16.mxu0 0
        %902 = vmatpush1.bf16.msra.mxu0 0
        %903 = vmatprep.subr.bf16.mxu0 0
        %904 = vmatpush1.bf16.msra.mxu0 0
        %905 = vmatprep.subr.bf16.mxu0 0
        %906 = vmatpush1.bf16.msra.mxu0 0
        %907 = vmatprep.subr.bf16.mxu0 0
        %908 = vmatpush1.bf16.msra.mxu0 0
        %909 = vmatprep.mubr.bf16.mxu0 0
        %910 = vmatmul.mubr.bf16.gmra.mrb[0].mxu0 %v875
        %v911 = vpop.f32.mrb[0].mxu0
        %v912 = vadd.f32 %v860, %v911
        %v913 = vpop.f32.mrb[0].mxu0
        %v914 = vpop.f32.mrb[0].mxu0
        %v915 = vpop.f32.mrb[0].mxu0
        %916 = vdwg.mxu0
        %v917 = vpack.c.bf16 %v912, %v912
        %919 = vrot.lane.b32.xlu0 %v917, 96
        %v920 = vpop.permute.xlu0 %919
        %vm921 = vcmask 130048
        %v923 = vsel %vm921, %v917, 0
        %v926 = vsel %vm921, %v920, 0
        %928 = vmatprep.subr.bf16.mxu0 0
        %929 = vmatpush1.bf16.xpose.msra.mxu0 %v926
        %930 = vmatprep.subr.bf16.mxu0 0
        %931 = vmatpush1.bf16.xpose.msra.mxu0 0
        %932 = vmatprep.subr.bf16.mxu0 0
        %933 = vmatpush1.bf16.xpose.msra.mxu0 0
        %934 = vmatprep.subr.bf16.mxu0 0
        %935 = vmatpush1.bf16.xpose.msra.mxu0 0
        %936 = vmatprep.subr.bf16.mxu0 0
        %937 = vmatpush1.bf16.xpose.msra.mxu0 0
        %938 = vmatprep.subr.bf16.mxu0 0
        %939 = vmatpush1.bf16.xpose.msra.mxu0 0
        %940 = vmatprep.subr.bf16.mxu0 0
        %941 = vmatpush1.bf16.xpose.msra.mxu0 0
        %942 = vmatprep.subr.bf16.mxu0 0
        %943 = vmatpush1.bf16.xpose.msra.mxu0 0
        %944 = vmatprep.subr.bf16.mxu0 0
        %945 = vmatpush1.bf16.xpose.msra.mxu0 0
        %946 = vmatprep.subr.bf16.mxu0 0
        %947 = vmatpush1.bf16.xpose.msra.mxu0 0
        %948 = vmatprep.subr.bf16.mxu0 0
        %949 = vmatpush1.bf16.xpose.msra.mxu0 0
        %950 = vmatprep.subr.bf16.mxu0 0
        %951 = vmatpush1.bf16.xpose.msra.mxu0 0
        %952 = vmatprep.subr.bf16.mxu0 0
        %953 = vmatpush1.bf16.xpose.msra.mxu0 0
        %954 = vmatprep.subr.bf16.mxu0 0
        %955 = vmatpush1.bf16.xpose.msra.mxu0 0
        %956 = vmatprep.subr.bf16.mxu0 0
        %957 = vmatpush1.bf16.xpose.msra.mxu0 0
        %958 = vmatprep.subr.bf16.mxu0 0
        %959 = vmatpush1.bf16.xpose.msra.mxu0 0
        %960 = vmatprep.mubr.bf16.mxu0 0
        %961 = vmatmul.mubr.bf16.gmra.mrb[0].mxu0 %v923
        %v962 = vpop.f32.mrb[0].mxu0
        %v963 = vadd.f32 0.0, %v962
        %v964 = vpop.f32.mrb[0].mxu0
        %v965 = vpop.f32.mrb[0].mxu0
        %v966 = vpop.f32.mrb[0].mxu0
        %967 = vdwg.mxu0
        %v968 = vmul.f32 %v963, 0.25
        %v970 = vlaneseq
        %v971 = vshrl.u32 %v970, 7
        %v972 = vsub.s32 0, %v971
        %v973 = vrot.slane %v820, %v972
        %v975 = vadd.f32 %v968, %v973
        %vm976 = vcmask 64512
        %v977 = vsel %vm976, %v975, -inf
        %978 = vmax.xlane.f32.xlu0 %v977
        %v979 = vpop.xlane.xlu0 %978
        %v980 = vsub.f32 %v975, %v979
        %v981 = vmul.f32 %v980, 1.442695
        %v982 = vpow.pop %v981
        %v983 = vsel %vm976, %v982, 0.0
        %984 = vadd.xlane.f32.xlu0 %v983
        %v985 = vpop.xlane.xlu0 %984
        %v986 = vrcp.pop %v985
        %v987 = vmul.f32 %v982, %v986
        %v988 = vpack.c.bf16 %v987, %v987
        %989 = vrot.lane.b32.xlu0 %v917, 64
        %v990 = vpop.permute.xlu0 %989
        %v992 = vsel %vm976, %v988, 0
        %vm994 = vcmask 1043456
        %v996 = vsel %vm994, %v990, 0
        %998 = vmatprep.subr.bf16.mxu0 0
        %999 = vmatpush1.bf16.msra.mxu0 %v996
        %1000 = vmatprep.subr.bf16.mxu0 0
        %1001 = vmatpush1.bf16.msra.mxu0 0
        %1002 = vmatprep.subr.bf16.mxu0 0
        %1003 = vmatpush1.bf16.msra.mxu0 0
        %1004 = vmatprep.subr.bf16.mxu0 0
        %1005 = vmatpush1.bf16.msra.mxu0 0
        %1006 = vmatprep.subr.bf16.mxu0 0
        %1007 = vmatpush1.bf16.msra.mxu0 0
        %1008 = vmatprep.subr.bf16.mxu0 0
        %1009 = vmatpush1.bf16.msra.mxu0 0
        %1010 = vmatprep.subr.bf16.mxu0 0
        %1011 = vmatpush1.bf16.msra.mxu0 0
        %1012 = vmatprep.subr.bf16.mxu0 0
        %1013 = vmatpush1.bf16.msra.mxu0 0
        %1014 = vmatprep.subr.bf16.mxu0 0
        %1015 = vmatpush1.bf16.msra.mxu0 0
        %1016 = vmatprep.subr.bf16.mxu0 0
        %1017 = vmatpush1.bf16.msra.mxu0 0
        %1018 = vmatprep.subr.bf16.mxu0 0
        %1019 = vmatpush1.bf16.msra.mxu0 0
        %1020 = vmatprep.subr.bf16.mxu0 0
        %1021 = vmatpush1.bf16.msra.mxu0 0
        %1022 = vmatprep.subr.bf16.mxu0 0
        %1023 = vmatpush1.bf16.msra.mxu0 0
        %1024 = vmatprep.subr.bf16.mxu0 0
        %1025 = vmatpush1.bf16.msra.mxu0 0
        %1026 = vmatprep.subr.bf16.mxu0 0
        %1027 = vmatpush1.bf16.msra.mxu0 0
        %1028 = vmatprep.subr.bf16.mxu0 0
        %1029 = vmatpush1.bf16.msra.mxu0 0
        %1030 = vmatprep.mubr.bf16.mxu0 0
        %1031 = vmatmul.mubr.bf16.gmra.mrb[0].mxu0 %v992
        %v1032 = vpop.f32.mrb[0].mxu0
        %v1033 = vadd.f32 0.0, %v1032
        %v1034 = vpop.f32.mrb[0].mxu0
        %v1035 = vpop.f32.mrb[0].mxu0
        %v1036 = vpop.f32.mrb[0].mxu0
        %1037 = vdwg.mxu0
        %1038 = vst.msk [vmem:[#allocation2] sm:$0xff] %vm921, %v1033
        %1039 = vrot.lane.b32.xlu0 %v917, 112
        %v1040 = vpop.permute.xlu0 %1039
        %1041 = vrot.lane.b32.xlu0 %v917, 80
        %v1042 = vpop.permute.xlu0 %1041
        %v1044 = vsel %vm921, %v1040, 0
        %v1047 = vsel %vm921, %v1042, 0
        %1049 = vmatprep.subr.bf16.mxu0 0
        %1050 = vmatpush1.bf16.xpose.msra.mxu0 %v1047
        %1051 = vmatprep.subr.bf16.mxu0 0
        %1052 = vmatpush1.bf16.xpose.msra.mxu0 0
        %1053 = vmatprep.subr.bf16.mxu0 0
        %1054 = vmatpush1.bf16.xpose.msra.mxu0 0
        %1055 = vmatprep.subr.bf16.mxu0 0
        %1056 = vmatpush1.bf16.xpose.msra.mxu0 0
        %1057 = vmatprep.subr.bf16.mxu0 0
        %1058 = vmatpush1.bf16.xpose.msra.mxu0 0
        %1059 = vmatprep.subr.bf16.mxu0 0
        %1060 = vmatpush1.bf16.xpose.msra.mxu0 0
        %1061 = vmatprep.subr.bf16.mxu0 0
        %1062 = vmatpush1.bf16.xpose.msra.mxu0 0
        %1063 = vmatprep.subr.bf16.mxu0 0
        %1064 = vmatpush1.bf16.xpose.msra.mxu0 0
        %1065 = vmatprep.subr.bf16.mxu0 0
        %1066 = vmatpush1.bf16.xpose.msra.mxu0 0
        %1067 = vmatprep.subr.bf16.mxu0 0
        %1068 = vmatpush1.bf16.xpose.msra.mxu0 0
        %1069 = vmatprep.subr.bf16.mxu0 0
        %1070 = vmatpush1.bf16.xpose.msra.mxu0 0
        %1071 = vmatprep.subr.bf16.mxu0 0
        %1072 = vmatpush1.bf16.xpose.msra.mxu0 0
        %1073 = vmatprep.subr.bf16.mxu0 0
        %1074 = vmatpush1.bf16.xpose.msra.mxu0 0
        %1075 = vmatprep.subr.bf16.mxu0 0
        %1076 = vmatpush1.bf16.xpose.msra.mxu0 0
        %1077 = vmatprep.subr.bf16.mxu0 0
        %1078 = vmatpush1.bf16.xpose.msra.mxu0 0
        %1079 = vmatprep.subr.bf16.mxu0 0
        %1080 = vmatpush1.bf16.xpose.msra.mxu0 0
        %1081 = vmatprep.mubr.bf16.mxu0 0
        %1082 = vmatmul.mubr.bf16.gmra.mrb[0].mxu0 %v1044
        %v1083 = vpop.f32.mrb[0].mxu0
        %v1084 = vadd.f32 0.0, %v1083
        %v1085 = vpop.f32.mrb[0].mxu0
        %v1086 = vpop.f32.mrb[0].mxu0
        %v1087 = vpop.f32.mrb[0].mxu0
        %1088 = vdwg.mxu0
        %v1089 = vmul.f32 %v1084, 0.25
        %v1090 = vadd.f32 %v1089, %v973
        %v1091 = vsel %vm976, %v1090, -inf
        %1092 = vmax.xlane.f32.xlu0 %v1091
        %v1093 = vpop.xlane.xlu0 %1092
        %v1094 = vsub.f32 %v1090, %v1093
        %v1095 = vmul.f32 %v1094, 1.442695
        %v1096 = vpow.pop %v1095
        %v1097 = vsel %vm976, %v1096, 0.0
        %1098 = vadd.xlane.f32.xlu0 %v1097
        %v1099 = vpop.xlane.xlu0 %1098
        %v1100 = vrcp.pop %v1099
        %v1101 = vmul.f32 %v1096, %v1100
        %v1102 = vpack.c.bf16 %v1101, %v1101
        %1103 = vrot.lane.b32.xlu0 %v917, 48
        %v1104 = vpop.permute.xlu0 %1103
        %v1106 = vsel %vm976, %v1102, 0
        %v1109 = vsel %vm994, %v1104, 0
        %1111 = vmatprep.subr.bf16.mxu0 0
        %1112 = vmatpush1.bf16.msra.mxu0 %v1109
        %1113 = vmatprep.subr.bf16.mxu0 0
        %1114 = vmatpush1.bf16.msra.mxu0 0
        %1115 = vmatprep.subr.bf16.mxu0 0
        %1116 = vmatpush1.bf16.msra.mxu0 0
        %1117 = vmatprep.subr.bf16.mxu0 0
        %1118 = vmatpush1.bf16.msra.mxu0 0
        %1119 = vmatprep.subr.bf16.mxu0 0
        %1120 = vmatpush1.bf16.msra.mxu0 0
        %1121 = vmatprep.subr.bf16.mxu0 0
        %1122 = vmatpush1.bf16.msra.mxu0 0
        %1123 = vmatprep.subr.bf16.mxu0 0
        %1124 = vmatpush1.bf16.msra.mxu0 0
        %1125 = vmatprep.subr.bf16.mxu0 0
        %1126 = vmatpush1.bf16.msra.mxu0 0
        %1127 = vmatprep.subr.bf16.mxu0 0
        %1128 = vmatpush1.bf16.msra.mxu0 0
        %1129 = vmatprep.subr.bf16.mxu0 0
        %1130 = vmatpush1.bf16.msra.mxu0 0
        %1131 = vmatprep.subr.bf16.mxu0 0
        %1132 = vmatpush1.bf16.msra.mxu0 0
        %1133 = vmatprep.subr.bf16.mxu0 0
        %1134 = vmatpush1.bf16.msra.mxu0 0
        %1135 = vmatprep.subr.bf16.mxu0 0
        %1136 = vmatpush1.bf16.msra.mxu0 0
        %1137 = vmatprep.subr.bf16.mxu0 0
        %1138 = vmatpush1.bf16.msra.mxu0 0
        %1139 = vmatprep.subr.bf16.mxu0 0
        %1140 = vmatpush1.bf16.msra.mxu0 0
        %1141 = vmatprep.subr.bf16.mxu0 0
        %1142 = vmatpush1.bf16.msra.mxu0 0
        %1143 = vmatprep.mubr.bf16.mxu0 0
        %1144 = vmatmul.mubr.bf16.gmra.mrb[0].mxu0 %v1106
        %v1145 = vpop.f32.mrb[0].mxu0
        %v1146 = vadd.f32 0.0, %v1145
        %v1147 = vpop.f32.mrb[0].mxu0
        %v1148 = vpop.f32.mrb[0].mxu0
        %v1149 = vpop.f32.mrb[0].mxu0
        %1150 = vdwg.mxu0
        %1152 = vrot.lane.b32.xlu0 %v1146, 16
        %v1153 = vpop.permute.xlu0 %1152
        %vm1155 = vcmask 261248
        %1156 = vst.msk [vmem:[#allocation2] sm:$0xff] %vm1155, %v1153
        %v1157 = vld [vmem:[#allocation2] sm:$0xff]
        %v1158 = vld [vmem:[%s9] sm:$0xf]
        %v1159 = vld [vmem:[%s9 + $0x4] sm:$0xf]
        %v1160 = vld [vmem:[%s9 + $0x8] sm:$0xf]
        %v1161 = vld [vmem:[%s9 + $0xc] sm:$0xf]
        %v1162 = vpack.c.bf16 %v1157, %v1157
        %v1167 = vunpack.c.l.b16 %v1158
        %v1168 = vunpack.c.l.b16 %v1159
        %v1169 = vunpack.c.l.b16 %v1160
        %v1170 = vunpack.c.l.b16 %v1161
        %v1171 = vpack.c.b16 %v1168, %v1167
        %v1172 = vpack.c.b16 %v1170, %v1169
        %v1176 = vsel %vm791, %v1162, 0
        %1178 = vmatprep.subr.bf16.mxu0 0
        %1179 = vmatpush1.bf16.msra.mxu0 %v1171
        %1180 = vmatprep.subr.bf16.mxu0 0
        %1181 = vmatpush1.bf16.msra.mxu0 %v1172
        %1182 = vmatprep.subr.bf16.mxu0 0
        %1183 = vmatpush1.bf16.msra.mxu0 0
        %1184 = vmatprep.subr.bf16.mxu0 0
        %1185 = vmatpush1.bf16.msra.mxu0 0
        %1186 = vmatprep.subr.bf16.mxu0 0
        %1187 = vmatpush1.bf16.msra.mxu0 0
        %1188 = vmatprep.subr.bf16.mxu0 0
        %1189 = vmatpush1.bf16.msra.mxu0 0
        %1190 = vmatprep.subr.bf16.mxu0 0
        %1191 = vmatpush1.bf16.msra.mxu0 0
        %1192 = vmatprep.subr.bf16.mxu0 0
        %1193 = vmatpush1.bf16.msra.mxu0 0
        %1194 = vmatprep.subr.bf16.mxu0 0
        %1195 = vmatpush1.bf16.msra.mxu0 0
        %1196 = vmatprep.subr.bf16.mxu0 0
        %1197 = vmatpush1.bf16.msra.mxu0 0
        %1198 = vmatprep.subr.bf16.mxu0 0
        %1199 = vmatpush1.bf16.msra.mxu0 0
        %1200 = vmatprep.subr.bf16.mxu0 0
        %1201 = vmatpush1.bf16.msra.mxu0 0
        %1202 = vmatprep.subr.bf16.mxu0 0
        %1203 = vmatpush1.bf16.msra.mxu0 0
        %1204 = vmatprep.subr.bf16.mxu0 0
        %1205 = vmatpush1.bf16.msra.mxu0 0
        %1206 = vmatprep.subr.bf16.mxu0 0
        %1207 = vmatpush1.bf16.msra.mxu0 0
        %1208 = vmatprep.subr.bf16.mxu0 0
        %1209 = vmatpush1.bf16.msra.mxu0 0
        %1210 = vmatprep.mubr.bf16.mxu0 0
        %1211 = vmatmul.mubr.bf16.gmra.mrb[0].mxu0 %v1176
        %v1212 = vpop.f32.mrb[0].mxu0
        %v1213 = vadd.f32 0.0, %v1212
        %v1214 = vpop.f32.mrb[0].mxu0
        %v1215 = vpop.f32.mrb[0].mxu0
        %v1216 = vpop.f32.mrb[0].mxu0
        %1217 = vdwg.mxu0
        %v1218 = vadd.f32 %v819, %v1213
        %v1219 = vld [vmem:[%s10] sm:$0x1]
        %v1221 = vlaneseq
        %v1222 = vshrl.u32 %v1221, 7
        %v1223 = vsub.s32 0, %v1222
        %v1224 = vrot.slane %v1219, %v1223
        %v1226 = vadd.f32 %v1218, %v1224
        %v1227 = vld [vmem:[%s11] sm:$0x1]
        %v1228 = vld [vmem:[%s12] sm:$0x1]
        %v1229 = vsel %vm791, %v1226, 0.0
        %1230 = vadd.xlane.f32.xlu0 %v1229
        %v1231 = vpop.xlane.xlu0 %1230
        %v1232 = vmul.f32 %v1231, %v795
        %v1233 = vsub.f32 %v1226, %v1232
        %v1234 = vmul.f32 %v1233, %v1233
        %v1235 = vsel %vm791, %v1234, 0.0
        %1236 = vadd.xlane.f32.xlu0 %v1235
        %v1237 = vpop.xlane.xlu0 %1236
        %v1238 = vmul.f32 %v1237, %v795
        %v1239 = vadd.f32 %v1238, 1e-12
        %v1240 = vrsqrt.pop %v1239
        %v1241 = vmul.f32 %v1233, %v1240
        %v1243 = vlaneseq
        %v1244 = vshrl.u32 %v1243, 7
        %v1245 = vsub.s32 0, %v1244
        %v1246 = vrot.slane %v1227, %v1245
        %v1248 = vmul.f32 %v1241, %v1246
        %v1250 = vlaneseq
        %v1251 = vshrl.u32 %v1250, 7
        %v1252 = vsub.s32 0, %v1251
        %v1253 = vrot.slane %v1228, %v1252
        %v1255 = vadd.f32 %v1248, %v1253
        %v1256 = vld [vmem:[%s13] sm:$0xf]
        %v1257 = vld [vmem:[%s13 + $0x4] sm:$0xf]
        %v1258 = vld [vmem:[%s13 + $0x8] sm:$0xf]
        %v1259 = vld [vmem:[%s13 + $0xc] sm:$0xf]
        %v1260 = vpack.c.bf16 %v1255, %v1255
        %v1261 = vld [vmem:[%s14] sm:$0x1]
        %v1263 = vlaneseq
        %v1264 = vshrl.u32 %v1263, 7
        %v1265 = vsub.s32 0, %v1264
        %v1266 = vrot.slane %v1261, %v1265
        %v1272 = vunpack.c.l.b16 %v1256
        %v1273 = vunpack.c.l.b16 %v1257
        %v1274 = vunpack.c.l.b16 %v1258
        %v1275 = vunpack.c.l.b16 %v1259
        %v1276 = vpack.c.b16 %v1273, %v1272
        %v1277 = vpack.c.b16 %v1275, %v1274
        %v1281 = vsel %vm791, %v1260, 0
        %1283 = vmatprep.subr.bf16.mxu0 0
        %1284 = vmatpush1.bf16.msra.mxu0 %v1276
        %1285 = vmatprep.subr.bf16.mxu0 0
        %1286 = vmatpush1.bf16.msra.mxu0 %v1277
        %1287 = vmatprep.subr.bf16.mxu0 0
        %1288 = vmatpush1.bf16.msra.mxu0 0
        %1289 = vmatprep.subr.bf16.mxu0 0
        %1290 = vmatpush1.bf16.msra.mxu0 0
        %1291 = vmatprep.subr.bf16.mxu0 0
        %1292 = vmatpush1.bf16.msra.mxu0 0
        %1293 = vmatprep.subr.bf16.mxu0 0
        %1294 = vmatpush1.bf16.msra.mxu0 0
        %1295 = vmatprep.subr.bf16.mxu0 0
        %1296 = vmatpush1.bf16.msra.mxu0 0
        %1297 = vmatprep.subr.bf16.mxu0 0
        %1298 = vmatpush1.bf16.msra.mxu0 0
        %1299 = vmatprep.subr.bf16.mxu0 0
        %1300 = vmatpush1.bf16.msra.mxu0 0
        %1301 = vmatprep.subr.bf16.mxu0 0
        %1302 = vmatpush1.bf16.msra.mxu0 0
        %1303 = vmatprep.subr.bf16.mxu0 0
        %1304 = vmatpush1.bf16.msra.mxu0 0
        %1305 = vmatprep.subr.bf16.mxu0 0
        %1306 = vmatpush1.bf16.msra.mxu0 0
        %1307 = vmatprep.subr.bf16.mxu0 0
        %1308 = vmatpush1.bf16.msra.mxu0 0
        %1309 = vmatprep.subr.bf16.mxu0 0
        %1310 = vmatpush1.bf16.msra.mxu0 0
        %1311 = vmatprep.subr.bf16.mxu0 0
        %1312 = vmatpush1.bf16.msra.mxu0 0
        %1313 = vmatprep.subr.bf16.mxu0 0
        %1314 = vmatpush1.bf16.msra.mxu0 0
        %1315 = vmatprep.mubr.bf16.mxu0 0
        %1316 = vmatmul.mubr.bf16.gmra.mrb[0].mxu0 %v1281
        %v1317 = vpop.f32.mrb[0].mxu0
        %v1318 = vadd.f32 %v1266, %v1317
        %v1319 = vpop.f32.mrb[0].mxu0
        %v1320 = vpop.f32.mrb[0].mxu0
        %v1321 = vpop.f32.mrb[0].mxu0
        %1322 = vdwg.mxu0
        %v1323 = vmul.f32 %v1318, 0.5
        %v1324 = vmul.f32 %v1318, 0.70710677
        %v1325 = verf.f32.pop %v1324
        %v1326 = vadd.f32 %v1325, 1.0
        %v1327 = vmul.f32 %v1323, %v1326
        %v1328 = vld [vmem:[%s15] sm:$0xf]
        %v1329 = vld [vmem:[%s15 + $0x4] sm:$0xf]
        %v1330 = vld [vmem:[%s15 + $0x8] sm:$0xf]
        %v1331 = vld [vmem:[%s15 + $0xc] sm:$0xf]
        %v1332 = vld [vmem:[%s15 + $0x10] sm:$0xf]
        %v1333 = vld [vmem:[%s15 + $0x14] sm:$0xf]
        %v1334 = vld [vmem:[%s15 + $0x18] sm:$0xf]
        %v1335 = vld [vmem:[%s15 + $0x1c] sm:$0xf]
        %v1336 = vpack.c.bf16 %v1327, %v1327
        %v1345 = vunpack.c.l.b16 %v1328
        %v1346 = vunpack.c.l.b16 %v1329
        %v1347 = vunpack.c.l.b16 %v1330
        %v1348 = vunpack.c.l.b16 %v1331
        %v1349 = vunpack.c.l.b16 %v1332
        %v1350 = vunpack.c.l.b16 %v1333
        %v1351 = vunpack.c.l.b16 %v1334
        %v1352 = vunpack.c.l.b16 %v1335
        %v1353 = vpack.c.b16 %v1346, %v1345
        %v1354 = vpack.c.b16 %v1348, %v1347
        %v1355 = vpack.c.b16 %v1350, %v1349
        %v1356 = vpack.c.b16 %v1352, %v1351
        %vm1361 = vcmask 523264
        %v1363 = vsel %vm1361, %v1336, 0
        %1365 = vmatprep.subr.bf16.mxu0 0
        %1366 = vmatpush1.bf16.msra.mxu0 %v1353
        %1367 = vmatprep.subr.bf16.mxu0 0
        %1368 = vmatpush1.bf16.msra.mxu0 %v1354
        %1369 = vmatprep.subr.bf16.mxu0 0
        %1370 = vmatpush1.bf16.msra.mxu0 %v1355
        %1371 = vmatprep.subr.bf16.mxu0 0
        %1372 = vmatpush1.bf16.msra.mxu0 %v1356
        %1373 = vmatprep.subr.bf16.mxu0 0
        %1374 = vmatpush1.bf16.msra.mxu0 0
        %1375 = vmatprep.subr.bf16.mxu0 0
        %1376 = vmatpush1.bf16.msra.mxu0 0
        %1377 = vmatprep.subr.bf16.mxu0 0
        %1378 = vmatpush1.bf16.msra.mxu0 0
        %1379 = vmatprep.subr.bf16.mxu0 0
        %1380 = vmatpush1.bf16.msra.mxu0 0
        %1381 = vmatprep.subr.bf16.mxu0 0
        %1382 = vmatpush1.bf16.msra.mxu0 0
        %1383 = vmatprep.subr.bf16.mxu0 0
        %1384 = vmatpush1.bf16.msra.mxu0 0
        %1385 = vmatprep.subr.bf16.mxu0 0
        %1386 = vmatpush1.bf16.msra.mxu0 0
        %1387 = vmatprep.subr.bf16.mxu0 0
        %1388 = vmatpush1.bf16.msra.mxu0 0
        %1389 = vmatprep.subr.bf16.mxu0 0
        %1390 = vmatpush1.bf16.msra.mxu0 0
        %1391 = vmatprep.subr.bf16.mxu0 0
        %1392 = vmatpush1.bf16.msra.mxu0 0
        %1393 = vmatprep.subr.bf16.mxu0 0
        %1394 = vmatpush1.bf16.msra.mxu0 0
        %1395 = vmatprep.subr.bf16.mxu0 0
        %1396 = vmatpush1.bf16.msra.mxu0 0
        %1397 = vmatprep.mubr.bf16.mxu0 0
        %1398 = vmatmul.mubr.bf16.gmra.mrb[0].mxu0 %v1363
        %v1399 = vpop.f32.mrb[0].mxu0
        %v1400 = vadd.f32 0.0, %v1399
        %v1401 = vpop.f32.mrb[0].mxu0
        %v1402 = vpop.f32.mrb[0].mxu0
        %v1403 = vpop.f32.mrb[0].mxu0
        %1404 = vdwg.mxu0
        %v1405 = vadd.f32 %v1226, %v1400
        %v1406 = vld [vmem:[%s16] sm:$0x1]
        %v1408 = vlaneseq
        %v1409 = vshrl.u32 %v1408, 7
        %v1410 = vsub.s32 0, %v1409
        %v1411 = vrot.slane %v1406, %v1410
        %v1413 = vadd.f32 %v1405, %v1411
        %s1414 = scalar_lea.vmem %s5, 1
        %v1415 = vld [vmem:[%s1414] sm:$0x1]
        %s1416 = scalar_lea.vmem %s6, 1
        %v1417 = vld [vmem:[%s1416] sm:$0x1]
        %v1418 = vsel %vm791, %v1413, 0.0
        %1419 = vadd.xlane.f32.xlu0 %v1418
        %v1420 = vpop.xlane.xlu0 %1419
        %v1421 = vmul.f32 %v1420, %v795
        %v1422 = vsub.f32 %v1413, %v1421
        %v1423 = vmul.f32 %v1422, %v1422
        %v1424 = vsel %vm791, %v1423, 0.0
        %1425 = vadd.xlane.f32.xlu0 %v1424
        %v1426 = vpop.xlane.xlu0 %1425
        %v1427 = vmul.f32 %v1426, %v795
        %v1428 = vadd.f32 %v1427, 1e-12
        %v1429 = vrsqrt.pop %v1428
        %v1430 = vmul.f32 %v1422, %v1429
        %v1432 = vlaneseq
        %v1433 = vshrl.u32 %v1432, 7
        %v1434 = vsub.s32 0, %v1433
        %v1435 = vrot.slane %v1415, %v1434
        %v1437 = vmul.f32 %v1430, %v1435
        %v1439 = vlaneseq
        %v1440 = vshrl.u32 %v1439, 7
        %v1441 = vsub.s32 0, %v1440
        %v1442 = vrot.slane %v1417, %v1441
        %v1444 = vadd.f32 %v1437, %v1442
        %s1445 = scalar_lea.vmem %s7, 16
        %v1446 = vld [vmem:[%s1445] sm:$0xf]
        %v1447 = vld [vmem:[%s1445 + $0x4] sm:$0xf]
        %v1448 = vld [vmem:[%s1445 + $0x8] sm:$0xf]
        %v1449 = vld [vmem:[%s1445 + $0xc] sm:$0xf]
        %v1450 = vpack.c.bf16 %v1444, %v1444
        %s1451 = scalar_lea.vmem %s8, 1
        %v1452 = vld [vmem:[%s1451] sm:$0x1]
        %v1454 = vlaneseq
        %v1455 = vshrl.u32 %v1454, 7
        %v1456 = vsub.s32 0, %v1455
        %v1457 = vrot.slane %v1452, %v1456
        %v1463 = vunpack.c.l.b16 %v1446
        %v1464 = vunpack.c.l.b16 %v1447
        %v1465 = vunpack.c.l.b16 %v1448
        %v1466 = vunpack.c.l.b16 %v1449
        %v1467 = vpack.c.b16 %v1464, %v1463
        %v1468 = vpack.c.b16 %v1466, %v1465
        %v1472 = vsel %vm791, %v1450, 0
        %1474 = vmatprep.subr.bf16.mxu0 0
        %1475 = vmatpush1.bf16.msra.mxu0 %v1467
        %1476 = vmatprep.subr.bf16.mxu0 0
        %1477 = vmatpush1.bf16.msra.mxu0 %v1468
        %1478 = vmatprep.subr.bf16.mxu0 0
        %1479 = vmatpush1.bf16.msra.mxu0 0
        %1480 = vmatprep.subr.bf16.mxu0 0
        %1481 = vmatpush1.bf16.msra.mxu0 0
        %1482 = vmatprep.subr.bf16.mxu0 0
        %1483 = vmatpush1.bf16.msra.mxu0 0
        %1484 = vmatprep.subr.bf16.mxu0 0
        %1485 = vmatpush1.bf16.msra.mxu0 0
        %1486 = vmatprep.subr.bf16.mxu0 0
        %1487 = vmatpush1.bf16.msra.mxu0 0
        %1488 = vmatprep.subr.bf16.mxu0 0
        %1489 = vmatpush1.bf16.msra.mxu0 0
        %1490 = vmatprep.subr.bf16.mxu0 0
        %1491 = vmatpush1.bf16.msra.mxu0 0
        %1492 = vmatprep.subr.bf16.mxu0 0
        %1493 = vmatpush1.bf16.msra.mxu0 0
        %1494 = vmatprep.subr.bf16.mxu0 0
        %1495 = vmatpush1.bf16.msra.mxu0 0
        %1496 = vmatprep.subr.bf16.mxu0 0
        %1497 = vmatpush1.bf16.msra.mxu0 0
        %1498 = vmatprep.subr.bf16.mxu0 0
        %1499 = vmatpush1.bf16.msra.mxu0 0
        %1500 = vmatprep.subr.bf16.mxu0 0
        %1501 = vmatpush1.bf16.msra.mxu0 0
        %1502 = vmatprep.subr.bf16.mxu0 0
        %1503 = vmatpush1.bf16.msra.mxu0 0
        %1504 = vmatprep.subr.bf16.mxu0 0
        %1505 = vmatpush1.bf16.msra.mxu0 0
        %1506 = vmatprep.mubr.bf16.mxu0 0
        %1507 = vmatmul.mubr.bf16.gmra.mrb[0].mxu0 %v1472
        %v1508 = vpop.f32.mrb[0].mxu0
        %v1509 = vadd.f32 %v1457, %v1508
        %v1510 = vpop.f32.mrb[0].mxu0
        %v1511 = vpop.f32.mrb[0].mxu0
        %v1512 = vpop.f32.mrb[0].mxu0
        %1513 = vdwg.mxu0
        %v1514 = vpack.c.bf16 %v1509, %v1509
        %1516 = vrot.lane.b32.xlu0 %v1514, 96
        %v1517 = vpop.permute.xlu0 %1516
        %v1519 = vsel %vm921, %v1514, 0
        %v1522 = vsel %vm921, %v1517, 0
        %1524 = vmatprep.subr.bf16.mxu0 0
        %1525 = vmatpush1.bf16.xpose.msra.mxu0 %v1522
        %1526 = vmatprep.subr.bf16.mxu0 0
        %1527 = vmatpush1.bf16.xpose.msra.mxu0 0
        %1528 = vmatprep.subr.bf16.mxu0 0
        %1529 = vmatpush1.bf16.xpose.msra.mxu0 0
        %1530 = vmatprep.subr.bf16.mxu0 0
        %1531 = vmatpush1.bf16.xpose.msra.mxu0 0
        %1532 = vmatprep.subr.bf16.mxu0 0
        %1533 = vmatpush1.bf16.xpose.msra.mxu0 0
        %1534 = vmatprep.subr.bf16.mxu0 0
        %1535 = vmatpush1.bf16.xpose.msra.mxu0 0
        %1536 = vmatprep.subr.bf16.mxu0 0
        %1537 = vmatpush1.bf16.xpose.msra.mxu0 0
        %1538 = vmatprep.subr.bf16.mxu0 0
        %1539 = vmatpush1.bf16.xpose.msra.mxu0 0
        %1540 = vmatprep.subr.bf16.mxu0 0
        %1541 = vmatpush1.bf16.xpose.msra.mxu0 0
        %1542 = vmatprep.subr.bf16.mxu0 0
        %1543 = vmatpush1.bf16.xpose.msra.mxu0 0
        %1544 = vmatprep.subr.bf16.mxu0 0
        %1545 = vmatpush1.bf16.xpose.msra.mxu0 0
        %1546 = vmatprep.subr.bf16.mxu0 0
        %1547 = vmatpush1.bf16.xpose.msra.mxu0 0
        %1548 = vmatprep.subr.bf16.mxu0 0
        %1549 = vmatpush1.bf16.xpose.msra.mxu0 0
        %1550 = vmatprep.subr.bf16.mxu0 0
        %1551 = vmatpush1.bf16.xpose.msra.mxu0 0
        %1552 = vmatprep.subr.bf16.mxu0 0
        %1553 = vmatpush1.bf16.xpose.msra.mxu0 0
        %1554 = vmatprep.subr.bf16.mxu0 0
        %1555 = vmatpush1.bf16.xpose.msra.mxu0 0
        %1556 = vmatprep.mubr.bf16.mxu0 0
        %1557 = vmatmul.mubr.bf16.gmra.mrb[0].mxu0 %v1519
        %v1558 = vpop.f32.mrb[0].mxu0
        %v1559 = vadd.f32 0.0, %v1558
        %v1560 = vpop.f32.mrb[0].mxu0
        %v1561 = vpop.f32.mrb[0].mxu0
        %v1562 = vpop.f32.mrb[0].mxu0
        %1563 = vdwg.mxu0
        %v1564 = vmul.f32 %v1559, 0.25
        %v1565 = vadd.f32 %v1564, %v973
        %v1566 = vsel %vm976, %v1565, -inf
        %1567 = vmax.xlane.f32.xlu0 %v1566
        %v1568 = vpop.xlane.xlu0 %1567
        %v1569 = vsub.f32 %v1565, %v1568
        %v1570 = vmul.f32 %v1569, 1.442695
        %v1571 = vpow.pop %v1570
        %v1572 = vsel %vm976, %v1571, 0.0
        %1573 = vadd.xlane.f32.xlu0 %v1572
        %v1574 = vpop.xlane.xlu0 %1573
        %v1575 = vrcp.pop %v1574
        %v1576 = vmul.f32 %v1571, %v1575
        %v1577 = vpack.c.bf16 %v1576, %v1576
        %1578 = vrot.lane.b32.xlu0 %v1514, 64
        %v1579 = vpop.permute.xlu0 %1578
        %v1581 = vsel %vm976, %v1577, 0
        %v1584 = vsel %vm994, %v1579, 0
        %1586 = vmatprep.subr.bf16.mxu0 0
        %1587 = vmatpush1.bf16.msra.mxu0 %v1584
        %1588 = vmatprep.subr.bf16.mxu0 0
        %1589 = vmatpush1.bf16.msra.mxu0 0
        %1590 = vmatprep.subr.bf16.mxu0 0
        %1591 = vmatpush1.bf16.msra.mxu0 0
        %1592 = vmatprep.subr.bf16.mxu0 0
        %1593 = vmatpush1.bf16.msra.mxu0 0
        %1594 = vmatprep.subr.bf16.mxu0 0
        %1595 = vmatpush1.bf16.msra.mxu0 0
        %1596 = vmatprep.subr.bf16.mxu0 0
        %1597 = vmatpush1.bf16.msra.mxu0 0
        %1598 = vmatprep.subr.bf16.mxu0 0
        %1599 = vmatpush1.bf16.msra.mxu0 0
        %1600 = vmatprep.subr.bf16.mxu0 0
        %1601 = vmatpush1.bf16.msra.mxu0 0
        %1602 = vmatprep.subr.bf16.mxu0 0
        %1603 = vmatpush1.bf16.msra.mxu0 0
        %1604 = vmatprep.subr.bf16.mxu0 0
        %1605 = vmatpush1.bf16.msra.mxu0 0
        %1606 = vmatprep.subr.bf16.mxu0 0
        %1607 = vmatpush1.bf16.msra.mxu0 0
        %1608 = vmatprep.subr.bf16.mxu0 0
        %1609 = vmatpush1.bf16.msra.mxu0 0
        %1610 = vmatprep.subr.bf16.mxu0 0
        %1611 = vmatpush1.bf16.msra.mxu0 0
        %1612 = vmatprep.subr.bf16.mxu0 0
        %1613 = vmatpush1.bf16.msra.mxu0 0
        %1614 = vmatprep.subr.bf16.mxu0 0
        %1615 = vmatpush1.bf16.msra.mxu0 0
        %1616 = vmatprep.subr.bf16.mxu0 0
        %1617 = vmatpush1.bf16.msra.mxu0 0
        %1618 = vmatprep.mubr.bf16.mxu0 0
        %1619 = vmatmul.mubr.bf16.gmra.mrb[0].mxu0 %v1581
        %v1620 = vpop.f32.mrb[0].mxu0
        %v1621 = vadd.f32 0.0, %v1620
        %v1622 = vpop.f32.mrb[0].mxu0
        %v1623 = vpop.f32.mrb[0].mxu0
        %v1624 = vpop.f32.mrb[0].mxu0
        %1625 = vdwg.mxu0
        %1626 = vst.msk [vmem:[#allocation2] sm:$0xff] %vm921, %v1621
        %1627 = vrot.lane.b32.xlu0 %v1514, 112
        %v1628 = vpop.permute.xlu0 %1627
        %1629 = vrot.lane.b32.xlu0 %v1514, 80
        %v1630 = vpop.permute.xlu0 %1629
        %v1632 = vsel %vm921, %v1628, 0
        %v1635 = vsel %vm921, %v1630, 0
        %1637 = vmatprep.subr.bf16.mxu0 0
        %1638 = vmatpush1.bf16.xpose.msra.mxu0 %v1635
        %1639 = vmatprep.subr.bf16.mxu0 0
        %1640 = vmatpush1.bf16.xpose.msra.mxu0 0
        %1641 = vmatprep.subr.bf16.mxu0 0
        %1642 = vmatpush1.bf16.xpose.msra.mxu0 0
        %1643 = vmatprep.subr.bf16.mxu0 0
        %1644 = vmatpush1.bf16.xpose.msra.mxu0 0
        %1645 = vmatprep.subr.bf16.mxu0 0
        %1646 = vmatpush1.bf16.xpose.msra.mxu0 0
        %1647 = vmatprep.subr.bf16.mxu0 0
        %1648 = vmatpush1.bf16.xpose.msra.mxu0 0
        %1649 = vmatprep.subr.bf16.mxu0 0
        %1650 = vmatpush1.bf16.xpose.msra.mxu0 0
        %1651 = vmatprep.subr.bf16.mxu0 0
        %1652 = vmatpush1.bf16.xpose.msra.mxu0 0
        %1653 = vmatprep.subr.bf16.mxu0 0
        %1654 = vmatpush1.bf16.xpose.msra.mxu0 0
        %1655 = vmatprep.subr.bf16.mxu0 0
        %1656 = vmatpush1.bf16.xpose.msra.mxu0 0
        %1657 = vmatprep.subr.bf16.mxu0 0
        %1658 = vmatpush1.bf16.xpose.msra.mxu0 0
        %1659 = vmatprep.subr.bf16.mxu0 0
        %1660 = vmatpush1.bf16.xpose.msra.mxu0 0
        %1661 = vmatprep.subr.bf16.mxu0 0
        %1662 = vmatpush1.bf16.xpose.msra.mxu0 0
        %1663 = vmatprep.subr.bf16.mxu0 0
        %1664 = vmatpush1.bf16.xpose.msra.mxu0 0
        %1665 = vmatprep.subr.bf16.mxu0 0
        %1666 = vmatpush1.bf16.xpose.msra.mxu0 0
        %1667 = vmatprep.subr.bf16.mxu0 0
        %1668 = vmatpush1.bf16.xpose.msra.mxu0 0
        %1669 = vmatprep.mubr.bf16.mxu0 0
        %1670 = vmatmul.mubr.bf16.gmra.mrb[0].mxu0 %v1632
        %v1671 = vpop.f32.mrb[0].mxu0
        %v1672 = vadd.f32 0.0, %v1671
        %v1673 = vpop.f32.mrb[0].mxu0
        %v1674 = vpop.f32.mrb[0].mxu0
        %v1675 = vpop.f32.mrb[0].mxu0
        %1676 = vdwg.mxu0
        %v1677 = vmul.f32 %v1672, 0.25
        %v1678 = vadd.f32 %v1677, %v973
        %v1679 = vsel %vm976, %v1678, -inf
        %1680 = vmax.xlane.f32.xlu0 %v1679
        %v1681 = vpop.xlane.xlu0 %1680
        %v1682 = vsub.f32 %v1678, %v1681
        %v1683 = vmul.f32 %v1682, 1.442695
        %v1684 = vpow.pop %v1683
        %v1685 = vsel %vm976, %v1684, 0.0
        %1686 = vadd.xlane.f32.xlu0 %v1685
        %v1687 = vpop.xlane.xlu0 %1686
        %v1688 = vrcp.pop %v1687
        %v1689 = vmul.f32 %v1684, %v1688
        %v1690 = vpack.c.bf16 %v1689, %v1689
        %1691 = vrot.lane.b32.xlu0 %v1514, 48
        %v1692 = vpop.permute.xlu0 %1691
        %v1694 = vsel %vm976, %v1690, 0
        %v1697 = vsel %vm994, %v1692, 0
        %1699 = vmatprep.subr.bf16.mxu0 0
        %1700 = vmatpush1.bf16.msra.mxu0 %v1697
        %1701 = vmatprep.subr.bf16.mxu0 0
        %1702 = vmatpush1.bf16.msra.mxu0 0
        %1703 = vmatprep.subr.bf16.mxu0 0
        %1704 = vmatpush1.bf16.msra.mxu0 0
        %1705 = vmatprep.subr.bf16.mxu0 0
        %1706 = vmatpush1.bf16.msra.mxu0 0
        %1707 = vmatprep.subr.bf16.mxu0 0
        %1708 = vmatpush1.bf16.msra.mxu0 0
        %1709 = vmatprep.subr.bf16.mxu0 0
        %1710 = vmatpush1.bf16.msra.mxu0 0
        %1711 = vmatprep.subr.bf16.mxu0 0
        %1712 = vmatpush1.bf16.msra.mxu0 0
        %1713 = vmatprep.subr.bf16.mxu0 0
        %1714 = vmatpush1.bf16.msra.mxu0 0
        %1715 = vmatprep.subr.bf16.mxu0 0
        %1716 = vmatpush1.bf16.msra.mxu0 0
        %1717 = vmatprep.subr.bf16.mxu0 0
        %1718 = vmatpush1.bf16.msra.mxu0 0
        %1719 = vmatprep.subr.bf16.mxu0 0
        %1720 = vmatpush1.bf16.msra.mxu0 0
        %1721 = vmatprep.subr.bf16.mxu0 0
        %1722 = vmatpush1.bf16.msra.mxu0 0
        %1723 = vmatprep.subr.bf16.mxu0 0
        %1724 = vmatpush1.bf16.msra.mxu0 0
        %1725 = vmatprep.subr.bf16.mxu0 0
        %1726 = vmatpush1.bf16.msra.mxu0 0
        %1727 = vmatprep.subr.bf16.mxu0 0
        %1728 = vmatpush1.bf16.msra.mxu0 0
        %1729 = vmatprep.subr.bf16.mxu0 0
        %1730 = vmatpush1.bf16.msra.mxu0 0
        %1731 = vmatprep.mubr.bf16.mxu0 0
        %1732 = vmatmul.mubr.bf16.gmra.mrb[0].mxu0 %v1694
        %v1733 = vpop.f32.mrb[0].mxu0
        %v1734 = vadd.f32 0.0, %v1733
        %v1735 = vpop.f32.mrb[0].mxu0
        %v1736 = vpop.f32.mrb[0].mxu0
        %v1737 = vpop.f32.mrb[0].mxu0
        %1738 = vdwg.mxu0
        %1740 = vrot.lane.b32.xlu0 %v1734, 16
        %v1741 = vpop.permute.xlu0 %1740
        %1743 = vst.msk [vmem:[#allocation2] sm:$0xff] %vm1155, %v1741
        %v1744 = vld [vmem:[#allocation2] sm:$0xff]
        %s1745 = scalar_lea.vmem %s9, 16
        %v1746 = vld [vmem:[%s1745] sm:$0xf]
        %v1747 = vld [vmem:[%s1745 + $0x4] sm:$0xf]
        %v1748 = vld [vmem:[%s1745 + $0x8] sm:$0xf]
        %v1749 = vld [vmem:[%s1745 + $0xc] sm:$0xf]
        %v1750 = vpack.c.bf16 %v1744, %v1744
        %v1755 = vunpack.c.l.b16 %v1746
        %v1756 = vunpack.c.l.b16 %v1747
        %v1757 = vunpack.c.l.b16 %v1748
        %v1758 = vunpack.c.l.b16 %v1749
        %v1759 = vpack.c.b16 %v1756, %v1755
        %v1760 = vpack.c.b16 %v1758, %v1757
        %v1764 = vsel %vm791, %v1750, 0
        %1766 = vmatprep.subr.bf16.mxu0 0
        %1767 = vmatpush1.bf16.msra.mxu0 %v1759
        %1768 = vmatprep.subr.bf16.mxu0 0
        %1769 = vmatpush1.bf16.msra.mxu0 %v1760
        %1770 = vmatprep.subr.bf16.mxu0 0
        %1771 = vmatpush1.bf16.msra.mxu0 0
        %1772 = vmatprep.subr.bf16.mxu0 0
        %1773 = vmatpush1.bf16.msra.mxu0 0
        %1774 = vmatprep.subr.bf16.mxu0 0
        %1775 = vmatpush1.bf16.msra.mxu0 0
        %1776 = vmatprep.subr.bf16.mxu0 0
        %1777 = vmatpush1.bf16.msra.mxu0 0
        %1778 = vmatprep.subr.bf16.mxu0 0
        %1779 = vmatpush1.bf16.msra.mxu0 0
        %1780 = vmatprep.subr.bf16.mxu0 0
        %1781 = vmatpush1.bf16.msra.mxu0 0
        %1782 = vmatprep.subr.bf16.mxu0 0
        %1783 = vmatpush1.bf16.msra.mxu0 0
        %1784 = vmatprep.subr.bf16.mxu0 0
        %1785 = vmatpush1.bf16.msra.mxu0 0
        %1786 = vmatprep.subr.bf16.mxu0 0
        %1787 = vmatpush1.bf16.msra.mxu0 0
        %1788 = vmatprep.subr.bf16.mxu0 0
        %1789 = vmatpush1.bf16.msra.mxu0 0
        %1790 = vmatprep.subr.bf16.mxu0 0
        %1791 = vmatpush1.bf16.msra.mxu0 0
        %1792 = vmatprep.subr.bf16.mxu0 0
        %1793 = vmatpush1.bf16.msra.mxu0 0
        %1794 = vmatprep.subr.bf16.mxu0 0
        %1795 = vmatpush1.bf16.msra.mxu0 0
        %1796 = vmatprep.subr.bf16.mxu0 0
        %1797 = vmatpush1.bf16.msra.mxu0 0
        %1798 = vmatprep.mubr.bf16.mxu0 0
        %1799 = vmatmul.mubr.bf16.gmra.mrb[0].mxu0 %v1764
        %v1800 = vpop.f32.mrb[0].mxu0
        %v1801 = vadd.f32 0.0, %v1800
        %v1802 = vpop.f32.mrb[0].mxu0
        %v1803 = vpop.f32.mrb[0].mxu0
        %v1804 = vpop.f32.mrb[0].mxu0
        %1805 = vdwg.mxu0
        %v1806 = vadd.f32 %v1413, %v1801
        %s1807 = scalar_lea.vmem %s10, 1
        %v1808 = vld [vmem:[%s1807] sm:$0x1]
        %v1810 = vlaneseq
        %v1811 = vshrl.u32 %v1810, 7
        %v1812 = vsub.s32 0, %v1811
        %v1813 = vrot.slane %v1808, %v1812
        %v1815 = vadd.f32 %v1806, %v1813
        %s1816 = scalar_lea.vmem %s11, 1
        %v1817 = vld [vmem:[%s1816] sm:$0x1]
        %s1818 = scalar_lea.vmem %s12, 1
        %v1819 = vld [vmem:[%s1818] sm:$0x1]
        %v1820 = vsel %vm791, %v1815, 0.0
        %1821 = vadd.xlane.f32.xlu0 %v1820
        %v1822 = vpop.xlane.xlu0 %1821
        %v1823 = vmul.f32 %v1822, %v795
        %v1824 = vsub.f32 %v1815, %v1823
        %v1825 = vmul.f32 %v1824, %v1824
        %v1826 = vsel %vm791, %v1825, 0.0
        %1827 = vadd.xlane.f32.xlu0 %v1826
        %v1828 = vpop.xlane.xlu0 %1827
        %v1829 = vmul.f32 %v1828, %v795
        %v1830 = vadd.f32 %v1829, 1e-12
        %v1831 = vrsqrt.pop %v1830
        %v1832 = vmul.f32 %v1824, %v1831
        %v1834 = vlaneseq
        %v1835 = vshrl.u32 %v1834, 7
        %v1836 = vsub.s32 0, %v1835
        %v1837 = vrot.slane %v1817, %v1836
        %v1839 = vmul.f32 %v1832, %v1837
        %v1841 = vlaneseq
        %v1842 = vshrl.u32 %v1841, 7
        %v1843 = vsub.s32 0, %v1842
        %v1844 = vrot.slane %v1819, %v1843
        %v1846 = vadd.f32 %v1839, %v1844
        %s1847 = scalar_lea.vmem %s13, 16
        %v1848 = vld [vmem:[%s1847] sm:$0xf]
        %v1849 = vld [vmem:[%s1847 + $0x4] sm:$0xf]
        %v1850 = vld [vmem:[%s1847 + $0x8] sm:$0xf]
        %v1851 = vld [vmem:[%s1847 + $0xc] sm:$0xf]
        %v1852 = vpack.c.bf16 %v1846, %v1846
        %s1853 = scalar_lea.vmem %s14, 1
        %v1854 = vld [vmem:[%s1853] sm:$0x1]
        %v1856 = vlaneseq
        %v1857 = vshrl.u32 %v1856, 7
        %v1858 = vsub.s32 0, %v1857
        %v1859 = vrot.slane %v1854, %v1858
        %v1865 = vunpack.c.l.b16 %v1848
        %v1866 = vunpack.c.l.b16 %v1849
        %v1867 = vunpack.c.l.b16 %v1850
        %v1868 = vunpack.c.l.b16 %v1851
        %v1869 = vpack.c.b16 %v1866, %v1865
        %v1870 = vpack.c.b16 %v1868, %v1867
        %v1874 = vsel %vm791, %v1852, 0
        %1876 = vmatprep.subr.bf16.mxu0 0
        %1877 = vmatpush1.bf16.msra.mxu0 %v1869
        %1878 = vmatprep.subr.bf16.mxu0 0
        %1879 = vmatpush1.bf16.msra.mxu0 %v1870
        %1880 = vmatprep.subr.bf16.mxu0 0
        %1881 = vmatpush1.bf16.msra.mxu0 0
        %1882 = vmatprep.subr.bf16.mxu0 0
        %1883 = vmatpush1.bf16.msra.mxu0 0
        %1884 = vmatprep.subr.bf16.mxu0 0
        %1885 = vmatpush1.bf16.msra.mxu0 0
        %1886 = vmatprep.subr.bf16.mxu0 0
        %1887 = vmatpush1.bf16.msra.mxu0 0
        %1888 = vmatprep.subr.bf16.mxu0 0
        %1889 = vmatpush1.bf16.msra.mxu0 0
        %1890 = vmatprep.subr.bf16.mxu0 0
        %1891 = vmatpush1.bf16.msra.mxu0 0
        %1892 = vmatprep.subr.bf16.mxu0 0
        %1893 = vmatpush1.bf16.msra.mxu0 0
        %1894 = vmatprep.subr.bf16.mxu0 0
        %1895 = vmatpush1.bf16.msra.mxu0 0
        %1896 = vmatprep.subr.bf16.mxu0 0
        %1897 = vmatpush1.bf16.msra.mxu0 0
        %1898 = vmatprep.subr.bf16.mxu0 0
        %1899 = vmatpush1.bf16.msra.mxu0 0
        %1900 = vmatprep.subr.bf16.mxu0 0
        %1901 = vmatpush1.bf16.msra.mxu0 0
        %1902 = vmatprep.subr.bf16.mxu0 0
        %1903 = vmatpush1.bf16.msra.mxu0 0
        %1904 = vmatprep.subr.bf16.mxu0 0
        %1905 = vmatpush1.bf16.msra.mxu0 0
        %1906 = vmatprep.subr.bf16.mxu0 0
        %1907 = vmatpush1.bf16.msra.mxu0 0
        %1908 = vmatprep.mubr.bf16.mxu0 0
        %1909 = vmatmul.mubr.bf16.gmra.mrb[0].mxu0 %v1874
        %v1910 = vpop.f32.mrb[0].mxu0
        %v1911 = vadd.f32 %v1859, %v1910
        %v1912 = vpop.f32.mrb[0].mxu0
        %v1913 = vpop.f32.mrb[0].mxu0
        %v1914 = vpop.f32.mrb[0].mxu0
        %1915 = vdwg.mxu0
        %v1916 = vmul.f32 %v1911, 0.5
        %v1917 = vmul.f32 %v1911, 0.70710677
        %v1918 = verf.f32.pop %v1917
        %v1919 = vadd.f32 %v1918, 1.0
        %v1920 = vmul.f32 %v1916, %v1919
        %s1921 = scalar_lea.vmem %s15, 32
        %v1922 = vld [vmem:[%s1921] sm:$0xf]
        %v1923 = vld [vmem:[%s1921 + $0x4] sm:$0xf]
        %v1924 = vld [vmem:[%s1921 + $0x8] sm:$0xf]
        %v1925 = vld [vmem:[%s1921 + $0xc] sm:$0xf]
        %v1926 = vld [vmem:[%s1921 + $0x10] sm:$0xf]
        %v1927 = vld [vmem:[%s1921 + $0x14] sm:$0xf]
        %v1928 = vld [vmem:[%s1921 + $0x18] sm:$0xf]
        %v1929 = vld [vmem:[%s1921 + $0x1c] sm:$0xf]
        %v1930 = vpack.c.bf16 %v1920, %v1920
        %v1939 = vunpack.c.l.b16 %v1922
        %v1940 = vunpack.c.l.b16 %v1923
        %v1941 = vunpack.c.l.b16 %v1924
        %v1942 = vunpack.c.l.b16 %v1925
        %v1943 = vunpack.c.l.b16 %v1926
        %v1944 = vunpack.c.l.b16 %v1927
        %v1945 = vunpack.c.l.b16 %v1928
        %v1946 = vunpack.c.l.b16 %v1929
        %v1947 = vpack.c.b16 %v1940, %v1939
        %v1948 = vpack.c.b16 %v1942, %v1941
        %v1949 = vpack.c.b16 %v1944, %v1943
        %v1950 = vpack.c.b16 %v1946, %v1945
        %v1956 = vsel %vm1361, %v1930, 0
        %1958 = vmatprep.subr.bf16.mxu0 0
        %1959 = vmatpush1.bf16.msra.mxu0 %v1947
        %1960 = vmatprep.subr.bf16.mxu0 0
        %1961 = vmatpush1.bf16.msra.mxu0 %v1948
        %1962 = vmatprep.subr.bf16.mxu0 0
        %1963 = vmatpush1.bf16.msra.mxu0 %v1949
        %1964 = vmatprep.subr.bf16.mxu0 0
        %1965 = vmatpush1.bf16.msra.mxu0 %v1950
        %1966 = vmatprep.subr.bf16.mxu0 0
        %1967 = vmatpush1.bf16.msra.mxu0 0
        %1968 = vmatprep.subr.bf16.mxu0 0
        %1969 = vmatpush1.bf16.msra.mxu0 0
        %1970 = vmatprep.subr.bf16.mxu0 0
        %1971 = vmatpush1.bf16.msra.mxu0 0
        %1972 = vmatprep.subr.bf16.mxu0 0
        %1973 = vmatpush1.bf16.msra.mxu0 0
        %1974 = vmatprep.subr.bf16.mxu0 0
        %1975 = vmatpush1.bf16.msra.mxu0 0
        %1976 = vmatprep.subr.bf16.mxu0 0
        %1977 = vmatpush1.bf16.msra.mxu0 0
        %1978 = vmatprep.subr.bf16.mxu0 0
        %1979 = vmatpush1.bf16.msra.mxu0 0
        %1980 = vmatprep.subr.bf16.mxu0 0
        %1981 = vmatpush1.bf16.msra.mxu0 0
        %1982 = vmatprep.subr.bf16.mxu0 0
        %1983 = vmatpush1.bf16.msra.mxu0 0
        %1984 = vmatprep.subr.bf16.mxu0 0
        %1985 = vmatpush1.bf16.msra.mxu0 0
        %1986 = vmatprep.subr.bf16.mxu0 0
        %1987 = vmatpush1.bf16.msra.mxu0 0
        %1988 = vmatprep.subr.bf16.mxu0 0
        %1989 = vmatpush1.bf16.msra.mxu0 0
        %1990 = vmatprep.mubr.bf16.mxu0 0
        %1991 = vmatmul.mubr.bf16.gmra.mrb[0].mxu0 %v1956
        %v1992 = vpop.f32.mrb[0].mxu0
        %v1993 = vadd.f32 0.0, %v1992
        %v1994 = vpop.f32.mrb[0].mxu0
        %v1995 = vpop.f32.mrb[0].mxu0
        %v1996 = vpop.f32.mrb[0].mxu0
        %1997 = vdwg.mxu0
        %v1998 = vadd.f32 %v1815, %v1993
        %s1999 = scalar_lea.vmem %s16, 1
        %v2000 = vld [vmem:[%s1999] sm:$0x1]
        %v2002 = vlaneseq
        %v2003 = vshrl.u32 %v2002, 7
        %v2004 = vsub.s32 0, %v2003
        %v2005 = vrot.slane %v2000, %v2004
        %v2007 = vadd.f32 %v1998, %v2005
        %v2008 = vld [vmem:[%s17] sm:$0x1]
        %v2009 = vld [vmem:[%s18] sm:$0x1]
        %v2010 = vsel %vm791, %v2007, 0.0
        %2011 = vadd.xlane.f32.xlu0 %v2010
        %v2012 = vpop.xlane.xlu0 %2011
        %v2013 = vmul.f32 %v2012, %v795
        %v2014 = vsub.f32 %v2007, %v2013
        %v2015 = vmul.f32 %v2014, %v2014
        %v2016 = vsel %vm791, %v2015, 0.0
        %2017 = vadd.xlane.f32.xlu0 %v2016
        %v2018 = vpop.xlane.xlu0 %2017
        %v2019 = vmul.f32 %v2018, %v795
        %v2020 = vadd.f32 %v2019, 1e-12
        %v2021 = vrsqrt.pop %v2020
        %v2022 = vmul.f32 %v2014, %v2021
        %v2024 = vlaneseq
        %v2025 = vshrl.u32 %v2024, 7
        %v2026 = vsub.s32 0, %v2025
        %v2027 = vrot.slane %v2008, %v2026
        %v2029 = vmul.f32 %v2022, %v2027
        %v2031 = vlaneseq
        %v2032 = vshrl.u32 %v2031, 7
        %v2033 = vsub.s32 0, %v2032
        %v2034 = vrot.slane %v2009, %v2033
        %v2036 = vadd.f32 %v2029, %v2034
        %v2037 = vld [vmem:[%s19] sm:$0xf]
        %v2038 = vld [vmem:[%s19 + $0x4] sm:$0xf]
        %v2039 = vld [vmem:[%s19 + $0x8] sm:$0xf]
        %v2040 = vld [vmem:[%s19 + $0xc] sm:$0xf]
        %v2041 = vpack.c.bf16 %v2036, %v2036
        %v2042 = vld [vmem:[%s20] sm:$0x1]
        %v2044 = vlaneseq
        %v2045 = vshrl.u32 %v2044, 7
        %v2046 = vsub.s32 0, %v2045
        %v2047 = vrot.slane %v2042, %v2046
        %v2053 = vunpack.c.l.b16 %v2037
        %v2054 = vunpack.c.l.b16 %v2038
        %v2055 = vunpack.c.l.b16 %v2039
        %v2056 = vunpack.c.l.b16 %v2040
        %v2057 = vpack.c.b16 %v2054, %v2053
        %v2058 = vpack.c.b16 %v2056, %v2055
        %v2062 = vsel %vm791, %v2041, 0
        %2064 = vmatprep.subr.bf16.mxu0 0
        %2065 = vmatpush1.bf16.msra.mxu0 %v2057
        %2066 = vmatprep.subr.bf16.mxu0 0
        %2067 = vmatpush1.bf16.msra.mxu0 %v2058
        %2068 = vmatprep.subr.bf16.mxu0 0
        %2069 = vmatpush1.bf16.msra.mxu0 0
        %2070 = vmatprep.subr.bf16.mxu0 0
        %2071 = vmatpush1.bf16.msra.mxu0 0
        %2072 = vmatprep.subr.bf16.mxu0 0
        %2073 = vmatpush1.bf16.msra.mxu0 0
        %2074 = vmatprep.subr.bf16.mxu0 0
        %2075 = vmatpush1.bf16.msra.mxu0 0
        %2076 = vmatprep.subr.bf16.mxu0 0
        %2077 = vmatpush1.bf16.msra.mxu0 0
        %2078 = vmatprep.subr.bf16.mxu0 0
        %2079 = vmatpush1.bf16.msra.mxu0 0
        %2080 = vmatprep.subr.bf16.mxu0 0
        %2081 = vmatpush1.bf16.msra.mxu0 0
        %2082 = vmatprep.subr.bf16.mxu0 0
        %2083 = vmatpush1.bf16.msra.mxu0 0
        %2084 = vmatprep.subr.bf16.mxu0 0
        %2085 = vmatpush1.bf16.msra.mxu0 0
        %2086 = vmatprep.subr.bf16.mxu0 0
        %2087 = vmatpush1.bf16.msra.mxu0 0
        %2088 = vmatprep.subr.bf16.mxu0 0
        %2089 = vmatpush1.bf16.msra.mxu0 0
        %2090 = vmatprep.subr.bf16.mxu0 0
        %2091 = vmatpush1.bf16.msra.mxu0 0
        %2092 = vmatprep.subr.bf16.mxu0 0
        %2093 = vmatpush1.bf16.msra.mxu0 0
        %2094 = vmatprep.subr.bf16.mxu0 0
        %2095 = vmatpush1.bf16.msra.mxu0 0
        %2096 = vmatprep.mubr.bf16.mxu0 0
        %2097 = vmatmul.mubr.bf16.gmra.mrb[0].mxu0 %v2062
        %v2098 = vpop.f32.mrb[0].mxu0
        %v2099 = vadd.f32 %v2047, %v2098
        %v2100 = vpop.f32.mrb[0].mxu0
        %v2101 = vpop.f32.mrb[0].mxu0
        %v2102 = vpop.f32.mrb[0].mxu0
        %2103 = vdwg.mxu0
        %v2104 = vmul.f32 %v2099, 0.5
        %v2105 = vmul.f32 %v2099, 0.70710677
        %v2106 = verf.f32.pop %v2105
        %v2107 = vadd.f32 %v2106, 1.0
        %v2108 = vmul.f32 %v2104, %v2107
        %v2109 = vld [vmem:[%s21] sm:$0x1]
        %v2110 = vld [vmem:[%s22] sm:$0x1]
        %v2111 = vsel %vm791, %v2108, 0.0
        %2112 = vadd.xlane.f32.xlu0 %v2111
        %v2113 = vpop.xlane.xlu0 %2112
        %v2114 = vmul.f32 %v2113, %v795
        %v2115 = vsub.f32 %v2108, %v2114
        %v2116 = vmul.f32 %v2115, %v2115
        %v2117 = vsel %vm791, %v2116, 0.0
        %2118 = vadd.xlane.f32.xlu0 %v2117
        %v2119 = vpop.xlane.xlu0 %2118
        %v2120 = vmul.f32 %v2119, %v795
        %v2121 = vadd.f32 %v2120, 1e-12
        %v2122 = vrsqrt.pop %v2121
        %v2123 = vmul.f32 %v2115, %v2122
        %v2125 = vlaneseq
        %v2126 = vshrl.u32 %v2125, 7
        %v2127 = vsub.s32 0, %v2126
        %v2128 = vrot.slane %v2109, %v2127
        %v2130 = vmul.f32 %v2123, %v2128
        %v2132 = vlaneseq
        %v2133 = vshrl.u32 %v2132, 7
        %v2134 = vsub.s32 0, %v2133
        %v2135 = vrot.slane %v2110, %v2134
        %v2137 = vadd.f32 %v2130, %v2135
        %v2138 = vld [vmem:[%s23] sm:$0xf]
        %v2139 = vld [vmem:[%s23 + $0x4] sm:$0xf]
        %v2140 = vld [vmem:[%s23 + $0x8] sm:$0xf]
        %v2141 = vld [vmem:[%s23 + $0xc] sm:$0xf]
        %v2142 = vld [vmem:[%s23 + $0x10] sm:$0xf]
        %v2143 = vld [vmem:[%s23 + $0x14] sm:$0xf]
        %v2144 = vld [vmem:[%s23 + $0x18] sm:$0xf]
        %v2145 = vld [vmem:[%s23 + $0x1c] sm:$0xf]
        %v2146 = vld [vmem:[%s23 + $0x20] sm:$0xf]
        %v2147 = vld [vmem:[%s23 + $0x24] sm:$0xf]
        %v2148 = vld [vmem:[%s23 + $0x28] sm:$0xf]
        %v2149 = vld [vmem:[%s23 + $0x2c] sm:$0xf]
        %v2150 = vld [vmem:[%s23 + $0x30] sm:$0xf]
        %v2151 = vld [vmem:[%s23 + $0x34] sm:$0xf]
        %v2152 = vld [vmem:[%s23 + $0x38] sm:$0xf]
        %v2153 = vld [vmem:[%s23 + $0x3c] sm:$0xf]
        %v2154 = vpack.c.bf16 %v2137, %v2137
        %v2155 = vld [vmem:[%s24] sm:$0x1]
        %v2157 = vlaneseq
        %v2158 = vshrl.u32 %v2157, 7
        %v2159 = vsub.s32 0, %v2158
        %v2160 = vrot.slane %v2155, %v2159
        %v2178 = vunpack.c.l.b16 %v2138
        %v2179 = vunpack.c.l.b16 %v2139
        %v2180 = vunpack.c.l.b16 %v2140
        %v2181 = vunpack.c.l.b16 %v2141
        %v2182 = vunpack.c.l.b16 %v2142
        %v2183 = vunpack.c.l.b16 %v2143
        %v2184 = vunpack.c.l.b16 %v2144
        %v2185 = vunpack.c.l.b16 %v2145
        %v2186 = vunpack.c.l.b16 %v2146
        %v2187 = vunpack.c.l.b16 %v2147
        %v2188 = vunpack.c.l.b16 %v2148
        %v2189 = vunpack.c.l.b16 %v2149
        %v2190 = vunpack.c.l.b16 %v2150
        %v2191 = vunpack.c.l.b16 %v2151
        %v2192 = vunpack.c.l.b16 %v2152
        %v2193 = vunpack.c.l.b16 %v2153
        %v2194 = vpack.c.b16 %v2179, %v2178
        %v2195 = vpack.c.b16 %v2181, %v2180
        %v2196 = vpack.c.b16 %v2183, %v2182
        %v2197 = vpack.c.b16 %v2185, %v2184
        %v2198 = vpack.c.b16 %v2187, %v2186
        %v2199 = vpack.c.b16 %v2189, %v2188
        %v2200 = vpack.c.b16 %v2191, %v2190
        %v2201 = vpack.c.b16 %v2193, %v2192
        %v2203 = vsel %vm791, %v2154, 0
        %v2206 = vsel %vm791, %v2194, 0
        %v2209 = vsel %vm791, %v2195, 0
        %v2212 = vsel %vm791, %v2196, 0
        %v2215 = vsel %vm791, %v2197, 0
        %v2218 = vsel %vm791, %v2198, 0
        %v2221 = vsel %vm791, %v2199, 0
        %v2224 = vsel %vm791, %v2200, 0
        %v2227 = vsel %vm791, %v2201, 0
        %2229 = vmatprep.subr.bf16.mxu0 0
        %2230 = vmatpush1.bf16.xpose.msra.mxu0 %v2206
        %2231 = vmatprep.subr.bf16.mxu0 0
        %2232 = vmatpush1.bf16.xpose.msra.mxu0 %v2209
        %2233 = vmatprep.subr.bf16.mxu0 0
        %2234 = vmatpush1.bf16.xpose.msra.mxu0 %v2212
        %2235 = vmatprep.subr.bf16.mxu0 0
        %2236 = vmatpush1.bf16.xpose.msra.mxu0 %v2215
        %2237 = vmatprep.subr.bf16.mxu0 0
        %2238 = vmatpush1.bf16.xpose.msra.mxu0 %v2218
        %2239 = vmatprep.subr.bf16.mxu0 0
        %2240 = vmatpush1.bf16.xpose.msra.mxu0 %v2221
        %2241 = vmatprep.subr.bf16.mxu0 0
        %2242 = vmatpush1.bf16.xpose.msra.mxu0 %v2224
        %2243 = vmatprep.subr.bf16.mxu0 0
        %2244 = vmatpush1.bf16.xpose.msra.mxu0 %v2227
        %2245 = vmatprep.subr.bf16.mxu0 0
        %2246 = vmatpush1.bf16.xpose.msra.mxu0 0
        %2247 = vmatprep.subr.bf16.mxu0 0
        %2248 = vmatpush1.bf16.xpose.msra.mxu0 0
        %2249 = vmatprep.subr.bf16.mxu0 0
        %2250 = vmatpush1.bf16.xpose.msra.mxu0 0
        %2251 = vmatprep.subr.bf16.mxu0 0
        %2252 = vmatpush1.bf16.xpose.msra.mxu0 0
        %2253 = vmatprep.subr.bf16.mxu0 0
        %2254 = vmatpush1.bf16.xpose.msra.mxu0 0
        %2255 = vmatprep.subr.bf16.mxu0 0
        %2256 = vmatpush1.bf16.xpose.msra.mxu0 0
        %2257 = vmatprep.subr.bf16.mxu0 0
        %2258 = vmatpush1.bf16.xpose.msra.mxu0 0
        %2259 = vmatprep.subr.bf16.mxu0 0
        %2260 = vmatpush1.bf16.xpose.msra.mxu0 0
        %2261 = vmatprep.mubr.bf16.mxu0 0
        %2262 = vmatmul.mubr.bf16.gmra.mrb[0].mxu0 %v2203
        %v2263 = vpop.f32.mrb[0].mxu0
        %v2264 = vadd.f32 %v2160, %v2263
        %v2265 = vpop.f32.mrb[0].mxu0
        %v2266 = vpop.f32.mrb[0].mxu0
        %v2267 = vpop.f32.mrb[0].mxu0
        %2268 = vdwg.mxu0
        %v2269 = vld [vmem:[%s778] sm:$0xff]
        %2270 = vmax.xlane.f32.xlu0 %v2264
        %v2271 = vpop.xlane.xlu0 %2270
        %v2272 = vsub.f32 %v2264, %v2271
        %v2273 = vmul.f32 %v2272, 1.442695
        %v2274 = vpow.pop %v2273
        %2275 = vadd.xlane.f32.xlu0 %v2274
        %v2276 = vpop.xlane.xlu0 %2275
        %v2277 = vlog2.pop %v2276
        %v2278 = vmul.f32 %v2277, 0.6931472
        %v2279 = vadd.f32 %v2271, %v2278
        %v2280 = vlaneseq
        %v2281 = vand.u32 %v2280, 127
        %2282 = vset.pattern.permute.xlu0 0
        %2283 = vperm.xlu0 %2282, %v2269
        %v2284 = vpop.permute.xlu0 %2283
        %vm2285 = vcmp.eq.s32.totalorder %v2281, %v2284
        %v2286 = vsel %vm2285, %v2264, 0.0
        %2287 = vadd.xlane.f32.xlu0 %v2286
        %v2288 = vpop.xlane.xlu0 %2287
        %vm2289 = vcmp.ne.s32.totalorder %v2269, 4294967196
        %v2290 = vsel %vm2289, 1, 0
        %v2291 = vcvt.s32.f32 %v2290
        %v2292 = vsub.f32 %v2279, %v2288
        %v2293 = vmul.f32 %v2292, %v2291
        %v2294 = vld [vmem:[#allocation3] sm:$0x1]
        %vm2295 = vcmask 7168
        %v2296 = vsel %vm2295, %v2293, 0.0
        %v2297 = vrot.slane %v2296, 4
        %v2298 = vadd.f32 %v2296, %v2297
        %v2299 = vrot.slane %v2298, 2
        %v2300 = vadd.f32 %v2298, %v2299
        %v2301 = vrot.slane %v2300, 1
        %v2302 = vadd.f32 %v2300, %v2301
        %v2303 = vadd.f32 %v2294, %v2302
        %vm2304 = vcmask 0
        %2305 = vst.msk [vmem:[#allocation3] sm:$0x1] %vm2304, %v2303
        %v2306 = vld [vmem:[#allocation4] sm:$0x1]
        %v2307 = vsel %vm2295, %v2291, 0.0
        %v2308 = vrot.slane %v2307, 4
        %v2309 = vadd.f32 %v2307, %v2308
        %v2310 = vrot.slane %v2309, 2
        %v2311 = vadd.f32 %v2309, %v2310
        %v2312 = vrot.slane %v2311, 1
        %v2313 = vadd.f32 %v2311, %v2312
        %v2314 = vadd.f32 %v2306, %v2313
        %2315 = vst.msk [vmem:[#allocation4] sm:$0x1] %vm2304, %v2314
        %p2316 = scmp.eq.s32.totalorder %s37, 1
        // Predicated region
        $region125: #{lm_for_pretraining_forward.1} parent=119 // pred_check
          %p2317 = pneg %p2316
        $region126: #{lm_for_pretraining_forward.1} parent=119 // pred_check_branch
          %2319 = sbr.rel (%p2317) target = $region128
        $region127: #{lm_for_pretraining_forward.1} parent=119 // pred_region
          %v2320 = vld [vmem:[#allocation3] sm:$0x1]
          %v2321 = vld [vmem:[#allocation4] sm:$0x1]
          %v2322 = vrcp.pop %v2321
          %v2323 = vmul.f32 %v2320, %v2322
          %2324 = vst.msk [vmem:[#allocation5] sm:$0x1] %vm2304, %v2323
        $region128: #{lm_for_pretraining_forward.1} parent=119 // pred_fallthru
          _
        // Predicated region
        $region129: #{lm_for_pretraining_forward.1} parent=119 // pred_check
          %p2325 = pneg %p590
        $region130: #{lm_for_pretraining_forward.1} parent=119 // pred_check_branch
          %2327 = sbr.rel (%p2325) target = $region132
        $region131: #{lm_for_pretraining_forward.1} parent=119 // pred_region
          %s2329 = ssub.s32 16, 16
          %2330 = vsyncadd [#allocation6], %s2329
          %s2332 = sshll.u32 [#allocation5], 4
          %s2333 = int_to_ptr.vmem [resolvable:$true] %s2332
          %2335 = dma.vmem_to_hbm [thread:$0]  %s2333, 16, %s25, [#allocation6]
        $region132: #{lm_for_pretraining_forward.1} parent=119 // pred_fallthru
          _
        // Predicated region
        $region133: #{lm_for_pretraining_forward.1} parent=119 // pred_check
          %p2336 = pneg %p590
        $region134: #{lm_for_pretraining_forward.1} parent=119 // pred_check_branch
          %2338 = sbr.rel (%p2336) target = $region136
        $region135: #{lm_for_pretraining_forward.1} parent=119 // pred_region
          %2339 = dma.done [#allocation6], 16
        $region136: #{lm_for_pretraining_forward.1} parent=119 // pred_fallthru
          _
      $region120: #{lm_for_pretraining_forward.1} parent=5 // pred_fallthru
        _
      %p2340 = scmp.le.s32.totalorder 2, %s32
      // Predicated region
      $region137: #{lm_for_pretraining_forward.1} parent=5 // pred_check
        %p2341 = pneg %p2340
      $region138: #{lm_for_pretraining_forward.1} parent=5 // pred_check_branch
        %2343 = sbr.rel (%p2341) target = $region140
      $region139: #{lm_for_pretraining_forward.1} parent=5 // pred_region
        %s2344 = ssub.s32 %s32, 2
      $region140: #{lm_for_pretraining_forward.1} parent=5 // pred_fallthru
        _
    $region6: #{lm_for_pretraining_forward.1} parent=1 // loop_footer
      %s36 = sadd.s32 1, %s32
    $region7: #{lm_for_pretraining_forward.1} parent=1 // loop_footer_branch
      %31 = sbr.rel target = $region3
    $region8: #{lm_for_pretraining_forward.1} parent=1 // loop_exit
      _
    %2345 = vsyncpa [#allocation6], 1
    %s2346 = scalar_lea.sflag [#allocation6], 1
    %2347 = vsyncpa %s2346, 1

</llo_original>
